<compile_context>
chip_gen: v5e
topology: v5e:2x2
jax: 0.10.0
libtpu: 0.0.40
codegen_flags: <defaults>
</compile_context>

<pallas_src>
import functools

import jax
import jax.numpy as jnp
from jax.experimental import pallas as pl
from jax.experimental.pallas import tpu as pltpu

PATCH = 14

# --------------------------------------------------------------------------
# Per-generation configuration (tile sizes / VMEM budget)
# --------------------------------------------------------------------------
_CONFIG = None


def _get_config():
    """Tile sizes + scoped-VMEM budget derived from the local TPU generation."""
    global _CONFIG
    if _CONFIG is None:
        vmem_phys = 64 * 1024 * 1024
        try:
            info = pltpu.get_tpu_info()
            vmem_phys = int(getattr(info, "vmem_capacity_bytes", vmem_phys))
        except Exception:
            pass
        if vmem_phys >= 128 * 1024 * 1024:        # v5e / v6e (128 MiB VMEM)
            _CONFIG = dict(vmem_limit=100 * 1024 * 1024,
                           tm=1024, th=1024, tn=1536, tq=512)
        else:                                      # v7x (64 MiB) / unknown
            _CONFIG = dict(vmem_limit=52 * 1024 * 1024,
                           tm=512, th=1024, tn=768, tq=256)
    return _CONFIG


def _cparams(cfg, *sem):
    return pltpu.CompilerParams(dimension_semantics=sem,
                                vmem_limit_bytes=cfg["vmem_limit"])


def _m_tile(m, target):
    """Token-axis tile: whole axis when small, else the per-generation target."""
    return m if m <= target else target


def _split_tile(n, target):
    """Largest 128-multiple divisor of n that is <= target (full axis if
    n <= target or no such divisor).  Exact division is required: these tiles
    feed contraction/column splits where padded tiles would pollute the sum."""
    if n <= target:
        return n
    d = target
    while d >= 128:
        if n % d == 0:
            return d
        d -= 128
    return n


def _heads_per_block(num_heads, hd):
    """Largest head group whose packed feature width is lane-aligned and <=512."""
    best = None
    for hg in range(1, num_heads + 1):
        if num_heads % hg == 0 and (hg * hd) % 128 == 0 and hg * hd <= 512:
            best = hg
    return best if best is not None else num_heads


# --------------------------------------------------------------------------
# Optional single-buffering of grid-invariant operands (probed once, eagerly)
# --------------------------------------------------------------------------
def _probe_single_buffer_support():
    """Whether BlockSpec(pipeline_mode=pl.Buffered(1)) is supported & correct.

    Runs a tiny eager pallas_call at import time; any failure simply disables
    the optimization (default double-buffering is used instead)."""
    try:
        def _k(x_ref, o_ref):
            o_ref[...] = x_ref[...] + 1.0

        spec = pl.BlockSpec((8, 128), lambda i: (0, 0),
                            pipeline_mode=pl.Buffered(1))
        f = pl.pallas_call(
            _k,
            out_shape=jax.ShapeDtypeStruct((8, 128), jnp.float32),
            grid=(2,),
            in_specs=[spec],
            out_specs=pl.BlockSpec((8, 128), lambda i: (0, 0)),
        )
        x = jnp.arange(8 * 128, dtype=jnp.float32).reshape(8, 128)
        y = jax.block_until_ready(f(x))
        return bool(jnp.allclose(y, x + 1.0))
    except Exception:
        return False


_SINGLE_BUF_OK = _probe_single_buffer_support()


def _const_spec(shape, index_map):
    """BlockSpec for an operand whose block index is constant over the grid.
    Single-buffer it when supported (it is only ever fetched once, so the
    second pipeline buffer is pure VMEM waste)."""
    if _SINGLE_BUF_OK:
        return pl.BlockSpec(shape, index_map, pipeline_mode=pl.Buffered(1))
    return pl.BlockSpec(shape, index_map)


# --------------------------------------------------------------------------
# Pallas kernels
# --------------------------------------------------------------------------
def _patch_embed_kernel(p_ref, w_ref, b_ref, pos_ref, o_ref):
    # Patch-extraction conv as a matmul, with bias + positional embedding fused
    # into the epilogue (saves a full HBM pass over the (B,N,D) activation).
    acc = jnp.dot(p_ref[0], w_ref[...], preferred_element_type=jnp.float32)
    o_ref[0, :, :] = acc + b_ref[...] + pos_ref[...]


def patch_embed(patches, w, b, pos, cfg):
    B, N, Kp = patches.shape
    D = w.shape[1]
    tn = _m_tile(N, cfg["tm"])
    return pl.pallas_call(
        _patch_embed_kernel,
        out_shape=jax.ShapeDtypeStruct((B, N, D), jnp.float32),
        grid=(B, pl.cdiv(N, tn)),
        in_specs=[pl.BlockSpec((1, tn, Kp), lambda bi, j: (bi, j, 0)),
                  _const_spec((Kp, D), lambda bi, j: (0, 0)),
                  _const_spec((1, D), lambda bi, j: (0, 0)),
                  pl.BlockSpec((tn, D), lambda bi, j: (j, 0))],
        out_specs=pl.BlockSpec((1, tn, D), lambda bi, j: (bi, j, 0)),
        compiler_params=_cparams(cfg, "parallel", "parallel"),
    )(patches, w, b, pos)


def _layernorm_kernel(x_ref, g_ref, b_ref, o_ref):
    x = x_ref[...].astype(jnp.float32)
    mean = jnp.mean(x, axis=-1, keepdims=True)
    var = jnp.mean(jnp.square(x - mean), axis=-1, keepdims=True)
    y = (x - mean) * jax.lax.rsqrt(var + 1e-6)        # DINOv2 LayerNorm eps=1e-6
    o_ref[...] = (y * g_ref[...] + b_ref[...]).astype(o_ref.dtype)


def layernorm(x, g, b, cfg, out_dtype=jnp.float32):
    """Standalone LN (only used for the final norm before the feature map)."""
    M, D = x.shape
    tm = _m_tile(M, cfg["tm"])
    return pl.pallas_call(
        _layernorm_kernel,
        out_shape=jax.ShapeDtypeStruct((M, D), out_dtype),
        grid=(pl.cdiv(M, tm),),
        in_specs=[pl.BlockSpec((tm, D), lambda i: (i, 0)),
                  _const_spec((1, D), lambda i: (0, 0)),
                  _const_spec((1, D), lambda i: (0, 0))],
        out_specs=pl.BlockSpec((tm, D), lambda i: (i, 0)),
        compiler_params=_cparams(cfg, "parallel"),
    )(x, g, b)


def _ln_qkv_kernel(x_ref, g_ref, b_ref, w_ref, bias_ref, o_ref, xn_ref):
    # LayerNorm prologue (f32, computed once per token tile and cached in VMEM)
    # fused with the single fused-QKV projection, column-tiled over 3D.
    @pl.when(pl.program_id(1) == 0)
    def _():
        xf = x_ref[...].astype(jnp.float32)
        mean = jnp.mean(xf, axis=-1, keepdims=True)
        var = jnp.mean(jnp.square(xf - mean), axis=-1, keepdims=True)
        xn_ref[...] = ((xf - mean) * jax.lax.rsqrt(var + 1e-6) * g_ref[...]
                       + b_ref[...]).astype(xn_ref.dtype)

    o_ref[...] = (jnp.dot(xn_ref[...], w_ref[...],
                          preferred_element_type=jnp.float32)
                  + bias_ref[...]).astype(o_ref.dtype)


def ln_qkv(x, g, b, w, bias, cfg):
    """x:(M,D) f32, w:(D,3D) bf16 -> fused qkv:(M,3D) bf16 (layout [q|k|v])."""
    M, D = x.shape
    N3 = w.shape[1]
    tm = _m_tile(M, cfg["tm"])
    tn = _split_tile(N3, cfg["tn"])
    return pl.pallas_call(
        _ln_qkv_kernel,
        out_shape=jax.ShapeDtypeStruct((M, N3), jnp.bfloat16),
        grid=(pl.cdiv(M, tm), N3 // tn),
        in_specs=[pl.BlockSpec((tm, D), lambda i, j: (i, 0)),
                  _const_spec((1, D), lambda i, j: (0, 0)),
                  _const_spec((1, D), lambda i, j: (0, 0)),
                  pl.BlockSpec((D, tn), lambda i, j: (0, j)),
                  pl.BlockSpec((1, tn), lambda i, j: (0, j))],
        out_specs=pl.BlockSpec((tm, tn), lambda i, j: (i, j)),
        scratch_shapes=[pltpu.VMEM((tm, D), jnp.bfloat16)],
        compiler_params=_cparams(cfg, "parallel", "arbitrary"),
    )(x, g, b, w, bias)


def _attention_kernel(q_ref, k_ref, v_ref, o_ref, *, scale, heads, hd):
    # One (batch, head-group, q-tile) step.  q block: (1, tq, hg*hd); K/V blocks
    # cover the full sequence and stay resident across q tiles (their block
    # index is invariant along the innermost grid axis).  The head-group output
    # is assembled and stored as a single lane-dense block.
    outs = []
    for h in range(heads):
        sl = slice(h * hd, (h + 1) * hd)
        q = q_ref[0, :, sl]
        k = k_ref[0, :, sl]
        v = v_ref[0, :, sl]
        s = jax.lax.dot_general(q, k, (((1,), (1,)), ((), ())),
                                preferred_element_type=jnp.float32) * scale
        s = s - jnp.max(s, axis=-1, keepdims=True)
        p = jnp.exp(s)
        p = p * pl.reciprocal(jnp.sum(p, axis=-1, keepdims=True), approx=True)
        outs.append(jnp.dot(p.astype(v.dtype), v,
                            preferred_element_type=jnp.float32))
    o = outs[0] if len(outs) == 1 else jnp.concatenate(outs, axis=-1)
    o_ref[0, :, :] = o.astype(o_ref.dtype)


def attention(qkv, *, num_heads, scale, cfg):
    """qkv: (B, S, 3D) bf16 with layout [q|k|v]; returns (B, S, D) bf16."""
    B, S, N3 = qkv.shape
    D = N3 // 3
    hd = D // num_heads
    hg = _heads_per_block(num_heads, hd)
    G = num_heads // hg
    hgd = hg * hd
    tq = _m_tile(S, cfg["tq"])
    return pl.pallas_call(
        functools.partial(_attention_kernel, scale=scale, heads=hg, hd=hd),
        out_shape=jax.ShapeDtypeStruct((B, S, D), jnp.bfloat16),
        grid=(B, G, pl.cdiv(S, tq)),
        in_specs=[pl.BlockSpec((1, tq, hgd), lambda b, g, qi: (b, qi, g)),
                  pl.BlockSpec((1, S, hgd), lambda b, g, qi: (b, 0, G + g)),
                  pl.BlockSpec((1, S, hgd), lambda b, g, qi: (b, 0, 2 * G + g))],
        out_specs=pl.BlockSpec((1, tq, hgd), lambda b, g, qi: (b, qi, g)),
        compiler_params=_cparams(cfg, "parallel", "parallel", "parallel"),
    )(qkv, qkv, qkv)


def _linear_scale_res_kernel(a_ref, w_ref, b_ref, ls_ref, res_ref, o_ref):
    # proj linear + LayerScale + residual fused epilogue (residual kept in f32).
    y = jnp.dot(a_ref[...], w_ref[...],
                preferred_element_type=jnp.float32) + b_ref[...]
    o_ref[...] = (res_ref[...].astype(jnp.float32) + y * ls_ref[...]).astype(o_ref.dtype)


def linear_scale_residual(a, w, b, ls, res, cfg):
    M, K = a.shape
    N = w.shape[1]
    tm = _m_tile(M, cfg["tm"])
    return pl.pallas_call(
        _linear_scale_res_kernel,
        out_shape=jax.ShapeDtypeStruct((M, N), res.dtype),
        grid=(pl.cdiv(M, tm),),
        in_specs=[pl.BlockSpec((tm, K), lambda i: (i, 0)),
                  _const_spec((K, N), lambda i: (0, 0)),
                  _const_spec((1, N), lambda i: (0, 0)),
                  _const_spec((1, N), lambda i: (0, 0)),
                  pl.BlockSpec((tm, N), lambda i: (i, 0))],
        out_specs=pl.BlockSpec((tm, N), lambda i: (i, 0)),
        compiler_params=_cparams(cfg, "parallel"),
    )(a, w, b, ls, res)


def _ln_swiglu_res_kernel(x_ref, g_ref, b_ref, w1_ref, b1_ref, w2_ref, b2_ref,
                          w3_ref, b3_ref, ls_ref, o_ref, acc_ref, xn_ref):
    # Grid = (token tiles, hidden tiles).  The hidden axis is a K-split with a
    # resident f32 accumulator so the three FFN weights are tiled, not fully
    # resident.  LayerNorm is computed once per token tile and cached.
    j = pl.program_id(1)

    @pl.when(j == 0)
    def _():
        xf = x_ref[...].astype(jnp.float32)
        mean = jnp.mean(xf, axis=-1, keepdims=True)
        var = jnp.mean(jnp.square(xf - mean), axis=-1, keepdims=True)
        h = (xf - mean) * jax.lax.rsqrt(var + 1e-6)
        xn_ref[...] = (h * g_ref[...] + b_ref[...]).astype(xn_ref.dtype)
        acc_ref[...] = jnp.zeros_like(acc_ref)

    xn = xn_ref[...]
    x1 = jnp.dot(xn, w1_ref[...], preferred_element_type=jnp.float32) + b1_ref[...]
    x2 = jnp.dot(xn, w2_ref[...], preferred_element_type=jnp.float32) + b2_ref[...]
    hgate = (x1 * jax.nn.sigmoid(x1)) * x2                 # SwiGLU gate (f32)
    acc_ref[...] += jnp.dot(hgate.astype(jnp.bfloat16), w3_ref[...],
                            preferred_element_type=jnp.float32)

    @pl.when(j == pl.num_programs(1) - 1)
    def _():
        y = acc_ref[...] + b3_ref[...]
        o_ref[...] = (x_ref[...].astype(jnp.float32) + y * ls_ref[...]).astype(o_ref.dtype)


def ln_swiglu_residual(x, g, b, w1, b1, w2, b2, w3, b3, ls, cfg):
    M, D = x.shape
    H = w1.shape[1]
    tm = _m_tile(M, cfg["tm"])
    th = _split_tile(H, cfg["th"])
    tok = pl.BlockSpec((tm, D), lambda i, j: (i, 0))
    vecd = _const_spec((1, D), lambda i, j: (0, 0))
    return pl.pallas_call(
        _ln_swiglu_res_kernel,
        out_shape=jax.ShapeDtypeStruct((M, D), x.dtype),
        grid=(pl.cdiv(M, tm), H // th),
        in_specs=[tok, vecd, vecd,
                  pl.BlockSpec((D, th), lambda i, j: (0, j)),
                  pl.BlockSpec((1, th), lambda i, j: (0, j)),
                  pl.BlockSpec((D, th), lambda i, j: (0, j)),
                  pl.BlockSpec((1, th), lambda i, j: (0, j)),
                  pl.BlockSpec((th, D), lambda i, j: (j, 0)),
                  vecd, vecd],
        out_specs=tok,
        scratch_shapes=[pltpu.VMEM((tm, D), jnp.float32),
                        pltpu.VMEM((tm, D), jnp.bfloat16)],
        compiler_params=_cparams(cfg, "parallel", "arbitrary"),
    )(x, g, b, w1, b1, w2, b2, w3, b3, ls)


# --------------------------------------------------------------------------
# Parameters (deterministic synthetic init)
# --------------------------------------------------------------------------
def init_params(key, *, in_chans=3, embed_dim=128, depth=2, num_heads=2,
                n_patches=4):
    # SwiGLUFFNFused hidden-size rounding used by dinov2_vitg14.
    hidden = (int(int(embed_dim * 4) * 2 / 3) + 7) // 8 * 8
    kraw = in_chans * PATCH * PATCH
    kpad = -(-kraw // 128) * 128          # pad contraction dim to 128 multiple
    keys = iter(jax.random.split(key, 4 + depth * 8))

    def nrm_f32(shape, std=0.02):
        return std * jax.random.normal(next(keys), shape, jnp.float32)

    def nrm_bf16(shape, std=0.02):
        return nrm_f32(shape, std).astype(jnp.bfloat16)

    patch_w = jnp.pad(nrm_bf16((kraw, embed_dim)), ((0, kpad - kraw), (0, 0)))
    params = {
        "patch_w": patch_w,                                     # (Kpad, D) bf16
        "patch_b": jnp.zeros((1, embed_dim), jnp.float32),
        "cls_token": nrm_f32((1, 1, embed_dim)),
        "pos_embed": nrm_f32((1, 1 + n_patches, embed_dim)),
        "norm_g": jnp.ones((1, embed_dim), jnp.float32),
        "norm_b": jnp.zeros((1, embed_dim), jnp.float32),
        "blocks": [],
    }
    for _ in range(depth):
        params["blocks"].append({
            "ln1_g": jnp.ones((1, embed_dim), jnp.float32),
            "ln1_b": jnp.zeros((1, embed_dim), jnp.float32),
            "qkv_w": nrm_bf16((embed_dim, 3 * embed_dim)),      # fused [q|k|v]
            "qkv_b": jnp.zeros((1, 3 * embed_dim), jnp.float32),
            "proj_w": nrm_bf16((embed_dim, embed_dim)),
            "proj_b": jnp.zeros((1, embed_dim), jnp.float32),
            "ls1": jnp.full((1, embed_dim), 1e-5, jnp.float32),
            "ln2_g": jnp.ones((1, embed_dim), jnp.float32),
            "ln2_b": jnp.zeros((1, embed_dim), jnp.float32),
            "w1": nrm_bf16((embed_dim, hidden)),
            "b1": jnp.zeros((1, hidden), jnp.float32),
            "w2": nrm_bf16((embed_dim, hidden)),
            "b2": jnp.zeros((1, hidden), jnp.float32),
            "w3": nrm_bf16((hidden, embed_dim)),
            "b3": jnp.zeros((1, embed_dim), jnp.float32),
            "ls2": jnp.full((1, embed_dim), 1e-5, jnp.float32),
        })
    return params


# --------------------------------------------------------------------------
# Forward pass (mirrors DINOv2ViT.forward)
# --------------------------------------------------------------------------
def dinov2_forward(params, x, *, num_heads=2):
    cfg = _get_config()
    B, C, Himg, Wimg = x.shape
    Hp, Wp = Himg // PATCH, Wimg // PATCH
    N = Hp * Wp
    D = params["patch_w"].shape[1]
    hd = D // num_heads
    S = N + 1
    kpad = params["patch_w"].shape[0]
    kraw = C * PATCH * PATCH

    # --- patch embed: Conv2d(k=14, s=14) as im2col + padded matmul; the bias
    #     and the patch positional embeddings are fused into the kernel. ---
    patches = x.reshape(B, C, Hp, PATCH, Wp, PATCH)
    patches = jnp.transpose(patches, (0, 2, 4, 1, 3, 5)).reshape(B, N, kraw)
    patches = jnp.pad(patches, ((0, 0), (0, 0), (0, kpad - kraw))).astype(jnp.bfloat16)

    # TODO(synk): interpolate_pos_encoding for image sizes != training resolution is not implemented.
    pos_patch = params["pos_embed"][0, 1:, :]                         # (N, D)
    tok = patch_embed(patches, params["patch_w"], params["patch_b"],
                      pos_patch, cfg)                                 # (B, N, D) f32

    # --- prepend CLS token (with its positional embedding) — single concat ---
    cls_row = params["cls_token"] + params["pos_embed"][:, :1, :]     # (1, 1, D)
    seq = jnp.concatenate([jnp.broadcast_to(cls_row, (B, 1, D)), tok], axis=1)
    x_flat = seq.reshape(B * S, D)                 # (B*S, D) f32 residual carrier

    scale = float(hd) ** -0.5
    for blk in params["blocks"]:
        # attention sub-block: fused LN + fused-QKV -> attention -> proj+LS+res
        qkv = ln_qkv(x_flat, blk["ln1_g"], blk["ln1_b"],
                     blk["qkv_w"], blk["qkv_b"], cfg)                 # (B*S, 3D)
        a = attention(qkv.reshape(B, S, 3 * D), num_heads=num_heads,
                      scale=scale, cfg=cfg)                           # (B, S, D)
        x_flat = linear_scale_residual(a.reshape(B * S, D), blk["proj_w"],
                                       blk["proj_b"], blk["ls1"], x_flat, cfg)

        # FFN sub-block: fused LN + SwiGLU (hidden K-split) + LS + residual
        x_flat = ln_swiglu_residual(x_flat, blk["ln2_g"], blk["ln2_b"],
                                    blk["w1"], blk["b1"], blk["w2"], blk["b2"],
                                    blk["w3"], blk["b3"], blk["ls2"], cfg)

    # get_intermediate_layers(..., norm=True): final LayerNorm applied
    y = layernorm(x_flat, params["norm_g"], params["norm_b"], cfg,
                  out_dtype=jnp.float32)
    seq = y.reshape(B, S, D)
    patch_emb = seq[:, 1:, :]                                         # (B, N, D)
    feature_map = jnp.transpose(patch_emb.reshape(B, Hp, Wp, D), (0, 3, 1, 2))
    return {"feature_map": feature_map}


# --------------------------------------------------------------------------
if __name__ == "__main__":
    key = jax.random.PRNGKey(0)
    k_params, k_x = jax.random.split(key)

    B, C, Himg, Wimg = 2, 3, 28, 28          # 2x2 patch grid (patch size 14)
    D, depth, heads = 128, 2, 2              # D=128 keeps every block lane-aligned
    Hp, Wp = Himg // PATCH, Wimg // PATCH

    params = init_params(k_params, in_chans=C, embed_dim=D, depth=depth,
                         num_heads=heads, n_patches=Hp * Wp)
    x = jax.random.normal(k_x, (B, C, Himg, Wimg), jnp.float32)

    _get_config()            # resolve per-generation config eagerly (outside jit)

    fwd = jax.jit(functools.partial(dinov2_forward, num_heads=heads))
    out = fwd(params, x)
    fmap = jax.block_until_ready(out["feature_map"])

    assert fmap.shape == (B, D, Hp, Wp), fmap.shape
    assert fmap.dtype == jnp.float32
    assert bool(jnp.all(jnp.isfinite(fmap)))
    print("KERNEL_OK")
</pallas_src>

<mosaic_0001>
module attributes {stable_mosaic.version = 11 : i64} {
  func.func @_k(%arg0: i32, %arg1: memref<8x128xf32, #tpu.memory_space<vmem>>, %arg2: memref<8x128xf32, #tpu.memory_space<vmem>>) attributes {dimension_semantics = [#tpu.dimension_semantics<arbitrary>], iteration_bounds = array<i64: 2>, scalar_prefetch = 0 : i64, scratch_operands = 0 : i64, tpu.core_type = #tpu.core_type<tc>, window_params = [{pipeline_mode = #tpu.pipeline_mode<synchronous>, transform_indices = @transform_0, window_bounds = array<i64: 8, 128>}, {pipeline_mode = #tpu.pipeline_mode<synchronous>, transform_indices = @transform_1, window_bounds = array<i64: 8, 128>}]} {
    %c0 = arith.constant 0 : index
    %c0_0 = arith.constant 0 : index
    %0 = vector.load %arg1[%c0, %c0_0] : memref<8x128xf32, #tpu.memory_space<vmem>>, vector<8x128xf32>
    %cst = arith.constant 1.000000e+00 : f32
    %1 = vector.broadcast %cst : f32 to vector<8x128xf32>
    %2 = arith.addf %0, %1 : vector<8x128xf32>
    %c0_1 = arith.constant 0 : index
    %c0_2 = arith.constant 0 : index
    %3 = vector.load %arg2[%c0_1, %c0_2] : memref<8x128xf32, #tpu.memory_space<vmem>>, vector<8x128xf32>
    tpu.vector_store %arg2[%c0_1, %c0_2], %2 {strides = array<i32>} : memref<8x128xf32, #tpu.memory_space<vmem>>, vector<8x128xf32>,
    return
  }
  func.func @transform_0(%arg0: i32) -> (i32, i32) {
    %c0_i32 = arith.constant 0 : i32
    %c0_i32_0 = arith.constant 0 : i32
    %c0_i32_1 = arith.constant 0 : i32
    return %c0_i32, %c0_i32_0 : i32, i32
  }
  func.func @transform_1(%arg0: i32) -> (i32, i32) {
    %c0_i32 = arith.constant 0 : i32
    %c0_i32_0 = arith.constant 0 : i32
    %c0_i32_1 = arith.constant 0 : i32
    return %c0_i32, %c0_i32_0 : i32, i32
  }
}

module attributes {stable_mosaic.version = 11 : i64} {
  func.func @_patch_embed_kernel(%arg0: i32, %arg1: i32, %arg2: memref<1x4x640xbf16, #tpu.memory_space<vmem>>, %arg3: memref<640x128xbf16, #tpu.memory_space<vmem>>, %arg4: memref<1x128xf32, #tpu.memory_space<vmem>>, %arg5: memref<4x128xf32, #tpu.memory_space<vmem>>, %arg6: memref<1x4x128xf32, #tpu.memory_space<vmem>>) attributes {dimension_semantics = [#tpu.dimension_semantics<parallel>, #tpu.dimension_semantics<parallel>], iteration_bounds = array<i64: 2, 1>, scalar_prefetch = 0 : i64, scratch_operands = 0 : i64, tpu.core_type = #tpu.core_type<tc>, window_params = [{transform_indices = @transform_0, window_bounds = array<i64: 1, 4, 640>}, {pipeline_mode = #tpu.pipeline_mode<synchronous>, transform_indices = @transform_1, window_bounds = array<i64: 640, 128>}, {pipeline_mode = #tpu.pipeline_mode<synchronous>, transform_indices = @transform_2, window_bounds = array<i64: 1, 128>}, {transform_indices = @transform_3, window_bounds = array<i64: 4, 128>}, {transform_indices = @transform_4, window_bounds = array<i64: 1, 4, 128>}]} {
    %c0 = arith.constant 0 : index
    %c0_0 = arith.constant 0 : index
    %c0_1 = arith.constant 0 : index
    %0 = vector.load %arg2[%c0, %c0_0, %c0_1] : memref<1x4x640xbf16, #tpu.memory_space<vmem>>, vector<1x4x640xbf16>
    %1 = vector.shape_cast %0 : vector<1x4x640xbf16> to vector<4x640xbf16>
    %c0_2 = arith.constant 0 : index
    %c0_3 = arith.constant 0 : index
    %2 = vector.load %arg3[%c0_2, %c0_3] : memref<640x128xbf16, #tpu.memory_space<vmem>>, vector<640x128xbf16>
    %cst = arith.constant dense<0.000000e+00> : vector<4x128xf32>
    %3 = tpu.matmul %1, %2, %cst {dimension_numbers = #tpu.dot_dimension_numbers<[1], [0], [0], [1], [0, 0, 1, 1], [], []>} : vector<4x640xbf16>, vector<640x128xbf16>, vector<4x128xf32> -> vector<4x128xf32>
    %c0_4 = arith.constant 0 : index
    %c0_5 = arith.constant 0 : index
    %4 = vector.load %arg4[%c0_4, %c0_5] : memref<1x128xf32, #tpu.memory_space<vmem>>, vector<1x128xf32>
    %5 = vector.broadcast %4 : vector<1x128xf32> to vector<4x128xf32>
    %6 = arith.addf %3, %5 : vector<4x128xf32>
    %c0_6 = arith.constant 0 : index
    %c0_7 = arith.constant 0 : index
    %7 = vector.load %arg5[%c0_6, %c0_7] : memref<4x128xf32, #tpu.memory_space<vmem>>, vector<4x128xf32>
    %8 = arith.addf %6, %7 : vector<4x128xf32>
    %c0_8 = arith.constant 0 : index
    %c0_9 = arith.constant 0 : index
    %c0_10 = arith.constant 0 : index
    %9 = vector.load %arg6[%c0_8, %c0_9, %c0_10] : memref<1x4x128xf32, #tpu.memory_space<vmem>>, vector<1x4x128xf32>
    %10 = vector.shape_cast %9 : vector<1x4x128xf32> to vector<4x128xf32>
    %11 = vector.shape_cast %8 : vector<4x128xf32> to vector<1x4x128xf32>
    tpu.vector_store %arg6[%c0_8, %c0_9, %c0_10], %11 {strides = array<i32>} : memref<1x4x128xf32, #tpu.memory_space<vmem>>, vector<1x4x128xf32>,
    return
  }
  func.func @transform_0(%arg0: i32, %arg1: i32) -> (i32, i32, i32) {
    %c0_i32 = arith.constant 0 : i32
    %c0_i32_0 = arith.constant 0 : i32
    return %arg0, %arg1, %c0_i32 : i32, i32, i32
  }
  func.func @transform_1(%arg0: i32, %arg1: i32) -> (i32, i32) {
    %c0_i32 = arith.constant 0 : i32
    %c0_i32_0 = arith.constant 0 : i32
    %c0_i32_1 = arith.constant 0 : i32
    return %c0_i32, %c0_i32_0 : i32, i32
  }
  func.func @transform_2(%arg0: i32, %arg1: i32) -> (i32, i32) {
    %c0_i32 = arith.constant 0 : i32
    %c0_i32_0 = arith.constant 0 : i32
    %c0_i32_1 = arith.constant 0 : i32
    return %c0_i32, %c0_i32_0 : i32, i32
  }
  func.func @transform_3(%arg0: i32, %arg1: i32) -> (i32, i32) {
    %c0_i32 = arith.constant 0 : i32
    %c0_i32_0 = arith.constant 0 : i32
    return %arg1, %c0_i32 : i32, i32
  }
  func.func @transform_4(%arg0: i32, %arg1: i32) -> (i32, i32, i32) {
    %c0_i32 = arith.constant 0 : i32
    %c0_i32_0 = arith.constant 0 : i32
    return %arg0, %arg1, %c0_i32 : i32, i32, i32
  }
}

module attributes {stable_mosaic.version = 11 : i64} {
  func.func @_ln_qkv_kernel(%arg0: i32, %arg1: i32, %arg2: memref<10x128xf32, #tpu.memory_space<vmem>>, %arg3: memref<1x128xf32, #tpu.memory_space<vmem>>, %arg4: memref<1x128xf32, #tpu.memory_space<vmem>>, %arg5: memref<128x384xbf16, #tpu.memory_space<vmem>>, %arg6: memref<1x384xf32, #tpu.memory_space<vmem>>, %arg7: memref<10x384xbf16, #tpu.memory_space<vmem>>, %arg8: memref<10x128xbf16, #tpu.memory_space<vmem>>) attributes {dimension_semantics = [#tpu.dimension_semantics<parallel>, #tpu.dimension_semantics<arbitrary>], iteration_bounds = array<i64: 1, 1>, scalar_prefetch = 0 : i64, scratch_operands = 1 : i64, tpu.core_type = #tpu.core_type<tc>, window_params = [{transform_indices = @transform_0, window_bounds = array<i64: 10, 128>}, {pipeline_mode = #tpu.pipeline_mode<synchronous>, transform_indices = @transform_1, window_bounds = array<i64: 1, 128>}, {pipeline_mode = #tpu.pipeline_mode<synchronous>, transform_indices = @transform_2, window_bounds = array<i64: 1, 128>}, {transform_indices = @transform_3, window_bounds = array<i64: 128, 384>}, {transform_indices = @transform_4, window_bounds = array<i64: 1, 384>}, {transform_indices = @transform_5, window_bounds = array<i64: 10, 384>}]} {
    %c0_i32 = arith.constant 0 : i32
    %0 = arith.cmpi eq, %arg1, %c0_i32 : i32
    %1 = arith.extui %0 : i1 to i32
    %c0_i32_0 = arith.constant 0 : i32
    %2 = arith.cmpi ne, %1, %c0_i32_0 : i32
    scf.if %2 {
      %c0_8 = arith.constant 0 : index
      %c0_9 = arith.constant 0 : index
      %11 = vector.load %arg2[%c0_8, %c0_9] : memref<10x128xf32, #tpu.memory_space<vmem>>, vector<10x128xf32>
      %cst_10 = arith.constant dense<0.000000e+00> : vector<10xf32>
      %12 = vector.multi_reduction <add>, %11, %cst_10 [1] : vector<10x128xf32> to vector<10xf32>
      %13 = vector.shape_cast %12 : vector<10xf32> to vector<10x1xf32>
      %cst_11 = arith.constant 1.280000e+02 : f32
      %14 = vector.broadcast %cst_11 : f32 to vector<10x1xf32>
      %15 = arith.divf %13, %14 : vector<10x1xf32>
      %16 = vector.broadcast %15 : vector<10x1xf32> to vector<10x128xf32>
      %17 = arith.subf %11, %16 : vector<10x128xf32>
      %18 = arith.mulf %17, %17 : vector<10x128xf32>
      %cst_12 = arith.constant dense<0.000000e+00> : vector<10xf32>
      %19 = vector.multi_reduction <add>, %18, %cst_12 [1] : vector<10x128xf32> to vector<10xf32>
      %20 = vector.shape_cast %19 : vector<10xf32> to vector<10x1xf32>
      %cst_13 = arith.constant 1.280000e+02 : f32
      %21 = vector.broadcast %cst_13 : f32 to vector<10x1xf32>
      %22 = arith.divf %20, %21 : vector<10x1xf32>
      %23 = vector.broadcast %15 : vector<10x1xf32> to vector<10x128xf32>
      %24 = arith.subf %11, %23 : vector<10x128xf32>
      %cst_14 = arith.constant 9.99999997E-7 : f32
      %25 = vector.broadcast %cst_14 : f32 to vector<10x1xf32>
      %26 = arith.addf %22, %25 : vector<10x1xf32>
      %27 = math.rsqrt %26 : vector<10x1xf32>
      %28 = vector.broadcast %27 : vector<10x1xf32> to vector<10x128xf32>
      %29 = arith.mulf %24, %28 : vector<10x128xf32>
      %c0_15 = arith.constant 0 : index
      %c0_16 = arith.constant 0 : index
      %30 = vector.load %arg3[%c0_15, %c0_16] : memref<1x128xf32, #tpu.memory_space<vmem>>, vector<1x128xf32>
      %31 = vector.broadcast %30 : vector<1x128xf32> to vector<10x128xf32>
      %32 = arith.mulf %29, %31 : vector<10x128xf32>
      %c0_17 = arith.constant 0 : index
      %c0_18 = arith.constant 0 : index
      %33 = vector.load %arg4[%c0_17, %c0_18] : memref<1x128xf32, #tpu.memory_space<vmem>>, vector<1x128xf32>
      %34 = vector.broadcast %33 : vector<1x128xf32> to vector<10x128xf32>
      %35 = arith.addf %32, %34 : vector<10x128xf32>
      %36 = arith.truncf %35 : vector<10x128xf32> to vector<10x128xbf16>
      %c0_19 = arith.constant 0 : index
      %c0_20 = arith.constant 0 : index
      %37 = vector.load %arg8[%c0_19, %c0_20] : memref<10x128xbf16, #tpu.memory_space<vmem>>, vector<10x128xbf16>
      tpu.vector_store %arg8[%c0_19, %c0_20], %36 {strides = array<i32>} : memref<10x128xbf16, #tpu.memory_space<vmem>>, vector<10x128xbf16>,
    } else {
    }
    %c0 = arith.constant 0 : index
    %c0_1 = arith.constant 0 : index
    %3 = vector.load %arg8[%c0, %c0_1] : memref<10x128xbf16, #tpu.memory_space<vmem>>, vector<10x128xbf16>
    %c0_2 = arith.constant 0 : index
    %c0_3 = arith.constant 0 : index
    %4 = vector.load %arg5[%c0_2, %c0_3] : memref<128x384xbf16, #tpu.memory_space<vmem>>, vector<128x384xbf16>
    %cst = arith.constant dense<0.000000e+00> : vector<10x384xf32>
    %5 = tpu.matmul %3, %4, %cst {dimension_numbers = #tpu.dot_dimension_numbers<[1], [0], [0], [1], [0, 0, 1, 1], [], []>} : vector<10x128xbf16>, vector<128x384xbf16>, vector<10x384xf32> -> vector<10x384xf32>
    %c0_4 = arith.constant 0 : index
    %c0_5 = arith.constant 0 : index
    %6 = vector.load %arg6[%c0_4, %c0_5] : memref<1x384xf32, #tpu.memory_space<vmem>>, vector<1x384xf32>
    %7 = vector.broadcast %6 : vector<1x384xf32> to vector<10x384xf32>
    %8 = arith.addf %5, %7 : vector<10x384xf32>
    %9 = arith.truncf %8 : vector<10x384xf32> to vector<10x384xbf16>
    %c0_6 = arith.constant 0 : index
    %c0_7 = arith.constant 0 : index
    %10 = vector.load %arg7[%c0_6, %c0_7] : memref<10x384xbf16, #tpu.memory_space<vmem>>, vector<10x384xbf16>
    tpu.vector_store %arg7[%c0_6, %c0_7], %9 {strides = array<i32>} : memref<10x384xbf16, #tpu.memory_space<vmem>>, vector<10x384xbf16>,
    return
  }
  func.func @transform_0(%arg0: i32, %arg1: i32) -> (i32, i32) {
    %c0_i32 = arith.constant 0 : i32
    %c0_i32_0 = arith.constant 0 : i32
    return %arg0, %c0_i32 : i32, i32
  }
  func.func @transform_1(%arg0: i32, %arg1: i32) -> (i32, i32) {
    %c0_i32 = arith.constant 0 : i32
    %c0_i32_0 = arith.constant 0 : i32
    %c0_i32_1 = arith.constant 0 : i32
    return %c0_i32, %c0_i32_0 : i32, i32
  }
  func.func @transform_2(%arg0: i32, %arg1: i32) -> (i32, i32) {
    %c0_i32 = arith.constant 0 : i32
    %c0_i32_0 = arith.constant 0 : i32
    %c0_i32_1 = arith.constant 0 : i32
    return %c0_i32, %c0_i32_0 : i32, i32
  }
  func.func @transform_3(%arg0: i32, %arg1: i32) -> (i32, i32) {
    %c0_i32 = arith.constant 0 : i32
    %c0_i32_0 = arith.constant 0 : i32
    return %c0_i32, %arg1 : i32, i32
  }
  func.func @transform_4(%arg0: i32, %arg1: i32) -> (i32, i32) {
    %c0_i32 = arith.constant 0 : i32
    %c0_i32_0 = arith.constant 0 : i32
    return %c0_i32, %arg1 : i32, i32
  }
  func.func @transform_5(%arg0: i32, %arg1: i32) -> (i32, i32) {
    %c0_i32 = arith.constant 0 : i32
    return %arg0, %arg1 : i32, i32
  }
}

module attributes {stable_mosaic.version = 11 : i64} {
  func.func @_attention_kernel(%arg0: i32, %arg1: i32, %arg2: i32, %arg3: memref<1x5x128xbf16, #tpu.memory_space<vmem>>, %arg4: memref<1x5x128xbf16, #tpu.memory_space<vmem>>, %arg5: memref<1x5x128xbf16, #tpu.memory_space<vmem>>, %arg6: memref<1x5x128xbf16, #tpu.memory_space<vmem>>) attributes {dimension_semantics = [#tpu.dimension_semantics<parallel>, #tpu.dimension_semantics<parallel>, #tpu.dimension_semantics<parallel>], iteration_bounds = array<i64: 2, 1, 1>, scalar_prefetch = 0 : i64, scratch_operands = 0 : i64, tpu.core_type = #tpu.core_type<tc>, window_params = [{transform_indices = @transform_0, window_bounds = array<i64: 1, 5, 128>}, {transform_indices = @transform_1, window_bounds = array<i64: 1, 5, 128>}, {transform_indices = @transform_2, window_bounds = array<i64: 1, 5, 128>}, {transform_indices = @transform_3, window_bounds = array<i64: 1, 5, 128>}]} {
    %c0 = arith.constant 0 : index
    %c0_0 = arith.constant 0 : index
    %c0_1 = arith.constant 0 : index
    %0 = vector.load %arg3[%c0, %c0_0, %c0_1] : memref<1x5x128xbf16, #tpu.memory_space<vmem>>, vector<1x5x64xbf16>
    %1 = vector.shape_cast %0 : vector<1x5x64xbf16> to vector<5x64xbf16>
    %c0_2 = arith.constant 0 : index
    %c0_3 = arith.constant 0 : index
    %c0_4 = arith.constant 0 : index
    %2 = vector.load %arg4[%c0_2, %c0_3, %c0_4] : memref<1x5x128xbf16, #tpu.memory_space<vmem>>, vector<1x5x64xbf16>
    %3 = vector.shape_cast %2 : vector<1x5x64xbf16> to vector<5x64xbf16>
    %c0_5 = arith.constant 0 : index
    %c0_6 = arith.constant 0 : index
    %c0_7 = arith.constant 0 : index
    %4 = vector.load %arg5[%c0_5, %c0_6, %c0_7] : memref<1x5x128xbf16, #tpu.memory_space<vmem>>, vector<1x5x64xbf16>
    %5 = vector.shape_cast %4 : vector<1x5x64xbf16> to vector<5x64xbf16>
    %cst = arith.constant dense<0.000000e+00> : vector<5x5xf32>
    %6 = tpu.matmul %1, %3, %cst {dimension_numbers = #tpu.dot_dimension_numbers<[1], [1], [0], [0], [0, 0, 1, 0], [], []>} : vector<5x64xbf16>, vector<5x64xbf16>, vector<5x5xf32> -> vector<5x5xf32>
    %cst_8 = arith.constant 1.250000e-01 : f32
    %7 = vector.broadcast %cst_8 : f32 to vector<5x5xf32>
    %8 = arith.mulf %6, %7 : vector<5x5xf32>
    %cst_9 = arith.constant dense<0xFF800000> : vector<5xf32>
    %9 = vector.multi_reduction <maximumf>, %8, %cst_9 [1] : vector<5x5xf32> to vector<5xf32>
    %10 = vector.shape_cast %9 : vector<5xf32> to vector<5x1xf32>
    %11 = vector.broadcast %10 : vector<5x1xf32> to vector<5x5xf32>
    %12 = arith.subf %8, %11 : vector<5x5xf32>
    %13 = math.exp %12 : vector<5x5xf32>
    %cst_10 = arith.constant dense<0.000000e+00> : vector<5xf32>
    %14 = vector.multi_reduction <add>, %13, %cst_10 [1] : vector<5x5xf32> to vector<5xf32>
    %15 = vector.shape_cast %14 : vector<5xf32> to vector<5x1xf32>
    %16 = tpu.reciprocal %15 {approx = true} : vector<5x1xf32> -> vector<5x1xf32>
    %17 = vector.broadcast %16 : vector<5x1xf32> to vector<5x5xf32>
    %18 = arith.mulf %13, %17 : vector<5x5xf32>
    %19 = arith.truncf %18 : vector<5x5xf32> to vector<5x5xbf16>
    %cst_11 = arith.constant dense<0.000000e+00> : vector<5x64xf32>
    %20 = tpu.matmul %19, %5, %cst_11 {dimension_numbers = #tpu.dot_dimension_numbers<[1], [0], [0], [1], [0, 0, 1, 1], [], []>} : vector<5x5xbf16>, vector<5x64xbf16>, vector<5x64xf32> -> vector<5x64xf32>
    %c0_12 = arith.constant 0 : index
    %c0_13 = arith.constant 0 : index
    %c64 = arith.constant 64 : index
    %21 = vector.load %arg3[%c0_12, %c0_13, %c64] : memref<1x5x128xbf16, #tpu.memory_space<vmem>>, vector<1x5x64xbf16>
    %22 = vector.shape_cast %21 : vector<1x5x64xbf16> to vector<5x64xbf16>
    %c0_14 = arith.constant 0 : index
    %c0_15 = arith.constant 0 : index
    %c64_16 = arith.constant 64 : index
    %23 = vector.load %arg4[%c0_14, %c0_15, %c64_16] : memref<1x5x128xbf16, #tpu.memory_space<vmem>>, vector<1x5x64xbf16>
    %24 = vector.shape_cast %23 : vector<1x5x64xbf16> to vector<5x64xbf16>
    %c0_17 = arith.constant 0 : index
    %c0_18 = arith.constant 0 : index
    %c64_19 = arith.constant 64 : index
    %25 = vector.load %arg5[%c0_17, %c0_18, %c64_19] : memref<1x5x128xbf16, #tpu.memory_space<vmem>>, vector<1x5x64xbf16>
    %26 = vector.shape_cast %25 : vector<1x5x64xbf16> to vector<5x64xbf16>
    %cst_20 = arith.constant dense<0.000000e+00> : vector<5x5xf32>
    %27 = tpu.matmul %22, %24, %cst_20 {dimension_numbers = #tpu.dot_dimension_numbers<[1], [1], [0], [0], [0, 0, 1, 0], [], []>} : vector<5x64xbf16>, vector<5x64xbf16>, vector<5x5xf32> -> vector<5x5xf32>
    %cst_21 = arith.constant 1.250000e-01 : f32
    %28 = vector.broadcast %cst_21 : f32 to vector<5x5xf32>
    %29 = arith.mulf %27, %28 : vector<5x5xf32>
    %cst_22 = arith.constant dense<0xFF800000> : vector<5xf32>
    %30 = vector.multi_reduction <maximumf>, %29, %cst_22 [1] : vector<5x5xf32> to vector<5xf32>
    %31 = vector.shape_cast %30 : vector<5xf32> to vector<5x1xf32>
    %32 = vector.broadcast %31 : vector<5x1xf32> to vector<5x5xf32>
    %33 = arith.subf %29, %32 : vector<5x5xf32>
    %34 = math.exp %33 : vector<5x5xf32>
    %cst_23 = arith.constant dense<0.000000e+00> : vector<5xf32>
    %35 = vector.multi_reduction <add>, %34, %cst_23 [1] : vector<5x5xf32> to vector<5xf32>
    %36 = vector.shape_cast %35 : vector<5xf32> to vector<5x1xf32>
    %37 = tpu.reciprocal %36 {approx = true} : vector<5x1xf32> -> vector<5x1xf32>
    %38 = vector.broadcast %37 : vector<5x1xf32> to vector<5x5xf32>
    %39 = arith.mulf %34, %38 : vector<5x5xf32>
    %40 = arith.truncf %39 : vector<5x5xf32> to vector<5x5xbf16>
    %cst_24 = arith.constant dense<0.000000e+00> : vector<5x64xf32>
    %41 = tpu.matmul %40, %26, %cst_24 {dimension_numbers = #tpu.dot_dimension_numbers<[1], [0], [0], [1], [0, 0, 1, 1], [], []>} : vector<5x5xbf16>, vector<5x64xbf16>, vector<5x64xf32> -> vector<5x64xf32>
    %42 = tpu.concatenate %20, %41 in 1 : vector<5x64xf32>, vector<5x64xf32> -> vector<5x128xf32>
    %43 = arith.truncf %42 : vector<5x128xf32> to vector<5x128xbf16>
    %c0_25 = arith.constant 0 : index
    %c0_26 = arith.constant 0 : index
    %c0_27 = arith.constant 0 : index
    %44 = vector.load %arg6[%c0_25, %c0_26, %c0_27] : memref<1x5x128xbf16, #tpu.memory_space<vmem>>, vector<1x5x128xbf16>
    %45 = vector.shape_cast %44 : vector<1x5x128xbf16> to vector<5x128xbf16>
    %46 = vector.shape_cast %43 : vector<5x128xbf16> to vector<1x5x128xbf16>
    tpu.vector_store %arg6[%c0_25, %c0_26, %c0_27], %46 {strides = array<i32>} : memref<1x5x128xbf16, #tpu.memory_space<vmem>>, vector<1x5x128xbf16>,
    return
  }
  func.func @transform_0(%arg0: i32, %arg1: i32, %arg2: i32) -> (i32, i32, i32) {
    %c0_i32 = arith.constant 0 : i32
    return %arg0, %arg2, %arg1 : i32, i32, i32
  }
  func.func @transform_1(%arg0: i32, %arg1: i32, %arg2: i32) -> (i32, i32, i32) {
    %c1_i32 = arith.constant 1 : i32
    %0 = arith.addi %c1_i32, %arg1 : i32
    %c0_i32 = arith.constant 0 : i32
    %c0_i32_0 = arith.constant 0 : i32
    return %arg0, %c0_i32, %0 : i32, i32, i32
  }
  func.func @transform_2(%arg0: i32, %arg1: i32, %arg2: i32) -> (i32, i32, i32) {
    %c2_i32 = arith.constant 2 : i32
    %0 = arith.addi %c2_i32, %arg1 : i32
    %c0_i32 = arith.constant 0 : i32
    %c0_i32_0 = arith.constant 0 : i32
    return %arg0, %c0_i32, %0 : i32, i32, i32
  }
  func.func @transform_3(%arg0: i32, %arg1: i32, %arg2: i32) -> (i32, i32, i32) {
    %c0_i32 = arith.constant 0 : i32
    return %arg0, %arg2, %arg1 : i32, i32, i32
  }
}

module attributes {stable_mosaic.version = 11 : i64} {
  func.func @_linear_scale_res_kernel(%arg0: i32, %arg1: memref<10x128xbf16, #tpu.memory_space<vmem>>, %arg2: memref<128x128xbf16, #tpu.memory_space<vmem>>, %arg3: memref<1x128xf32, #tpu.memory_space<vmem>>, %arg4: memref<1x128xf32, #tpu.memory_space<vmem>>, %arg5: memref<10x128xf32, #tpu.memory_space<vmem>>, %arg6: memref<10x128xf32, #tpu.memory_space<vmem>>) attributes {dimension_semantics = [#tpu.dimension_semantics<parallel>], iteration_bounds = array<i64: 1>, scalar_prefetch = 0 : i64, scratch_operands = 0 : i64, tpu.core_type = #tpu.core_type<tc>, window_params = [{transform_indices = @transform_0, window_bounds = array<i64: 10, 128>}, {pipeline_mode = #tpu.pipeline_mode<synchronous>, transform_indices = @transform_1, window_bounds = array<i64: 128, 128>}, {pipeline_mode = #tpu.pipeline_mode<synchronous>, transform_indices = @transform_2, window_bounds = array<i64: 1, 128>}, {pipeline_mode = #tpu.pipeline_mode<synchronous>, transform_indices = @transform_3, window_bounds = array<i64: 1, 128>}, {transform_indices = @transform_4, window_bounds = array<i64: 10, 128>}, {transform_indices = @transform_5, window_bounds = array<i64: 10, 128>}]} {
    %c0 = arith.constant 0 : index
    %c0_0 = arith.constant 0 : index
    %0 = vector.load %arg1[%c0, %c0_0] : memref<10x128xbf16, #tpu.memory_space<vmem>>, vector<10x128xbf16>
    %c0_1 = arith.constant 0 : index
    %c0_2 = arith.constant 0 : index
    %1 = vector.load %arg2[%c0_1, %c0_2] : memref<128x128xbf16, #tpu.memory_space<vmem>>, vector<128x128xbf16>
    %cst = arith.constant dense<0.000000e+00> : vector<10x128xf32>
    %2 = tpu.matmul %0, %1, %cst {dimension_numbers = #tpu.dot_dimension_numbers<[1], [0], [0], [1], [0, 0, 1, 1], [], []>} : vector<10x128xbf16>, vector<128x128xbf16>, vector<10x128xf32> -> vector<10x128xf32>
    %c0_3 = arith.constant 0 : index
    %c0_4 = arith.constant 0 : index
    %3 = vector.load %arg3[%c0_3, %c0_4] : memref<1x128xf32, #tpu.memory_space<vmem>>, vector<1x128xf32>
    %4 = vector.broadcast %3 : vector<1x128xf32> to vector<10x128xf32>
    %5 = arith.addf %2, %4 : vector<10x128xf32>
    %c0_5 = arith.constant 0 : index
    %c0_6 = arith.constant 0 : index
    %6 = vector.load %arg5[%c0_5, %c0_6] : memref<10x128xf32, #tpu.memory_space<vmem>>, vector<10x128xf32>
    %c0_7 = arith.constant 0 : index
    %c0_8 = arith.constant 0 : index
    %7 = vector.load %arg4[%c0_7, %c0_8] : memref<1x128xf32, #tpu.memory_space<vmem>>, vector<1x128xf32>
    %8 = vector.broadcast %7 : vector<1x128xf32> to vector<10x128xf32>
    %9 = arith.mulf %5, %8 : vector<10x128xf32>
    %10 = arith.addf %6, %9 : vector<10x128xf32>
    %c0_9 = arith.constant 0 : index
    %c0_10 = arith.constant 0 : index
    %11 = vector.load %arg6[%c0_9, %c0_10] : memref<10x128xf32, #tpu.memory_space<vmem>>, vector<10x128xf32>
    tpu.vector_store %arg6[%c0_9, %c0_10], %10 {strides = array<i32>} : memref<10x128xf32, #tpu.memory_space<vmem>>, vector<10x128xf32>,
    return
  }
  func.func @transform_0(%arg0: i32) -> (i32, i32) {
    %c0_i32 = arith.constant 0 : i32
    %c0_i32_0 = arith.constant 0 : i32
    return %arg0, %c0_i32 : i32, i32
  }
  func.func @transform_1(%arg0: i32) -> (i32, i32) {
    %c0_i32 = arith.constant 0 : i32
    %c0_i32_0 = arith.constant 0 : i32
    %c0_i32_1 = arith.constant 0 : i32
    return %c0_i32, %c0_i32_0 : i32, i32
  }
  func.func @transform_2(%arg0: i32) -> (i32, i32) {
    %c0_i32 = arith.constant 0 : i32
    %c0_i32_0 = arith.constant 0 : i32
    %c0_i32_1 = arith.constant 0 : i32
    return %c0_i32, %c0_i32_0 : i32, i32
  }
  func.func @transform_3(%arg0: i32) -> (i32, i32) {
    %c0_i32 = arith.constant 0 : i32
    %c0_i32_0 = arith.constant 0 : i32
    %c0_i32_1 = arith.constant 0 : i32
    return %c0_i32, %c0_i32_0 : i32, i32
  }
  func.func @transform_4(%arg0: i32) -> (i32, i32) {
    %c0_i32 = arith.constant 0 : i32
    %c0_i32_0 = arith.constant 0 : i32
    return %arg0, %c0_i32 : i32, i32
  }
  func.func @transform_5(%arg0: i32) -> (i32, i32) {
    %c0_i32 = arith.constant 0 : i32
    %c0_i32_0 = arith.constant 0 : i32
    return %arg0, %c0_i32 : i32, i32
  }
}

module attributes {stable_mosaic.version = 11 : i64} {
  func.func @_layernorm_kernel(%arg0: i32, %arg1: memref<10x128xf32, #tpu.memory_space<vmem>>, %arg2: memref<1x128xf32, #tpu.memory_space<vmem>>, %arg3: memref<1x128xf32, #tpu.memory_space<vmem>>, %arg4: memref<10x128xf32, #tpu.memory_space<vmem>>) attributes {dimension_semantics = [#tpu.dimension_semantics<parallel>], iteration_bounds = array<i64: 1>, scalar_prefetch = 0 : i64, scratch_operands = 0 : i64, tpu.core_type = #tpu.core_type<tc>, window_params = [{transform_indices = @transform_0, window_bounds = array<i64: 10, 128>}, {pipeline_mode = #tpu.pipeline_mode<synchronous>, transform_indices = @transform_1, window_bounds = array<i64: 1, 128>}, {pipeline_mode = #tpu.pipeline_mode<synchronous>, transform_indices = @transform_2, window_bounds = array<i64: 1, 128>}, {transform_indices = @transform_3, window_bounds = array<i64: 10, 128>}]} {
    %c0 = arith.constant 0 : index
    %c0_0 = arith.constant 0 : index
    %0 = vector.load %arg1[%c0, %c0_0] : memref<10x128xf32, #tpu.memory_space<vmem>>, vector<10x128xf32>
    %cst = arith.constant dense<0.000000e+00> : vector<10xf32>
    %1 = vector.multi_reduction <add>, %0, %cst [1] : vector<10x128xf32> to vector<10xf32>
    %2 = vector.shape_cast %1 : vector<10xf32> to vector<10x1xf32>
    %cst_1 = arith.constant 1.280000e+02 : f32
    %3 = vector.broadcast %cst_1 : f32 to vector<10x1xf32>
    %4 = arith.divf %2, %3 : vector<10x1xf32>
    %5 = vector.broadcast %4 : vector<10x1xf32> to vector<10x128xf32>
    %6 = arith.subf %0, %5 : vector<10x128xf32>
    %7 = arith.mulf %6, %6 : vector<10x128xf32>
    %cst_2 = arith.constant dense<0.000000e+00> : vector<10xf32>
    %8 = vector.multi_reduction <add>, %7, %cst_2 [1] : vector<10x128xf32> to vector<10xf32>
    %9 = vector.shape_cast %8 : vector<10xf32> to vector<10x1xf32>
    %cst_3 = arith.constant 1.280000e+02 : f32
    %10 = vector.broadcast %cst_3 : f32 to vector<10x1xf32>
    %11 = arith.divf %9, %10 : vector<10x1xf32>
    %12 = vector.broadcast %4 : vector<10x1xf32> to vector<10x128xf32>
    %13 = arith.subf %0, %12 : vector<10x128xf32>
    %cst_4 = arith.constant 9.99999997E-7 : f32
    %14 = vector.broadcast %cst_4 : f32 to vector<10x1xf32>
    %15 = arith.addf %11, %14 : vector<10x1xf32>
    %16 = math.rsqrt %15 : vector<10x1xf32>
    %17 = vector.broadcast %16 : vector<10x1xf32> to vector<10x128xf32>
    %18 = arith.mulf %13, %17 : vector<10x128xf32>
    %c0_5 = arith.constant 0 : index
    %c0_6 = arith.constant 0 : index
    %19 = vector.load %arg2[%c0_5, %c0_6] : memref<1x128xf32, #tpu.memory_space<vmem>>, vector<1x128xf32>
    %20 = vector.broadcast %19 : vector<1x128xf32> to vector<10x128xf32>
    %21 = arith.mulf %18, %20 : vector<10x128xf32>
    %c0_7 = arith.constant 0 : index
    %c0_8 = arith.constant 0 : index
    %22 = vector.load %arg3[%c0_7, %c0_8] : memref<1x128xf32, #tpu.memory_space<vmem>>, vector<1x128xf32>
    %23 = vector.broadcast %22 : vector<1x128xf32> to vector<10x128xf32>
    %24 = arith.addf %21, %23 : vector<10x128xf32>
    %c0_9 = arith.constant 0 : index
    %c0_10 = arith.constant 0 : index
    %25 = vector.load %arg4[%c0_9, %c0_10] : memref<10x128xf32, #tpu.memory_space<vmem>>, vector<10x128xf32>
    tpu.vector_store %arg4[%c0_9, %c0_10], %24 {strides = array<i32>} : memref<10x128xf32, #tpu.memory_space<vmem>>, vector<10x128xf32>,
    return
  }
  func.func @transform_0(%arg0: i32) -> (i32, i32) {
    %c0_i32 = arith.constant 0 : i32
    %c0_i32_0 = arith.constant 0 : i32
    return %arg0, %c0_i32 : i32, i32
  }
  func.func @transform_1(%arg0: i32) -> (i32, i32) {
    %c0_i32 = arith.constant 0 : i32
    %c0_i32_0 = arith.constant 0 : i32
    %c0_i32_1 = arith.constant 0 : i32
    return %c0_i32, %c0_i32_0 : i32, i32
  }
  func.func @transform_2(%arg0: i32) -> (i32, i32) {
    %c0_i32 = arith.constant 0 : i32
    %c0_i32_0 = arith.constant 0 : i32
    %c0_i32_1 = arith.constant 0 : i32
    return %c0_i32, %c0_i32_0 : i32, i32
  }
  func.func @transform_3(%arg0: i32) -> (i32, i32) {
    %c0_i32 = arith.constant 0 : i32
    %c0_i32_0 = arith.constant 0 : i32
    return %arg0, %c0_i32 : i32, i32
  }
}

module attributes {stable_mosaic.version = 11 : i64} {
  func.func @_ln_swiglu_res_kernel(%arg0: i32, %arg1: i32, %arg2: memref<10x128xf32, #tpu.memory_space<vmem>>, %arg3: memref<1x128xf32, #tpu.memory_space<vmem>>, %arg4: memref<1x128xf32, #tpu.memory_space<vmem>>, %arg5: memref<128x344xbf16, #tpu.memory_space<vmem>>, %arg6: memref<1x344xf32, #tpu.memory_space<vmem>>, %arg7: memref<128x344xbf16, #tpu.memory_space<vmem>>, %arg8: memref<1x344xf32, #tpu.memory_space<vmem>>, %arg9: memref<344x128xbf16, #tpu.memory_space<vmem>>, %arg10: memref<1x128xf32, #tpu.memory_space<vmem>>, %arg11: memref<1x128xf32, #tpu.memory_space<vmem>>, %arg12: memref<10x128xf32, #tpu.memory_space<vmem>>, %arg13: memref<10x128xf32, #tpu.memory_space<vmem>>, %arg14: memref<10x128xbf16, #tpu.memory_space<vmem>>) attributes {dimension_semantics = [#tpu.dimension_semantics<parallel>, #tpu.dimension_semantics<arbitrary>], iteration_bounds = array<i64: 1, 1>, scalar_prefetch = 0 : i64, scratch_operands = 2 : i64, tpu.core_type = #tpu.core_type<tc>, window_params = [{transform_indices = @transform_0, window_bounds = array<i64: 10, 128>}, {pipeline_mode = #tpu.pipeline_mode<synchronous>, transform_indices = @transform_1, window_bounds = array<i64: 1, 128>}, {pipeline_mode = #tpu.pipeline_mode<synchronous>, transform_indices = @transform_2, window_bounds = array<i64: 1, 128>}, {transform_indices = @transform_3, window_bounds = array<i64: 128, 344>}, {transform_indices = @transform_4, window_bounds = array<i64: 1, 344>}, {transform_indices = @transform_5, window_bounds = array<i64: 128, 344>}, {transform_indices = @transform_6, window_bounds = array<i64: 1, 344>}, {transform_indices = @transform_7, window_bounds = array<i64: 344, 128>}, {pipeline_mode = #tpu.pipeline_mode<synchronous>, transform_indices = @transform_8, window_bounds = array<i64: 1, 128>}, {pipeline_mode = #tpu.pipeline_mode<synchronous>, transform_indices = @transform_9, window_bounds = array<i64: 1, 128>}, {transform_indices = @transform_10, window_bounds = array<i64: 10, 128>}]} {
    %c0_i32 = arith.constant 0 : i32
    %0 = arith.cmpi eq, %arg1, %c0_i32 : i32
    %1 = arith.extui %0 : i1 to i32
    %c0_i32_0 = arith.constant 0 : i32
    %2 = arith.cmpi ne, %1, %c0_i32_0 : i32
    scf.if %2 {
      %c0_21 = arith.constant 0 : index
      %c0_22 = arith.constant 0 : index
      %30 = vector.load %arg2[%c0_21, %c0_22] : memref<10x128xf32, #tpu.memory_space<vmem>>, vector<10x128xf32>
      %cst_23 = arith.constant dense<0.000000e+00> : vector<10xf32>
      %31 = vector.multi_reduction <add>, %30, %cst_23 [1] : vector<10x128xf32> to vector<10xf32>
      %32 = vector.shape_cast %31 : vector<10xf32> to vector<10x1xf32>
      %cst_24 = arith.constant 1.280000e+02 : f32
      %33 = vector.broadcast %cst_24 : f32 to vector<10x1xf32>
      %34 = arith.divf %32, %33 : vector<10x1xf32>
      %35 = vector.broadcast %34 : vector<10x1xf32> to vector<10x128xf32>
      %36 = arith.subf %30, %35 : vector<10x128xf32>
      %37 = arith.mulf %36, %36 : vector<10x128xf32>
      %cst_25 = arith.constant dense<0.000000e+00> : vector<10xf32>
      %38 = vector.multi_reduction <add>, %37, %cst_25 [1] : vector<10x128xf32> to vector<10xf32>
      %39 = vector.shape_cast %38 : vector<10xf32> to vector<10x1xf32>
      %cst_26 = arith.constant 1.280000e+02 : f32
      %40 = vector.broadcast %cst_26 : f32 to vector<10x1xf32>
      %41 = arith.divf %39, %40 : vector<10x1xf32>
      %42 = vector.broadcast %34 : vector<10x1xf32> to vector<10x128xf32>
      %43 = arith.subf %30, %42 : vector<10x128xf32>
      %cst_27 = arith.constant 9.99999997E-7 : f32
      %44 = vector.broadcast %cst_27 : f32 to vector<10x1xf32>
      %45 = arith.addf %41, %44 : vector<10x1xf32>
      %46 = math.rsqrt %45 : vector<10x1xf32>
      %47 = vector.broadcast %46 : vector<10x1xf32> to vector<10x128xf32>
      %48 = arith.mulf %43, %47 : vector<10x128xf32>
      %c0_28 = arith.constant 0 : index
      %c0_29 = arith.constant 0 : index
      %49 = vector.load %arg3[%c0_28, %c0_29] : memref<1x128xf32, #tpu.memory_space<vmem>>, vector<1x128xf32>
      %50 = vector.broadcast %49 : vector<1x128xf32> to vector<10x128xf32>
      %51 = arith.mulf %48, %50 : vector<10x128xf32>
      %c0_30 = arith.constant 0 : index
      %c0_31 = arith.constant 0 : index
      %52 = vector.load %arg4[%c0_30, %c0_31] : memref<1x128xf32, #tpu.memory_space<vmem>>, vector<1x128xf32>
      %53 = vector.broadcast %52 : vector<1x128xf32> to vector<10x128xf32>
      %54 = arith.addf %51, %53 : vector<10x128xf32>
      %55 = arith.truncf %54 : vector<10x128xf32> to vector<10x128xbf16>
      %c0_32 = arith.constant 0 : index
      %c0_33 = arith.constant 0 : index
      %56 = vector.load %arg14[%c0_32, %c0_33] : memref<10x128xbf16, #tpu.memory_space<vmem>>, vector<10x128xbf16>
      tpu.vector_store %arg14[%c0_32, %c0_33], %55 {strides = array<i32>} : memref<10x128xbf16, #tpu.memory_space<vmem>>, vector<10x128xbf16>,
      %cst_34 = arith.constant 0.000000e+00 : f32
      %57 = vector.broadcast %cst_34 : f32 to vector<10x128xf32>
      %c0_35 = arith.constant 0 : index
      %c0_36 = arith.constant 0 : index
      %58 = vector.load %arg13[%c0_35, %c0_36] : memref<10x128xf32, #tpu.memory_space<vmem>>, vector<10x128xf32>
      tpu.vector_store %arg13[%c0_35, %c0_36], %57 {strides = array<i32>} : memref<10x128xf32, #tpu.memory_space<vmem>>, vector<10x128xf32>,
    } else {
    }
    %c0 = arith.constant 0 : index
    %c0_1 = arith.constant 0 : index
    %3 = vector.load %arg14[%c0, %c0_1] : memref<10x128xbf16, #tpu.memory_space<vmem>>, vector<10x128xbf16>
    %c0_2 = arith.constant 0 : index
    %c0_3 = arith.constant 0 : index
    %4 = vector.load %arg5[%c0_2, %c0_3] : memref<128x344xbf16, #tpu.memory_space<vmem>>, vector<128x344xbf16>
    %cst = arith.constant dense<0.000000e+00> : vector<10x344xf32>
    %5 = tpu.matmul %3, %4, %cst {dimension_numbers = #tpu.dot_dimension_numbers<[1], [0], [0], [1], [0, 0, 1, 1], [], []>} : vector<10x128xbf16>, vector<128x344xbf16>, vector<10x344xf32> -> vector<10x344xf32>
    %c0_4 = arith.constant 0 : index
    %c0_5 = arith.constant 0 : index
    %6 = vector.load %arg6[%c0_4, %c0_5] : memref<1x344xf32, #tpu.memory_space<vmem>>, vector<1x344xf32>
    %7 = vector.broadcast %6 : vector<1x344xf32> to vector<10x344xf32>
    %8 = arith.addf %5, %7 : vector<10x344xf32>
    %c0_6 = arith.constant 0 : index
    %c0_7 = arith.constant 0 : index
    %9 = vector.load %arg7[%c0_6, %c0_7] : memref<128x344xbf16, #tpu.memory_space<vmem>>, vector<128x344xbf16>
    %cst_8 = arith.constant dense<0.000000e+00> : vector<10x344xf32>
    %10 = tpu.matmul %3, %9, %cst_8 {dimension_numbers = #tpu.dot_dimension_numbers<[1], [0], [0], [1], [0, 0, 1, 1], [], []>} : vector<10x128xbf16>, vector<128x344xbf16>, vector<10x344xf32> -> vector<10x344xf32>
    %c0_9 = arith.constant 0 : index
    %c0_10 = arith.constant 0 : index
    %11 = vector.load %arg8[%c0_9, %c0_10] : memref<1x344xf32, #tpu.memory_space<vmem>>, vector<1x344xf32>
    %12 = vector.broadcast %11 : vector<1x344xf32> to vector<10x344xf32>
    %13 = arith.addf %10, %12 : vector<10x344xf32>
    %14 = arith.negf %8 : vector<10x344xf32>
    %15 = math.exp %14 : vector<10x344xf32>
    %cst_11 = arith.constant 1.000000e+00 : f32
    %16 = vector.broadcast %cst_11 : f32 to vector<10x344xf32>
    %17 = arith.addf %16, %15 : vector<10x344xf32>
    %18 = arith.divf %16, %17 : vector<10x344xf32>
    %19 = arith.mulf %8, %18 : vector<10x344xf32>
    %20 = arith.mulf %19, %13 : vector<10x344xf32>
    %c0_12 = arith.constant 0 : index
    %c0_13 = arith.constant 0 : index
    %21 = vector.load %arg13[%c0_12, %c0_13] : memref<10x128xf32, #tpu.memory_space<vmem>>, vector<10x128xf32>
    %22 = arith.truncf %20 : vector<10x344xf32> to vector<10x344xbf16>
    %c0_14 = arith.constant 0 : index
    %c0_15 = arith.constant 0 : index
    %23 = vector.load %arg9[%c0_14, %c0_15] : memref<344x128xbf16, #tpu.memory_space<vmem>>, vector<344x128xbf16>
    %cst_16 = arith.constant dense<0.000000e+00> : vector<10x128xf32>
    %24 = tpu.matmul %22, %23, %cst_16 {dimension_numbers = #tpu.dot_dimension_numbers<[1], [0], [0], [1], [0, 0, 1, 1], [], []>} : vector<10x344xbf16>, vector<344x128xbf16>, vector<10x128xf32> -> vector<10x128xf32>
    %25 = arith.addf %21, %24 : vector<10x128xf32>
    %c0_17 = arith.constant 0 : index
    %c0_18 = arith.constant 0 : index
    %26 = vector.load %arg13[%c0_17, %c0_18] : memref<10x128xf32, #tpu.memory_space<vmem>>, vector<10x128xf32>
    tpu.vector_store %arg13[%c0_17, %c0_18], %25 {strides = array<i32>} : memref<10x128xf32, #tpu.memory_space<vmem>>, vector<10x128xf32>,
    %c0_i32_19 = arith.constant 0 : i32
    %27 = arith.cmpi eq, %arg1, %c0_i32_19 : i32
    %28 = arith.extui %27 : i1 to i32
    %c0_i32_20 = arith.constant 0 : i32
    %29 = arith.cmpi ne, %28, %c0_i32_20 : i32
    scf.if %29 {
      %c0_21 = arith.constant 0 : index
      %c0_22 = arith.constant 0 : index
      %30 = vector.load %arg13[%c0_21, %c0_22] : memref<10x128xf32, #tpu.memory_space<vmem>>, vector<10x128xf32>
      %c0_23 = arith.constant 0 : index
      %c0_24 = arith.constant 0 : index
      %31 = vector.load %arg10[%c0_23, %c0_24] : memref<1x128xf32, #tpu.memory_space<vmem>>, vector<1x128xf32>
      %32 = vector.broadcast %31 : vector<1x128xf32> to vector<10x128xf32>
      %33 = arith.addf %30, %32 : vector<10x128xf32>
      %c0_25 = arith.constant 0 : index
      %c0_26 = arith.constant 0 : index
      %34 = vector.load %arg2[%c0_25, %c0_26] : memref<10x128xf32, #tpu.memory_space<vmem>>, vector<10x128xf32>
      %c0_27 = arith.constant 0 : index
      %c0_28 = arith.constant 0 : index
      %35 = vector.load %arg11[%c0_27, %c0_28] : memref<1x128xf32, #tpu.memory_space<vmem>>, vector<1x128xf32>
      %36 = vector.broadcast %35 : vector<1x128xf32> to vector<10x128xf32>
      %37 = arith.mulf %33, %36 : vector<10x128xf32>
      %38 = arith.addf %34, %37 : vector<10x128xf32>
      %c0_29 = arith.constant 0 : index
      %c0_30 = arith.constant 0 : index
      %39 = vector.load %arg12[%c0_29, %c0_30] : memref<10x128xf32, #tpu.memory_space<vmem>>, vector<10x128xf32>
      tpu.vector_store %arg12[%c0_29, %c0_30], %38 {strides = array<i32>} : memref<10x128xf32, #tpu.memory_space<vmem>>, vector<10x128xf32>,
    } else {
    }
    return
  }
  func.func @transform_0(%arg0: i32, %arg1: i32) -> (i32, i32) {
    %c0_i32 = arith.constant 0 : i32
    %c0_i32_0 = arith.constant 0 : i32
    return %arg0, %c0_i32 : i32, i32
  }
  func.func @transform_1(%arg0: i32, %arg1: i32) -> (i32, i32) {
    %c0_i32 = arith.constant 0 : i32
    %c0_i32_0 = arith.constant 0 : i32
    %c0_i32_1 = arith.constant 0 : i32
    return %c0_i32, %c0_i32_0 : i32, i32
  }
  func.func @transform_2(%arg0: i32, %arg1: i32) -> (i32, i32) {
    %c0_i32 = arith.constant 0 : i32
    %c0_i32_0 = arith.constant 0 : i32
    %c0_i32_1 = arith.constant 0 : i32
    return %c0_i32, %c0_i32_0 : i32, i32
  }
  func.func @transform_3(%arg0: i32, %arg1: i32) -> (i32, i32) {
    %c0_i32 = arith.constant 0 : i32
    %c0_i32_0 = arith.constant 0 : i32
    return %c0_i32, %arg1 : i32, i32
  }
  func.func @transform_4(%arg0: i32, %arg1: i32) -> (i32, i32) {
    %c0_i32 = arith.constant 0 : i32
    %c0_i32_0 = arith.constant 0 : i32
    return %c0_i32, %arg1 : i32, i32
  }
  func.func @transform_5(%arg0: i32, %arg1: i32) -> (i32, i32) {
    %c0_i32 = arith.constant 0 : i32
    %c0_i32_0 = arith.constant 0 : i32
    return %c0_i32, %arg1 : i32, i32
  }
  func.func @transform_6(%arg0: i32, %arg1: i32) -> (i32, i32) {
    %c0_i32 = arith.constant 0 : i32
    %c0_i32_0 = arith.constant 0 : i32
    return %c0_i32, %arg1 : i32, i32
  }
  func.func @transform_7(%arg0: i32, %arg1: i32) -> (i32, i32) {
    %c0_i32 = arith.constant 0 : i32
    %c0_i32_0 = arith.constant 0 : i32
    return %arg1, %c0_i32 : i32, i32
  }
  func.func @transform_8(%arg0: i32, %arg1: i32) -> (i32, i32) {
    %c0_i32 = arith.constant 0 : i32
    %c0_i32_0 = arith.constant 0 : i32
    %c0_i32_1 = arith.constant 0 : i32
    return %c0_i32, %c0_i32_0 : i32, i32
  }
  func.func @transform_9(%arg0: i32, %arg1: i32) -> (i32, i32) {
    %c0_i32 = arith.constant 0 : i32
    %c0_i32_0 = arith.constant 0 : i32
    %c0_i32_1 = arith.constant 0 : i32
    return %c0_i32, %c0_i32_0 : i32, i32
  }
  func.func @transform_10(%arg0: i32, %arg1: i32) -> (i32, i32) {
    %c0_i32 = arith.constant 0 : i32
    %c0_i32_0 = arith.constant 0 : i32
    return %arg0, %c0_i32 : i32, i32
  }
}

</mosaic_0001>

<llo_original>
// kernel: tpu_custom_call.1
$region0: #{tpu_custom_call.1}
  #allocation0 [shape = 'u32[]', space=smem, size = 0x4, offset = 0x4, fixed_abs, tag = 'smem constant byte address 0x4 - core index']
  #allocation1 [shape = 'u32[72,128]{1,0:T(1,128)}', space=vmem, size = 0x9000, scoped, tag = 'internal scratch']
  %s0 = inlined_call_operand.hbm [shape: f32[8,128], index: 0, kind: input, shape index: {}]
  %s1 = inlined_call_operand.hbm [shape: f32[8,128], index: 1, kind: output, shape index: {}]
  %s2 = sld [smem:[#allocation0]]
  $region41: #{tpu_custom_call.1} parent=0
    _
  %s4 = ssub.s32 1, %s2
  %s5 = scalar_select 0, %s4, %s2
  $region1: #{tpu_custom_call.1} parent=0
    #allocation2 [shape = 'u8[4096]{0}', space=vmem, size = 0x1000, scoped, tag = 'input window, operand 0, single buffered']
    #allocation3 [shape = 's32[2]{0}', space=sflag, size = 0x8, scoped, tag = 'scoped memory for tpu_custom_call.1']
    #allocation4 [shape = 's32[2]{0}', space=sflag, size = 0x8, scoped, tag = 'scoped memory for tpu_custom_call.1']
    #allocation5 [shape = 'u8[4096]{0}', space=vmem, size = 0x1000, scoped, tag = 'output window, operand 0, single buffered']
    %6 = vsyncpa [#allocation3], 0
    %7 = vsyncpa [#allocation4], 0
    loop: start=0, step=1, limit=4
    $region2: #{tpu_custom_call.1} parent=1 // loop_pre_header
      _
    $region3: #{tpu_custom_call.1} parent=1 // loop_header
      %s9 = sphi 0, %s13
      %p10 = scmp.ge.s32.totalorder %s9, 4
      %s17 = sphi 0, %s17
      %s19 = sphi 0, %s17
      %s20 = sphi 0, %s19
      %s34 = sphi 0, %s20
      %s38 = sphi 0, %s38
      %s40 = sphi 0, %s38
      %s41 = sphi 0, %s40
      %s55 = sphi 0, %s41
    $region4: #{tpu_custom_call.1} parent=1 // loop_header_branch
      %12 = sbr.rel (%p10) target = $region8
    $region5: #{tpu_custom_call.1} parent=1 // loop_body
      %s14 = ssub.s32 %s9, 1
      %s15 = ssub.s32 %s9, 2
      %s16 = sadd.s32 %s9, 1
      %s18 = sadd.s32 %s17, 1
      %p21 = scmp.eq.s32.totalorder %s9, 1
      %p22 = scmp.ne.s32.totalorder %s17, %s19
      %p23 = scmp.eq.s32.totalorder %s9, 0
      %p24 = por %p22, %p23
      %p25 = scmp.ne.s32.totalorder %s17, %s19
      %p26 = scmp.eq.s32.totalorder %s14, 1
      %p27 = por %p25, %p26
      %p28 = scmp.ne.s32.totalorder %s19, %s20
      %p29 = scmp.eq.s32.totalorder %s14, 0
      %p30 = por %p28, %p29
      %p31 = scmp.ne.s32.totalorder %s19, %s20
      %p32 = scmp.eq.s32.totalorder %s15, 1
      %p33 = por %p31, %p32
      %p35 = scmp.ne.s32.totalorder %s20, %s34
      %p36 = scmp.eq.s32.totalorder %s15, 0
      %p37 = por %p35, %p36
      %s39 = sadd.s32 %s38, 1
      %p42 = scmp.eq.s32.totalorder %s9, 1
      %p43 = scmp.ne.s32.totalorder %s38, %s40
      %p44 = scmp.eq.s32.totalorder %s9, 0
      %p45 = por %p43, %p44
      %p46 = scmp.ne.s32.totalorder %s38, %s40
      %p47 = scmp.eq.s32.totalorder %s14, 1
      %p48 = por %p46, %p47
      %p49 = scmp.ne.s32.totalorder %s40, %s41
      %p50 = scmp.eq.s32.totalorder %s14, 0
      %p51 = por %p49, %p50
      %p52 = scmp.ne.s32.totalorder %s40, %s41
      %p53 = scmp.eq.s32.totalorder %s15, 1
      %p54 = por %p52, %p53
      %p56 = scmp.ne.s32.totalorder %s41, %s55
      %p57 = scmp.eq.s32.totalorder %s15, 0
      %p58 = por %p56, %p57
      %p59 = scmp.le.s32.totalorder 1, %s9
      %p60 = scmp.lt.s32.totalorder %s9, 3
      %p61 = pnand %p59, %p60
      %p62 = pneg %p61
      // Predicated region
      $region9: #{tpu_custom_call.1} parent=5 // pred_check
        _
      $region10: #{tpu_custom_call.1} parent=5 // pred_check_branch
        %64 = sbr.rel (%p61) target = $region12
      $region11: #{tpu_custom_call.1} parent=5 // pred_region
        %s65 = ssub.s32 %s9, 1
        // Predicated region
        $region13: #{tpu_custom_call.1} parent=11 // pred_check
          %p66 = pneg %p30
        $region14: #{tpu_custom_call.1} parent=11 // pred_check_branch
          %68 = sbr.rel (%p66) target = $region16
        $region15: #{tpu_custom_call.1} parent=11 // pred_region
          %70 = vsyncadd [#allocation3], 0
          %s72 = sshll.u32 %s0, 4
          %s73 = int_to_ptr.hbm [resolvable:$true] %s72
          %s74 = sshll.u32 [#allocation2], 4
          %s75 = int_to_ptr.vmem [resolvable:$true] %s74
          %77 = dma.hbm_to_vmem [thread:$0]  %s73, 128, %s75, [#allocation3]
        $region16: #{tpu_custom_call.1} parent=11 // pred_fallthru
          _
      $region12: #{tpu_custom_call.1} parent=5 // pred_fallthru
        _
      %p78 = scmp.lt.s32.totalorder %s9, 2
      // Predicated region
      $region17: #{tpu_custom_call.1} parent=5 // pred_check
        %p79 = pneg %p78
      $region18: #{tpu_custom_call.1} parent=5 // pred_check_branch
        %81 = sbr.rel (%p79) target = $region20
      $region19: #{tpu_custom_call.1} parent=5 // pred_region
        _
      $region20: #{tpu_custom_call.1} parent=5 // pred_fallthru
        _
      %p82 = scmp.le.s32.totalorder 1, %s9
      %p83 = scmp.lt.s32.totalorder %s9, 3
      %p84 = pnand %p82, %p83
      %p85 = pneg %p84
      // Predicated region
      $region21: #{tpu_custom_call.1} parent=5 // pred_check
        _
      $region22: #{tpu_custom_call.1} parent=5 // pred_check_branch
        %87 = sbr.rel (%p84) target = $region24
      $region23: #{tpu_custom_call.1} parent=5 // pred_region
        %s88 = ssub.s32 %s9, 1
        // Predicated region
        $region25: #{tpu_custom_call.1} parent=23 // pred_check
          %p89 = pneg %p30
        $region26: #{tpu_custom_call.1} parent=23 // pred_check_branch
          %91 = sbr.rel (%p89) target = $region28
        $region27: #{tpu_custom_call.1} parent=23 // pred_region
          %93 = dma.done [#allocation3], 128
        $region28: #{tpu_custom_call.1} parent=23 // pred_fallthru
          _
        %p94 = pneg %p30
        %p95 = pneg %p27
        %p96 = pneg %p51
        %p97 = pneg %p48
        %v98 = vld [vmem:[#allocation2] sm:$0xff]
        %v99 = vadd.f32 %v98, 1.0
        %100 = vst [vmem:[#allocation5] sm:$0xff] %v99
        // Predicated region
        $region29: #{tpu_custom_call.1} parent=23 // pred_check
          %p101 = pneg %p48
        $region30: #{tpu_custom_call.1} parent=23 // pred_check_branch
          %103 = sbr.rel (%p101) target = $region32
        $region31: #{tpu_custom_call.1} parent=23 // pred_region
          %105 = vsyncadd [#allocation4], 0
          %s107 = sshll.u32 [#allocation5], 4
          %s108 = int_to_ptr.vmem [resolvable:$true] %s107
          %s109 = sshll.u32 %s1, 4
          %s110 = int_to_ptr.hbm [resolvable:$true] %s109
          %112 = dma.vmem_to_hbm [thread:$0]  %s108, 128, %s110, [#allocation4]
        $region32: #{tpu_custom_call.1} parent=23 // pred_fallthru
          _
        // Predicated region
        $region33: #{tpu_custom_call.1} parent=23 // pred_check
          %p113 = pneg %p48
        $region34: #{tpu_custom_call.1} parent=23 // pred_check_branch
          %115 = sbr.rel (%p113) target = $region36
        $region35: #{tpu_custom_call.1} parent=23 // pred_region
          %117 = dma.done [#allocation4], 128
        $region36: #{tpu_custom_call.1} parent=23 // pred_fallthru
          _
      $region24: #{tpu_custom_call.1} parent=5 // pred_fallthru
        _
      %p118 = scmp.le.s32.totalorder 2, %s9
      // Predicated region
      $region37: #{tpu_custom_call.1} parent=5 // pred_check
        %p119 = pneg %p118
      $region38: #{tpu_custom_call.1} parent=5 // pred_check_branch
        %121 = sbr.rel (%p119) target = $region40
      $region39: #{tpu_custom_call.1} parent=5 // pred_region
        %s122 = ssub.s32 %s9, 2
      $region40: #{tpu_custom_call.1} parent=5 // pred_fallthru
        _
    $region6: #{tpu_custom_call.1} parent=1 // loop_footer
      %s13 = sadd.s32 1, %s9
    $region7: #{tpu_custom_call.1} parent=1 // loop_footer_branch
      %8 = sbr.rel target = $region3
    $region8: #{tpu_custom_call.1} parent=1 // loop_exit
      _
    %123 = vsyncpa [#allocation3], 1
    %s124 = scalar_lea.sflag [#allocation3], 1
    %125 = vsyncpa %s124, 1
    %126 = vsyncpa [#allocation4], 1
    %s127 = scalar_lea.sflag [#allocation4], 1
    %128 = vsyncpa %s127, 1

// kernel: dinov2_forward.10
$region0: #{dinov2_forward.10}
  #allocation0 [shape = 'u32[]', space=smem, size = 0x4, offset = 0x4, fixed_abs, tag = 'smem constant byte address 0x4 - core index']
  #allocation1 [shape = 'u32[72,128]{1,0:T(1,128)}', space=vmem, size = 0x9000, scoped, tag = 'internal scratch']
  %s0 = inlined_call_operand.vmem [shape: bf16[2,4,640], index: 0, kind: input, shape index: {}]
  %s1 = inlined_call_operand.vmem [shape: bf16[640,128], index: 1, kind: input, shape index: {}]
  %s2 = inlined_call_operand.vmem [shape: f32[1,128], index: 2, kind: input, shape index: {}]
  %s3 = inlined_call_operand.vmem [shape: f32[4,128], index: 3, kind: input, shape index: {}]
  %s4 = inlined_call_operand.vmem [shape: f32[2,4,128], index: 4, kind: output, shape index: {}]
  %s5 = sld [smem:[#allocation0]]
  $region49: #{dinov2_forward.10} parent=0
    _
  %s7 = ssub.s32 1, %s5
  %s8 = scalar_select 0, %s7, %s5
  loop: start=0, step=1, limit=4
  $region2: #{dinov2_forward.10} parent=0 // loop_pre_header
    _
  $region3: #{dinov2_forward.10} parent=0 // loop_header
    %s10 = sphi 0, %s14
    %p11 = scmp.ge.s32.totalorder %s10, 4
    %s17 = sphi 0, %s29
    %s18 = sphi 0, %s25
    %s19 = sphi 0, %s17
    %s20 = sphi 0, %s18
    %s21 = sphi 0, %s19
    %s22 = sphi 0, %s20
    %s34 = sphi 0, %s36
    %s37 = sphi 0, %s34
    %s38 = sphi 0, %s37
    %s54 = sphi 0, %s38
    %s58 = sphi 0, %s58
    %s60 = sphi 0, %s58
    %s61 = sphi 0, %s60
    %s75 = sphi 0, %s61
    %s79 = sphi 0, %s79
    %s81 = sphi 0, %s79
    %s82 = sphi 0, %s81
    %s96 = sphi 0, %s82
    %s102 = sphi 0, %s104
    %s105 = sphi 0, %s102
    %s106 = sphi 0, %s105
    %s122 = sphi 0, %s106
    %s130 = sphi 0, %s132
    %s133 = sphi 0, %s130
    %s134 = sphi 0, %s133
    %s150 = sphi 0, %s134
  $region4: #{dinov2_forward.10} parent=0 // loop_header_branch
    %13 = sbr.rel (%p11) target = $region8
  $region5: #{dinov2_forward.10} parent=0 // loop_body
    %s15 = ssub.s32 %s10, 1
    %s16 = ssub.s32 %s10, 2
    %s23 = sadd.s32 1, %s18
    %p24 = scmp.ge.s32.totalorder %s23, 1
    %s25 = scalar_select %p24, 0, %s23
    %s26 = sadd.s32 1, %s17
    %s27 = scalar_select %p24, %s26, %s17
    %p28 = scmp.ge.s32.totalorder %s27, 2
    %s29 = scalar_select %p28, 0, %s27
    %s30 = ssub.s32 %s17, %s29
    %s31 = ssub.s32 %s18, %s25
    %s32 = sor.u32 %s30, %s31
    %p33 = scmp.eq.s32.totalorder %s32, 0
    %s35 = sadd.s32 %s34, 1
    %s36 = scalar_select %p33, %s34, %s35
    %p39 = pneg %p33
    %p40 = scmp.eq.s32.totalorder %s10, 1
    %p41 = por %p39, %p40
    %p42 = scmp.ne.s32.totalorder %s34, %s37
    %p43 = scmp.eq.s32.totalorder %s10, 0
    %p44 = por %p42, %p43
    %p45 = scmp.ne.s32.totalorder %s34, %s37
    %p46 = scmp.eq.s32.totalorder %s15, 1
    %p47 = por %p45, %p46
    %p48 = scmp.ne.s32.totalorder %s37, %s38
    %p49 = scmp.eq.s32.totalorder %s15, 0
    %p50 = por %p48, %p49
    %p51 = scmp.ne.s32.totalorder %s37, %s38
    %p52 = scmp.eq.s32.totalorder %s16, 1
    %p53 = por %p51, %p52
    %p55 = scmp.ne.s32.totalorder %s38, %s54
    %p56 = scmp.eq.s32.totalorder %s16, 0
    %p57 = por %p55, %p56
    %s59 = sadd.s32 %s58, 1
    %p62 = scmp.eq.s32.totalorder %s10, 1
    %p63 = scmp.ne.s32.totalorder %s58, %s60
    %p64 = scmp.eq.s32.totalorder %s10, 0
    %p65 = por %p63, %p64
    %p66 = scmp.ne.s32.totalorder %s58, %s60
    %p67 = scmp.eq.s32.totalorder %s15, 1
    %p68 = por %p66, %p67
    %p69 = scmp.ne.s32.totalorder %s60, %s61
    %p70 = scmp.eq.s32.totalorder %s15, 0
    %p71 = por %p69, %p70
    %p72 = scmp.ne.s32.totalorder %s60, %s61
    %p73 = scmp.eq.s32.totalorder %s16, 1
    %p74 = por %p72, %p73
    %p76 = scmp.ne.s32.totalorder %s61, %s75
    %p77 = scmp.eq.s32.totalorder %s16, 0
    %p78 = por %p76, %p77
    %s80 = sadd.s32 %s79, 1
    %p83 = scmp.eq.s32.totalorder %s10, 1
    %p84 = scmp.ne.s32.totalorder %s79, %s81
    %p85 = scmp.eq.s32.totalorder %s10, 0
    %p86 = por %p84, %p85
    %p87 = scmp.ne.s32.totalorder %s79, %s81
    %p88 = scmp.eq.s32.totalorder %s15, 1
    %p89 = por %p87, %p88
    %p90 = scmp.ne.s32.totalorder %s81, %s82
    %p91 = scmp.eq.s32.totalorder %s15, 0
    %p92 = por %p90, %p91
    %p93 = scmp.ne.s32.totalorder %s81, %s82
    %p94 = scmp.eq.s32.totalorder %s16, 1
    %p95 = por %p93, %p94
    %p97 = scmp.ne.s32.totalorder %s82, %s96
    %p98 = scmp.eq.s32.totalorder %s16, 0
    %p99 = por %p97, %p98
    %s100 = ssub.s32 %s18, %s25
    %p101 = scmp.eq.s32.totalorder %s100, 0
    %s103 = sadd.s32 %s102, 1
    %s104 = scalar_select %p101, %s102, %s103
    %p107 = pneg %p101
    %p108 = scmp.eq.s32.totalorder %s10, 1
    %p109 = por %p107, %p108
    %p110 = scmp.ne.s32.totalorder %s102, %s105
    %p111 = scmp.eq.s32.totalorder %s10, 0
    %p112 = por %p110, %p111
    %p113 = scmp.ne.s32.totalorder %s102, %s105
    %p114 = scmp.eq.s32.totalorder %s15, 1
    %p115 = por %p113, %p114
    %p116 = scmp.ne.s32.totalorder %s105, %s106
    %p117 = scmp.eq.s32.totalorder %s15, 0
    %p118 = por %p116, %p117
    %p119 = scmp.ne.s32.totalorder %s105, %s106
    %p120 = scmp.eq.s32.totalorder %s16, 1
    %p121 = por %p119, %p120
    %p123 = scmp.ne.s32.totalorder %s106, %s122
    %p124 = scmp.eq.s32.totalorder %s16, 0
    %p125 = por %p123, %p124
    %s126 = ssub.s32 %s17, %s29
    %s127 = ssub.s32 %s18, %s25
    %s128 = sor.u32 %s126, %s127
    %p129 = scmp.eq.s32.totalorder %s128, 0
    %s131 = sadd.s32 %s130, 1
    %s132 = scalar_select %p129, %s130, %s131
    %p135 = pneg %p129
    %p136 = scmp.eq.s32.totalorder %s10, 1
    %p137 = por %p135, %p136
    %p138 = scmp.ne.s32.totalorder %s130, %s133
    %p139 = scmp.eq.s32.totalorder %s10, 0
    %p140 = por %p138, %p139
    %p141 = scmp.ne.s32.totalorder %s130, %s133
    %p142 = scmp.eq.s32.totalorder %s15, 1
    %p143 = por %p141, %p142
    %p144 = scmp.ne.s32.totalorder %s133, %s134
    %p145 = scmp.eq.s32.totalorder %s15, 0
    %p146 = por %p144, %p145
    %p147 = scmp.ne.s32.totalorder %s133, %s134
    %p148 = scmp.eq.s32.totalorder %s16, 1
    %p149 = por %p147, %p148
    %p151 = scmp.ne.s32.totalorder %s134, %s150
    %p152 = scmp.eq.s32.totalorder %s16, 0
    %p153 = por %p151, %p152
    %p154 = scmp.le.s32.totalorder 1, %s10
    %p155 = scmp.lt.s32.totalorder %s10, 3
    %p156 = pnand %p154, %p155
    %p157 = pneg %p156
    // Predicated region
    $region9: #{dinov2_forward.10} parent=5 // pred_check
      _
    $region10: #{dinov2_forward.10} parent=5 // pred_check_branch
      %159 = sbr.rel (%p156) target = $region12
    $region11: #{dinov2_forward.10} parent=5 // pred_region
      %s160 = ssub.s32 %s10, 1
      // Predicated region
      $region13: #{dinov2_forward.10} parent=11 // pred_check
        %p161 = pneg %p71
      $region14: #{dinov2_forward.10} parent=11 // pred_check_branch
        %163 = sbr.rel (%p161) target = $region16
      $region15: #{dinov2_forward.10} parent=11 // pred_region
        _
      $region16: #{dinov2_forward.10} parent=11 // pred_fallthru
        _
      // Predicated region
      $region17: #{dinov2_forward.10} parent=11 // pred_check
        %p164 = pneg %p92
      $region18: #{dinov2_forward.10} parent=11 // pred_check_branch
        %166 = sbr.rel (%p164) target = $region20
      $region19: #{dinov2_forward.10} parent=11 // pred_region
        _
      $region20: #{dinov2_forward.10} parent=11 // pred_fallthru
        _
      // Predicated region
      $region21: #{dinov2_forward.10} parent=11 // pred_check
        %p167 = pneg %p118
      $region22: #{dinov2_forward.10} parent=11 // pred_check_branch
        %169 = sbr.rel (%p167) target = $region24
      $region23: #{dinov2_forward.10} parent=11 // pred_region
        %p170 = scmp.lt.s32.totalorder %s20, 0
        %s171 = scalar_select %p170, %s20, 0
        %s172 = smul.addr %s171, 4
        %s173 = scalar_lea.vmem %s3, %s172
      $region24: #{dinov2_forward.10} parent=11 // pred_fallthru
        _
    $region12: #{dinov2_forward.10} parent=5 // pred_fallthru
      _
    %p174 = scmp.lt.s32.totalorder %s10, 2
    // Predicated region
    $region25: #{dinov2_forward.10} parent=5 // pred_check
      %p175 = pneg %p174
    $region26: #{dinov2_forward.10} parent=5 // pred_check_branch
      %177 = sbr.rel (%p175) target = $region28
    $region27: #{dinov2_forward.10} parent=5 // pred_region
      // Predicated region
      $region29: #{dinov2_forward.10} parent=27 // pred_check
        %p178 = pneg %p44
      $region30: #{dinov2_forward.10} parent=27 // pred_check_branch
        %180 = sbr.rel (%p178) target = $region32
      $region31: #{dinov2_forward.10} parent=27 // pred_region
        %p181 = scmp.lt.s32.totalorder %s17, 1
        %s182 = scalar_select %p181, %s17, 1
        %p183 = scmp.lt.s32.totalorder %s18, 0
        %s184 = scalar_select %p183, %s18, 0
        %s185 = smul.addr %s184, 5
        %s186 = smul.addr %s182, 5
        %s187 = sadd.s32 %s185, %s186
        %s188 = smul.addr %s187, 2
        %s189 = scalar_lea.vmem %s0, %s188
      $region32: #{dinov2_forward.10} parent=27 // pred_fallthru
        _
    $region28: #{dinov2_forward.10} parent=5 // pred_fallthru
      _
    %p190 = scmp.le.s32.totalorder 1, %s10
    %p191 = scmp.lt.s32.totalorder %s10, 3
    %p192 = pnand %p190, %p191
    %p193 = pneg %p192
    // Predicated region
    $region33: #{dinov2_forward.10} parent=5 // pred_check
      _
    $region34: #{dinov2_forward.10} parent=5 // pred_check_branch
      %195 = sbr.rel (%p192) target = $region36
    $region35: #{dinov2_forward.10} parent=5 // pred_region
      %s196 = ssub.s32 %s10, 1
      %p197 = scmp.lt.s32.totalorder %s19, 1
      %s198 = scalar_select %p197, %s19, 1
      %p199 = scmp.lt.s32.totalorder %s20, 0
      %s200 = scalar_select %p199, %s20, 0
      %s201 = smul.addr %s200, 5
      %s202 = smul.addr %s198, 5
      %s203 = sadd.s32 %s201, %s202
      %s204 = smul.addr %s203, 2
      %s205 = scalar_lea.vmem %s0, %s204
      %p206 = pneg %p50
      %p207 = pneg %p47
      %p208 = pneg %p71
      %p209 = pneg %p68
      %p210 = pneg %p92
      %p211 = pneg %p89
      %p212 = scmp.lt.s32.totalorder %s20, 0
      %s213 = scalar_select %p212, %s20, 0
      %s214 = smul.addr %s213, 4
      %s215 = scalar_lea.vmem %s3, %s214
      %p216 = pneg %p118
      %p217 = pneg %p115
      %p218 = pneg %p146
      %p219 = pneg %p143
      %p220 = scmp.lt.s32.totalorder %s19, 1
      %s221 = scalar_select %p220, %s19, 1
      %p222 = scmp.lt.s32.totalorder %s20, 0
      %s223 = scalar_select %p222, %s20, 0
      %s224 = sadd.s32 %s223, %s221
      %s225 = smul.addr %s224, 4
      %s226 = scalar_lea.vmem %s4, %s225
      %p227 = scmp.lt.s32.totalorder %s19, 1
      %s228 = scalar_select %p227, %s19, 1
      %p229 = scmp.lt.s32.totalorder %s20, 0
      %s230 = scalar_select %p229, %s20, 0
      %s231 = smul.addr %s230, 5
      %s232 = smul.addr %s228, 5
      %s233 = sadd.s32 %s231, %s232
      %s234 = smul.addr %s233, 2
      %s235 = scalar_lea.vmem %s0, %s234
      %p236 = scmp.lt.s32.totalorder %s20, 0
      %s237 = scalar_select %p236, %s20, 0
      %s238 = smul.addr %s237, 4
      %s239 = scalar_lea.vmem %s3, %s238
      %p240 = scmp.lt.s32.totalorder %s19, 1
      %s241 = scalar_select %p240, %s19, 1
      %p242 = scmp.lt.s32.totalorder %s20, 0
      %s243 = scalar_select %p242, %s20, 0
      %s244 = sadd.s32 %s243, %s241
      %s245 = smul.addr %s244, 4
      %s246 = scalar_lea.vmem %s4, %s245
      %v247 = vld [vmem:[%s235] sm:$0xff]
      %v248 = vld [vmem:[%s235 + $0x8] sm:$0x3]
      %v249 = vld [vmem:[%s1] sm:$0xf]
      %v250 = vld [vmem:[%s1 + $0x4] sm:$0xf]
      %v251 = vld [vmem:[%s1 + $0x8] sm:$0xf]
      %v252 = vld [vmem:[%s1 + $0xc] sm:$0xf]
      %v253 = vld [vmem:[%s1 + $0x10] sm:$0xf]
      %v254 = vld [vmem:[%s1 + $0x14] sm:$0xf]
      %v255 = vld [vmem:[%s1 + $0x18] sm:$0xf]
      %v256 = vld [vmem:[%s1 + $0x1c] sm:$0xf]
      %v257 = vld [vmem:[%s1 + $0x20] sm:$0xf]
      %v258 = vld [vmem:[%s1 + $0x24] sm:$0xf]
      %v259 = vld [vmem:[%s1 + $0x28] sm:$0xf]
      %v260 = vld [vmem:[%s1 + $0x2c] sm:$0xf]
      %v261 = vld [vmem:[%s1 + $0x30] sm:$0xf]
      %v262 = vld [vmem:[%s1 + $0x34] sm:$0xf]
      %v263 = vld [vmem:[%s1 + $0x38] sm:$0xf]
      %v264 = vld [vmem:[%s1 + $0x3c] sm:$0xf]
      %v265 = vld [vmem:[%s1 + $0x40] sm:$0xf]
      %v266 = vld [vmem:[%s1 + $0x44] sm:$0xf]
      %v267 = vld [vmem:[%s1 + $0x48] sm:$0xf]
      %v268 = vld [vmem:[%s1 + $0x4c] sm:$0xf]
      %v269 = vld [vmem:[%s1 + $0x50] sm:$0xf]
      %v270 = vld [vmem:[%s1 + $0x54] sm:$0xf]
      %v271 = vld [vmem:[%s1 + $0x58] sm:$0xf]
      %v272 = vld [vmem:[%s1 + $0x5c] sm:$0xf]
      %v273 = vld [vmem:[%s1 + $0x60] sm:$0xf]
      %v274 = vld [vmem:[%s1 + $0x64] sm:$0xf]
      %v275 = vld [vmem:[%s1 + $0x68] sm:$0xf]
      %v276 = vld [vmem:[%s1 + $0x6c] sm:$0xf]
      %v277 = vld [vmem:[%s1 + $0x70] sm:$0xf]
      %v278 = vld [vmem:[%s1 + $0x74] sm:$0xf]
      %v279 = vld [vmem:[%s1 + $0x78] sm:$0xf]
      %v280 = vld [vmem:[%s1 + $0x7c] sm:$0xf]
      %v281 = vld [vmem:[%s1 + $0x80] sm:$0xf]
      %v282 = vld [vmem:[%s1 + $0x84] sm:$0xf]
      %v283 = vld [vmem:[%s1 + $0x88] sm:$0xf]
      %v284 = vld [vmem:[%s1 + $0x8c] sm:$0xf]
      %v285 = vld [vmem:[%s1 + $0x90] sm:$0xf]
      %v286 = vld [vmem:[%s1 + $0x94] sm:$0xf]
      %v287 = vld [vmem:[%s1 + $0x98] sm:$0xf]
      %v288 = vld [vmem:[%s1 + $0x9c] sm:$0xf]
      %v289 = vld [vmem:[%s1 + $0xa0] sm:$0xf]
      %v290 = vld [vmem:[%s1 + $0xa4] sm:$0xf]
      %v291 = vld [vmem:[%s1 + $0xa8] sm:$0xf]
      %v292 = vld [vmem:[%s1 + $0xac] sm:$0xf]
      %v293 = vld [vmem:[%s1 + $0xb0] sm:$0xf]
      %v294 = vld [vmem:[%s1 + $0xb4] sm:$0xf]
      %v295 = vld [vmem:[%s1 + $0xb8] sm:$0xf]
      %v296 = vld [vmem:[%s1 + $0xbc] sm:$0xf]
      %v297 = vld [vmem:[%s1 + $0xc0] sm:$0xf]
      %v298 = vld [vmem:[%s1 + $0xc4] sm:$0xf]
      %v299 = vld [vmem:[%s1 + $0xc8] sm:$0xf]
      %v300 = vld [vmem:[%s1 + $0xcc] sm:$0xf]
      %v301 = vld [vmem:[%s1 + $0xd0] sm:$0xf]
      %v302 = vld [vmem:[%s1 + $0xd4] sm:$0xf]
      %v303 = vld [vmem:[%s1 + $0xd8] sm:$0xf]
      %v304 = vld [vmem:[%s1 + $0xdc] sm:$0xf]
      %v305 = vld [vmem:[%s1 + $0xe0] sm:$0xf]
      %v306 = vld [vmem:[%s1 + $0xe4] sm:$0xf]
      %v307 = vld [vmem:[%s1 + $0xe8] sm:$0xf]
      %v308 = vld [vmem:[%s1 + $0xec] sm:$0xf]
      %v309 = vld [vmem:[%s1 + $0xf0] sm:$0xf]
      %v310 = vld [vmem:[%s1 + $0xf4] sm:$0xf]
      %v311 = vld [vmem:[%s1 + $0xf8] sm:$0xf]
      %v312 = vld [vmem:[%s1 + $0xfc] sm:$0xf]
      %v313 = vld [vmem:[%s1 + $0x100] sm:$0xf]
      %v314 = vld [vmem:[%s1 + $0x104] sm:$0xf]
      %v315 = vld [vmem:[%s1 + $0x108] sm:$0xf]
      %v316 = vld [vmem:[%s1 + $0x10c] sm:$0xf]
      %v317 = vld [vmem:[%s1 + $0x110] sm:$0xf]
      %v318 = vld [vmem:[%s1 + $0x114] sm:$0xf]
      %v319 = vld [vmem:[%s1 + $0x118] sm:$0xf]
      %v320 = vld [vmem:[%s1 + $0x11c] sm:$0xf]
      %v321 = vld [vmem:[%s1 + $0x120] sm:$0xf]
      %v322 = vld [vmem:[%s1 + $0x124] sm:$0xf]
      %v323 = vld [vmem:[%s1 + $0x128] sm:$0xf]
      %v324 = vld [vmem:[%s1 + $0x12c] sm:$0xf]
      %v325 = vld [vmem:[%s1 + $0x130] sm:$0xf]
      %v326 = vld [vmem:[%s1 + $0x134] sm:$0xf]
      %v327 = vld [vmem:[%s1 + $0x138] sm:$0xf]
      %v328 = vld [vmem:[%s1 + $0x13c] sm:$0xf]
      %v329 = vld [vmem:[%s2] sm:$0x1]
      %v331 = vperm.slane %v329, 0
      %334 = vst [vmem:[#allocation1] ss:$4 sm:$0xff] %v247
      %s336 = scalar_lea.vmem [#allocation1], 32
      %337 = vst [vmem:[%s336] ss:$4 sm:$0xff] %v248
      %v338 = vld.sshfl [vmem:[#allocation1] sm:$0xff pattern:$0x73625140]
      %v339 = vld.sshfl [vmem:[#allocation1 + $0x8] sm:$0xff pattern:$0x73625140]
      %v340 = vld.sshfl [vmem:[#allocation1 + $0x10] sm:$0xff pattern:$0x73625140]
      %v341 = vld.sshfl [vmem:[#allocation1 + $0x18] sm:$0xff pattern:$0x73625140]
      %v342 = vld.sshfl [vmem:[#allocation1 + $0x20] sm:$0xff pattern:$0x73625140]
      %v428 = vunpack.c.l.b16 %v249
      %v429 = vunpack.c.l.b16 %v250
      %v430 = vunpack.c.l.b16 %v251
      %v431 = vunpack.c.l.b16 %v252
      %v432 = vunpack.c.l.b16 %v253
      %v433 = vunpack.c.l.b16 %v254
      %v434 = vunpack.c.l.b16 %v255
      %v435 = vunpack.c.l.b16 %v256
      %v436 = vunpack.c.l.b16 %v257
      %v437 = vunpack.c.l.b16 %v258
      %v438 = vunpack.c.l.b16 %v259
      %v439 = vunpack.c.l.b16 %v260
      %v440 = vunpack.c.l.b16 %v261
      %v441 = vunpack.c.l.b16 %v262
      %v442 = vunpack.c.l.b16 %v263
      %v443 = vunpack.c.l.b16 %v264
      %v444 = vunpack.c.l.b16 %v265
      %v445 = vunpack.c.l.b16 %v266
      %v446 = vunpack.c.l.b16 %v267
      %v447 = vunpack.c.l.b16 %v268
      %v448 = vunpack.c.l.b16 %v269
      %v449 = vunpack.c.l.b16 %v270
      %v450 = vunpack.c.l.b16 %v271
      %v451 = vunpack.c.l.b16 %v272
      %v452 = vunpack.c.l.b16 %v273
      %v453 = vunpack.c.l.b16 %v274
      %v454 = vunpack.c.l.b16 %v275
      %v455 = vunpack.c.l.b16 %v276
      %v456 = vunpack.c.l.b16 %v277
      %v457 = vunpack.c.l.b16 %v278
      %v458 = vunpack.c.l.b16 %v279
      %v459 = vunpack.c.l.b16 %v280
      %v460 = vunpack.c.l.b16 %v281
      %v461 = vunpack.c.l.b16 %v282
      %v462 = vunpack.c.l.b16 %v283
      %v463 = vunpack.c.l.b16 %v284
      %v464 = vunpack.c.l.b16 %v285
      %v465 = vunpack.c.l.b16 %v286
      %v466 = vunpack.c.l.b16 %v287
      %v467 = vunpack.c.l.b16 %v288
      %v468 = vunpack.c.l.b16 %v289
      %v469 = vunpack.c.l.b16 %v290
      %v470 = vunpack.c.l.b16 %v291
      %v471 = vunpack.c.l.b16 %v292
      %v472 = vunpack.c.l.b16 %v293
      %v473 = vunpack.c.l.b16 %v294
      %v474 = vunpack.c.l.b16 %v295
      %v475 = vunpack.c.l.b16 %v296
      %v476 = vunpack.c.l.b16 %v297
      %v477 = vunpack.c.l.b16 %v298
      %v478 = vunpack.c.l.b16 %v299
      %v479 = vunpack.c.l.b16 %v300
      %v480 = vunpack.c.l.b16 %v301
      %v481 = vunpack.c.l.b16 %v302
      %v482 = vunpack.c.l.b16 %v303
      %v483 = vunpack.c.l.b16 %v304
      %v484 = vunpack.c.l.b16 %v305
      %v485 = vunpack.c.l.b16 %v306
      %v486 = vunpack.c.l.b16 %v307
      %v487 = vunpack.c.l.b16 %v308
      %v488 = vunpack.c.l.b16 %v309
      %v489 = vunpack.c.l.b16 %v310
      %v490 = vunpack.c.l.b16 %v311
      %v491 = vunpack.c.l.b16 %v312
      %v492 = vunpack.c.l.b16 %v313
      %v493 = vunpack.c.l.b16 %v314
      %v494 = vunpack.c.l.b16 %v315
      %v495 = vunpack.c.l.b16 %v316
      %v496 = vunpack.c.l.b16 %v317
      %v497 = vunpack.c.l.b16 %v318
      %v498 = vunpack.c.l.b16 %v319
      %v499 = vunpack.c.l.b16 %v320
      %v500 = vunpack.c.l.b16 %v321
      %v501 = vunpack.c.l.b16 %v322
      %v502 = vunpack.c.l.b16 %v323
      %v503 = vunpack.c.l.b16 %v324
      %v504 = vunpack.c.l.b16 %v325
      %v505 = vunpack.c.l.b16 %v326
      %v506 = vunpack.c.l.b16 %v327
      %v507 = vunpack.c.l.b16 %v328
      %v508 = vpack.c.b16 %v429, %v428
      %v509 = vpack.c.b16 %v431, %v430
      %v510 = vpack.c.b16 %v433, %v432
      %v511 = vpack.c.b16 %v435, %v434
      %v512 = vpack.c.b16 %v437, %v436
      %v513 = vpack.c.b16 %v439, %v438
      %v514 = vpack.c.b16 %v441, %v440
      %v515 = vpack.c.b16 %v443, %v442
      %v516 = vpack.c.b16 %v445, %v444
      %v517 = vpack.c.b16 %v447, %v446
      %v518 = vpack.c.b16 %v449, %v448
      %v519 = vpack.c.b16 %v451, %v450
      %v520 = vpack.c.b16 %v453, %v452
      %v521 = vpack.c.b16 %v455, %v454
      %v522 = vpack.c.b16 %v457, %v456
      %v523 = vpack.c.b16 %v459, %v458
      %v524 = vpack.c.b16 %v461, %v460
      %v525 = vpack.c.b16 %v463, %v462
      %v526 = vpack.c.b16 %v465, %v464
      %v527 = vpack.c.b16 %v467, %v466
      %v528 = vpack.c.b16 %v469, %v468
      %v529 = vpack.c.b16 %v471, %v470
      %v530 = vpack.c.b16 %v473, %v472
      %v531 = vpack.c.b16 %v475, %v474
      %v532 = vpack.c.b16 %v477, %v476
      %v533 = vpack.c.b16 %v479, %v478
      %v534 = vpack.c.b16 %v481, %v480
      %v535 = vpack.c.b16 %v483, %v482
      %v536 = vpack.c.b16 %v485, %v484
      %v537 = vpack.c.b16 %v487, %v486
      %v538 = vpack.c.b16 %v489, %v488
      %v539 = vpack.c.b16 %v491, %v490
      %v540 = vpack.c.b16 %v493, %v492
      %v541 = vpack.c.b16 %v495, %v494
      %v542 = vpack.c.b16 %v497, %v496
      %v543 = vpack.c.b16 %v499, %v498
      %v544 = vpack.c.b16 %v501, %v500
      %v545 = vpack.c.b16 %v503, %v502
      %v546 = vpack.c.b16 %v505, %v504
      %v547 = vpack.c.b16 %v507, %v506
      %588 = vmatpush.bf16.msra.mxu0 %v515
      %589 = vmatpush.bf16.msra.mxu0 %v514
      %590 = vmatpush.bf16.msra.mxu0 %v513
      %591 = vmatpush.bf16.msra.mxu0 %v512
      %592 = vmatpush.bf16.msra.mxu0 %v511
      %593 = vmatpush.bf16.msra.mxu0 %v510
      %594 = vmatpush.bf16.msra.mxu0 %v509
      %595 = vmatpush.bf16.msra.mxu0 %v508
      %596 = vmatmul.bf16.gmra.mxu0 %v338
      %v597 = vpop.f32.mrf.mxu0
      %v598 = vadd.f32 %v331, %v597
      %v599 = vpop.f32.mrf.mxu0
      %600 = vdwg.mxu0
      %601 = vmatpush.bf16.msra.mxu0 %v523
      %602 = vmatpush.bf16.msra.mxu0 %v522
      %603 = vmatpush.bf16.msra.mxu0 %v521
      %604 = vmatpush.bf16.msra.mxu0 %v520
      %605 = vmatpush.bf16.msra.mxu0 %v519
      %606 = vmatpush.bf16.msra.mxu0 %v518
      %607 = vmatpush.bf16.msra.mxu0 %v517
      %608 = vmatpush.bf16.msra.mxu0 %v516
      %609 = vmatmul.bf16.gmra.mxu0 %v339
      %v610 = vpop.f32.mrf.mxu0
      %v611 = vadd.f32 %v598, %v610
      %v612 = vpop.f32.mrf.mxu0
      %613 = vdwg.mxu0
      %614 = vmatpush.bf16.msra.mxu0 %v531
      %615 = vmatpush.bf16.msra.mxu0 %v530
      %616 = vmatpush.bf16.msra.mxu0 %v529
      %617 = vmatpush.bf16.msra.mxu0 %v528
      %618 = vmatpush.bf16.msra.mxu0 %v527
      %619 = vmatpush.bf16.msra.mxu0 %v526
      %620 = vmatpush.bf16.msra.mxu0 %v525
      %621 = vmatpush.bf16.msra.mxu0 %v524
      %622 = vmatmul.bf16.gmra.mxu0 %v340
      %v623 = vpop.f32.mrf.mxu0
      %v624 = vadd.f32 %v611, %v623
      %v625 = vpop.f32.mrf.mxu0
      %626 = vdwg.mxu0
      %627 = vmatpush.bf16.msra.mxu0 %v539
      %628 = vmatpush.bf16.msra.mxu0 %v538
      %629 = vmatpush.bf16.msra.mxu0 %v537
      %630 = vmatpush.bf16.msra.mxu0 %v536
      %631 = vmatpush.bf16.msra.mxu0 %v535
      %632 = vmatpush.bf16.msra.mxu0 %v534
      %633 = vmatpush.bf16.msra.mxu0 %v533
      %634 = vmatpush.bf16.msra.mxu0 %v532
      %635 = vmatmul.bf16.gmra.mxu0 %v341
      %v636 = vpop.f32.mrf.mxu0
      %v637 = vadd.f32 %v624, %v636
      %v638 = vpop.f32.mrf.mxu0
      %639 = vdwg.mxu0
      %640 = vmatpush.bf16.msra.mxu0 %v547
      %641 = vmatpush.bf16.msra.mxu0 %v546
      %642 = vmatpush.bf16.msra.mxu0 %v545
      %643 = vmatpush.bf16.msra.mxu0 %v544
      %644 = vmatpush.bf16.msra.mxu0 %v543
      %645 = vmatpush.bf16.msra.mxu0 %v542
      %646 = vmatpush.bf16.msra.mxu0 %v541
      %647 = vmatpush.bf16.msra.mxu0 %v540
      %648 = vmatmul.bf16.gmra.mxu0 %v342
      %v649 = vpop.f32.mrf.mxu0
      %v650 = vadd.f32 %v637, %v649
      %v651 = vpop.f32.mrf.mxu0
      %652 = vdwg.mxu0
      %v653 = vld [vmem:[%s239] sm:$0xf]
      %v654 = vadd.f32 %v650, %v653
      %655 = vst [vmem:[%s246] sm:$0xf] %v654
      %p656 = scmp.lt.s32.totalorder %s19, 1
      %s657 = scalar_select %p656, %s19, 1
      %p658 = scmp.lt.s32.totalorder %s20, 0
      %s659 = scalar_select %p658, %s20, 0
      %s660 = sadd.s32 %s659, %s657
      %s661 = smul.addr %s660, 4
      %s662 = scalar_lea.vmem %s4, %s661
      // Predicated region
      $region37: #{dinov2_forward.10} parent=35 // pred_check
        %p663 = pneg %p143
      $region38: #{dinov2_forward.10} parent=35 // pred_check_branch
        %665 = sbr.rel (%p663) target = $region40
      $region39: #{dinov2_forward.10} parent=35 // pred_region
        _
      $region40: #{dinov2_forward.10} parent=35 // pred_fallthru
        _
    $region36: #{dinov2_forward.10} parent=5 // pred_fallthru
      _
    %p666 = scmp.le.s32.totalorder 2, %s10
    // Predicated region
    $region41: #{dinov2_forward.10} parent=5 // pred_check
      %p667 = pneg %p666
    $region42: #{dinov2_forward.10} parent=5 // pred_check_branch
      %669 = sbr.rel (%p667) target = $region44
    $region43: #{dinov2_forward.10} parent=5 // pred_region
      %s670 = ssub.s32 %s10, 2
      // Predicated region
      $region45: #{dinov2_forward.10} parent=43 // pred_check
        %p671 = pneg %p149
      $region46: #{dinov2_forward.10} parent=43 // pred_check_branch
        %673 = sbr.rel (%p671) target = $region48
      $region47: #{dinov2_forward.10} parent=43 // pred_region
        %p674 = scmp.lt.s32.totalorder %s21, 1
        %s675 = scalar_select %p674, %s21, 1
        %p676 = scmp.lt.s32.totalorder %s22, 0
        %s677 = scalar_select %p676, %s22, 0
        %s678 = sadd.s32 %s677, %s675
        %s679 = smul.addr %s678, 4
        %s680 = scalar_lea.vmem %s4, %s679
      $region48: #{dinov2_forward.10} parent=43 // pred_fallthru
        _
    $region44: #{dinov2_forward.10} parent=5 // pred_fallthru
      _
  $region6: #{dinov2_forward.10} parent=0 // loop_footer
    %s14 = sadd.s32 1, %s10
  $region7: #{dinov2_forward.10} parent=0 // loop_footer_branch
    %9 = sbr.rel target = $region3
  $region8: #{dinov2_forward.10} parent=0 // loop_exit
    _

// kernel: dinov2_forward.12
$region0: #{dinov2_forward.12}
  #allocation0 [shape = 'u32[]', space=smem, size = 0x4, offset = 0x4, fixed_abs, tag = 'smem constant byte address 0x4 - core index']
  #allocation1 [shape = 'u32[72,128]{1,0:T(1,128)}', space=vmem, size = 0x9000, scoped, tag = 'internal scratch']
  %s0 = inlined_call_operand.vmem [shape: bf16[2,5,384], index: 0, kind: input, shape index: {}, may-alias: {0,1,2}]
  %s1 = inlined_call_operand.vmem [shape: bf16[2,5,384], index: 1, kind: input, shape index: {}, may-alias: {0,1,2}]
  %s2 = inlined_call_operand.vmem [shape: bf16[2,5,384], index: 2, kind: input, shape index: {}, may-alias: {0,1,2}]
  %s3 = inlined_call_operand.vmem [shape: bf16[2,5,128], index: 3, kind: output, shape index: {}]
  %s4 = sld [smem:[#allocation0]]
  $region45: #{dinov2_forward.12} parent=0
    _
  %s6 = ssub.s32 1, %s4
  %s7 = scalar_select 0, %s6, %s4
  loop: start=0, step=1, limit=4
  $region2: #{dinov2_forward.12} parent=0 // loop_pre_header
    _
  $region3: #{dinov2_forward.12} parent=0 // loop_header
    %s9 = sphi 0, %s13
    %p10 = scmp.ge.s32.totalorder %s9, 4
    %s16 = sphi 0, %s35
    %s17 = sphi 0, %s31
    %s18 = sphi 0, %s27
    %s19 = sphi 0, %s16
    %s20 = sphi 0, %s17
    %s21 = sphi 0, %s18
    %s22 = sphi 0, %s19
    %s23 = sphi 0, %s20
    %s24 = sphi 0, %s21
    %s42 = sphi 0, %s44
    %s45 = sphi 0, %s42
    %s46 = sphi 0, %s45
    %s62 = sphi 0, %s46
    %s72 = sphi 0, %s74
    %s75 = sphi 0, %s72
    %s76 = sphi 0, %s75
    %s92 = sphi 0, %s76
    %s102 = sphi 0, %s104
    %s105 = sphi 0, %s102
    %s106 = sphi 0, %s105
    %s122 = sphi 0, %s106
    %s132 = sphi 0, %s134
    %s135 = sphi 0, %s132
    %s136 = sphi 0, %s135
    %s152 = sphi 0, %s136
  $region4: #{dinov2_forward.12} parent=0 // loop_header_branch
    %12 = sbr.rel (%p10) target = $region8
  $region5: #{dinov2_forward.12} parent=0 // loop_body
    %s14 = ssub.s32 %s9, 1
    %s15 = ssub.s32 %s9, 2
    %s25 = sadd.s32 1, %s18
    %p26 = scmp.ge.s32.totalorder %s25, 1
    %s27 = scalar_select %p26, 0, %s25
    %s28 = sadd.s32 1, %s17
    %s29 = scalar_select %p26, %s28, %s17
    %p30 = scmp.ge.s32.totalorder %s29, 1
    %s31 = scalar_select %p30, 0, %s29
    %s32 = sadd.s32 1, %s16
    %s33 = scalar_select %p30, %s32, %s16
    %p34 = scmp.ge.s32.totalorder %s33, 2
    %s35 = scalar_select %p34, 0, %s33
    %s36 = ssub.s32 %s16, %s35
    %s37 = ssub.s32 %s18, %s27
    %s38 = sor.u32 %s36, %s37
    %s39 = ssub.s32 %s17, %s31
    %s40 = sor.u32 %s38, %s39
    %p41 = scmp.eq.s32.totalorder %s40, 0
    %s43 = sadd.s32 %s42, 1
    %s44 = scalar_select %p41, %s42, %s43
    %p47 = pneg %p41
    %p48 = scmp.eq.s32.totalorder %s9, 1
    %p49 = por %p47, %p48
    %p50 = scmp.ne.s32.totalorder %s42, %s45
    %p51 = scmp.eq.s32.totalorder %s9, 0
    %p52 = por %p50, %p51
    %p53 = scmp.ne.s32.totalorder %s42, %s45
    %p54 = scmp.eq.s32.totalorder %s14, 1
    %p55 = por %p53, %p54
    %p56 = scmp.ne.s32.totalorder %s45, %s46
    %p57 = scmp.eq.s32.totalorder %s14, 0
    %p58 = por %p56, %p57
    %p59 = scmp.ne.s32.totalorder %s45, %s46
    %p60 = scmp.eq.s32.totalorder %s15, 1
    %p61 = por %p59, %p60
    %p63 = scmp.ne.s32.totalorder %s46, %s62
    %p64 = scmp.eq.s32.totalorder %s15, 0
    %p65 = por %p63, %p64
    %s66 = sadd.s32 %s17, 1
    %s67 = sadd.s32 %s31, 1
    %s68 = ssub.s32 %s16, %s35
    %s69 = ssub.s32 %s66, %s67
    %s70 = sor.u32 %s68, %s69
    %p71 = scmp.eq.s32.totalorder %s70, 0
    %s73 = sadd.s32 %s72, 1
    %s74 = scalar_select %p71, %s72, %s73
    %p77 = pneg %p71
    %p78 = scmp.eq.s32.totalorder %s9, 1
    %p79 = por %p77, %p78
    %p80 = scmp.ne.s32.totalorder %s72, %s75
    %p81 = scmp.eq.s32.totalorder %s9, 0
    %p82 = por %p80, %p81
    %p83 = scmp.ne.s32.totalorder %s72, %s75
    %p84 = scmp.eq.s32.totalorder %s14, 1
    %p85 = por %p83, %p84
    %p86 = scmp.ne.s32.totalorder %s75, %s76
    %p87 = scmp.eq.s32.totalorder %s14, 0
    %p88 = por %p86, %p87
    %p89 = scmp.ne.s32.totalorder %s75, %s76
    %p90 = scmp.eq.s32.totalorder %s15, 1
    %p91 = por %p89, %p90
    %p93 = scmp.ne.s32.totalorder %s76, %s92
    %p94 = scmp.eq.s32.totalorder %s15, 0
    %p95 = por %p93, %p94
    %s96 = sadd.s32 %s17, 2
    %s97 = sadd.s32 %s31, 2
    %s98 = ssub.s32 %s16, %s35
    %s99 = ssub.s32 %s96, %s97
    %s100 = sor.u32 %s98, %s99
    %p101 = scmp.eq.s32.totalorder %s100, 0
    %s103 = sadd.s32 %s102, 1
    %s104 = scalar_select %p101, %s102, %s103
    %p107 = pneg %p101
    %p108 = scmp.eq.s32.totalorder %s9, 1
    %p109 = por %p107, %p108
    %p110 = scmp.ne.s32.totalorder %s102, %s105
    %p111 = scmp.eq.s32.totalorder %s9, 0
    %p112 = por %p110, %p111
    %p113 = scmp.ne.s32.totalorder %s102, %s105
    %p114 = scmp.eq.s32.totalorder %s14, 1
    %p115 = por %p113, %p114
    %p116 = scmp.ne.s32.totalorder %s105, %s106
    %p117 = scmp.eq.s32.totalorder %s14, 0
    %p118 = por %p116, %p117
    %p119 = scmp.ne.s32.totalorder %s105, %s106
    %p120 = scmp.eq.s32.totalorder %s15, 1
    %p121 = por %p119, %p120
    %p123 = scmp.ne.s32.totalorder %s106, %s122
    %p124 = scmp.eq.s32.totalorder %s15, 0
    %p125 = por %p123, %p124
    %s126 = ssub.s32 %s16, %s35
    %s127 = ssub.s32 %s18, %s27
    %s128 = sor.u32 %s126, %s127
    %s129 = ssub.s32 %s17, %s31
    %s130 = sor.u32 %s128, %s129
    %p131 = scmp.eq.s32.totalorder %s130, 0
    %s133 = sadd.s32 %s132, 1
    %s134 = scalar_select %p131, %s132, %s133
    %p137 = pneg %p131
    %p138 = scmp.eq.s32.totalorder %s9, 1
    %p139 = por %p137, %p138
    %p140 = scmp.ne.s32.totalorder %s132, %s135
    %p141 = scmp.eq.s32.totalorder %s9, 0
    %p142 = por %p140, %p141
    %p143 = scmp.ne.s32.totalorder %s132, %s135
    %p144 = scmp.eq.s32.totalorder %s14, 1
    %p145 = por %p143, %p144
    %p146 = scmp.ne.s32.totalorder %s135, %s136
    %p147 = scmp.eq.s32.totalorder %s14, 0
    %p148 = por %p146, %p147
    %p149 = scmp.ne.s32.totalorder %s135, %s136
    %p150 = scmp.eq.s32.totalorder %s15, 1
    %p151 = por %p149, %p150
    %p153 = scmp.ne.s32.totalorder %s136, %s152
    %p154 = scmp.eq.s32.totalorder %s15, 0
    %p155 = por %p153, %p154
    %p156 = scmp.le.s32.totalorder 1, %s9
    %p157 = scmp.lt.s32.totalorder %s9, 3
    %p158 = pnand %p156, %p157
    %p159 = pneg %p158
    // Predicated region
    $region9: #{dinov2_forward.12} parent=5 // pred_check
      _
    $region10: #{dinov2_forward.12} parent=5 // pred_check_branch
      %161 = sbr.rel (%p158) target = $region12
    $region11: #{dinov2_forward.12} parent=5 // pred_region
      %s162 = ssub.s32 %s9, 1
    $region12: #{dinov2_forward.12} parent=5 // pred_fallthru
      _
    %p163 = scmp.lt.s32.totalorder %s9, 2
    // Predicated region
    $region13: #{dinov2_forward.12} parent=5 // pred_check
      %p164 = pneg %p163
    $region14: #{dinov2_forward.12} parent=5 // pred_check_branch
      %166 = sbr.rel (%p164) target = $region16
    $region15: #{dinov2_forward.12} parent=5 // pred_region
      // Predicated region
      $region17: #{dinov2_forward.12} parent=15 // pred_check
        %p167 = pneg %p52
      $region18: #{dinov2_forward.12} parent=15 // pred_check_branch
        %169 = sbr.rel (%p167) target = $region20
      $region19: #{dinov2_forward.12} parent=15 // pred_region
        %p170 = scmp.lt.s32.totalorder %s16, 1
        %s171 = scalar_select %p170, %s16, 1
        %p172 = scmp.lt.s32.totalorder %s18, 0
        %s173 = scalar_select %p172, %s18, 0
        %p174 = scmp.lt.s32.totalorder %s17, 2
        %s175 = scalar_select %p174, %s17, 2
        %s176 = smul.addr %s173, 3
        %s177 = sadd.s32 %s175, %s176
        %s178 = smul.addr %s171, 3
        %s179 = sadd.s32 %s177, %s178
        %s180 = smul.addr %s179, 4
        %s181 = scalar_lea.vmem %s0, %s180
      $region20: #{dinov2_forward.12} parent=15 // pred_fallthru
        _
      // Predicated region
      $region21: #{dinov2_forward.12} parent=15 // pred_check
        %p182 = pneg %p82
      $region22: #{dinov2_forward.12} parent=15 // pred_check_branch
        %184 = sbr.rel (%p182) target = $region24
      $region23: #{dinov2_forward.12} parent=15 // pred_region
        %s185 = sadd.s32 %s17, 1
        %p186 = scmp.lt.s32.totalorder %s16, 1
        %s187 = scalar_select %p186, %s16, 1
        %p188 = scmp.lt.s32.totalorder %s185, 2
        %s189 = scalar_select %p188, %s185, 2
        %s190 = smul.addr %s187, 3
        %s191 = sadd.s32 %s189, %s190
        %s192 = smul.addr %s191, 4
        %s193 = scalar_lea.vmem %s1, %s192
        %s194 = sadd.s32 %s17, 1
      $region24: #{dinov2_forward.12} parent=15 // pred_fallthru
        _
      // Predicated region
      $region25: #{dinov2_forward.12} parent=15 // pred_check
        %p195 = pneg %p112
      $region26: #{dinov2_forward.12} parent=15 // pred_check_branch
        %197 = sbr.rel (%p195) target = $region28
      $region27: #{dinov2_forward.12} parent=15 // pred_region
        %s198 = sadd.s32 %s17, 2
        %p199 = scmp.lt.s32.totalorder %s16, 1
        %s200 = scalar_select %p199, %s16, 1
        %p201 = scmp.lt.s32.totalorder %s198, 2
        %s202 = scalar_select %p201, %s198, 2
        %s203 = smul.addr %s200, 3
        %s204 = sadd.s32 %s202, %s203
        %s205 = smul.addr %s204, 4
        %s206 = scalar_lea.vmem %s2, %s205
        %s207 = sadd.s32 %s17, 2
      $region28: #{dinov2_forward.12} parent=15 // pred_fallthru
        _
    $region16: #{dinov2_forward.12} parent=5 // pred_fallthru
      _
    %p208 = scmp.le.s32.totalorder 1, %s9
    %p209 = scmp.lt.s32.totalorder %s9, 3
    %p210 = pnand %p208, %p209
    %p211 = pneg %p210
    // Predicated region
    $region29: #{dinov2_forward.12} parent=5 // pred_check
      _
    $region30: #{dinov2_forward.12} parent=5 // pred_check_branch
      %213 = sbr.rel (%p210) target = $region32
    $region31: #{dinov2_forward.12} parent=5 // pred_region
      %s214 = ssub.s32 %s9, 1
      %p215 = scmp.lt.s32.totalorder %s19, 1
      %s216 = scalar_select %p215, %s19, 1
      %p217 = scmp.lt.s32.totalorder %s21, 0
      %s218 = scalar_select %p217, %s21, 0
      %p219 = scmp.lt.s32.totalorder %s20, 2
      %s220 = scalar_select %p219, %s20, 2
      %s221 = smul.addr %s218, 3
      %s222 = sadd.s32 %s220, %s221
      %s223 = smul.addr %s216, 3
      %s224 = sadd.s32 %s222, %s223
      %s225 = smul.addr %s224, 4
      %s226 = scalar_lea.vmem %s0, %s225
      %p227 = pneg %p58
      %p228 = pneg %p55
      %s229 = sadd.s32 %s20, 1
      %p230 = scmp.lt.s32.totalorder %s19, 1
      %s231 = scalar_select %p230, %s19, 1
      %p232 = scmp.lt.s32.totalorder %s229, 2
      %s233 = scalar_select %p232, %s229, 2
      %s234 = smul.addr %s231, 3
      %s235 = sadd.s32 %s233, %s234
      %s236 = smul.addr %s235, 4
      %s237 = scalar_lea.vmem %s1, %s236
      %p238 = pneg %p88
      %p239 = pneg %p85
      %s240 = sadd.s32 %s20, 2
      %p241 = scmp.lt.s32.totalorder %s19, 1
      %s242 = scalar_select %p241, %s19, 1
      %p243 = scmp.lt.s32.totalorder %s240, 2
      %s244 = scalar_select %p243, %s240, 2
      %s245 = smul.addr %s242, 3
      %s246 = sadd.s32 %s244, %s245
      %s247 = smul.addr %s246, 4
      %s248 = scalar_lea.vmem %s2, %s247
      %p249 = pneg %p118
      %p250 = pneg %p115
      %p251 = pneg %p148
      %p252 = pneg %p145
      %p253 = scmp.lt.s32.totalorder %s19, 1
      %s254 = scalar_select %p253, %s19, 1
      %p255 = scmp.lt.s32.totalorder %s21, 0
      %s256 = scalar_select %p255, %s21, 0
      %p257 = scmp.lt.s32.totalorder %s20, 0
      %s258 = scalar_select %p257, %s20, 0
      %s259 = sadd.s32 %s258, %s256
      %s260 = sadd.s32 %s259, %s254
      %s261 = smul.addr %s260, 4
      %s262 = scalar_lea.vmem %s3, %s261
      %p263 = scmp.lt.s32.totalorder %s19, 1
      %s264 = scalar_select %p263, %s19, 1
      %p265 = scmp.lt.s32.totalorder %s21, 0
      %s266 = scalar_select %p265, %s21, 0
      %p267 = scmp.lt.s32.totalorder %s20, 2
      %s268 = scalar_select %p267, %s20, 2
      %s269 = smul.addr %s266, 3
      %s270 = sadd.s32 %s268, %s269
      %s271 = smul.addr %s264, 3
      %s272 = sadd.s32 %s270, %s271
      %s273 = smul.addr %s272, 4
      %s274 = scalar_lea.vmem %s0, %s273
      %s275 = sadd.s32 %s20, 1
      %p276 = scmp.lt.s32.totalorder %s19, 1
      %s277 = scalar_select %p276, %s19, 1
      %p278 = scmp.lt.s32.totalorder %s275, 2
      %s279 = scalar_select %p278, %s275, 2
      %s280 = smul.addr %s277, 3
      %s281 = sadd.s32 %s279, %s280
      %s282 = smul.addr %s281, 4
      %s283 = scalar_lea.vmem %s1, %s282
      %s284 = sadd.s32 %s20, 1
      %s285 = sadd.s32 %s20, 2
      %p286 = scmp.lt.s32.totalorder %s19, 1
      %s287 = scalar_select %p286, %s19, 1
      %p288 = scmp.lt.s32.totalorder %s285, 2
      %s289 = scalar_select %p288, %s285, 2
      %s290 = smul.addr %s287, 3
      %s291 = sadd.s32 %s289, %s290
      %s292 = smul.addr %s291, 4
      %s293 = scalar_lea.vmem %s2, %s292
      %s294 = sadd.s32 %s20, 2
      %p295 = scmp.lt.s32.totalorder %s19, 1
      %s296 = scalar_select %p295, %s19, 1
      %p297 = scmp.lt.s32.totalorder %s21, 0
      %s298 = scalar_select %p297, %s21, 0
      %p299 = scmp.lt.s32.totalorder %s20, 0
      %s300 = scalar_select %p299, %s20, 0
      %s301 = sadd.s32 %s300, %s298
      %s302 = sadd.s32 %s301, %s296
      %s303 = smul.addr %s302, 4
      %s304 = scalar_lea.vmem %s3, %s303
      %v306 = vld [vmem:[%s274] sm:$0x7]
      %v307 = vld [vmem:[%s283] sm:$0x7]
      %v308 = vld [vmem:[%s293] sm:$0x7]
      %vm309 = vcmask 523264
      %v311 = vsel %vm309, %v306, 0
      %v314 = vsel %vm309, %v307, 0
      %316 = vmatpush.bf16.xpose.msra.mxu0 0
      %317 = vmatpush.bf16.xpose.msra.mxu0 0
      %318 = vmatpush.bf16.xpose.msra.mxu0 0
      %319 = vmatpush.bf16.xpose.msra.mxu0 0
      %320 = vmatpush.bf16.xpose.msra.mxu0 0
      %321 = vmatpush.bf16.xpose.msra.mxu0 0
      %322 = vmatpush.bf16.xpose.msra.mxu0 0
      %323 = vmatpush.bf16.xpose.msra.mxu0 %v314
      %324 = vmatmul.bf16.gmra.mxu0 %v311
      %v325 = vpop.f32.mrf.mxu0
      %v326 = vadd.f32 0.0, %v325
      %v327 = vpop.f32.mrf.mxu0
      %328 = vdwg.mxu0
      %v329 = vmul.f32 %v326, 0.125
      %vm330 = vcmask 36864
      %v331 = vsel %vm330, %v329, -inf
      %332 = vmax.xlane.f32.xlu0 %v331
      %v333 = vpop.xlane.xlu0 %332
      %v334 = vsub.f32 %v329, %v333
      %v335 = vmul.f32 %v334, 1.442695
      %v336 = vpow.pop %v335
      %v337 = vsel %vm330, %v336, 0.0
      %338 = vadd.xlane.f32.xlu0 %v337
      %v339 = vpop.xlane.xlu0 %338
      %v340 = vrcp.pop %v339
      %v341 = vmul.f32 %v336, %v340
      %v342 = vpack.c.bf16 %v341, %v341
      %vm343 = vcmask 39936
      %v345 = vsel %vm343, %v342, 0
      %vm347 = vcmask 1041408
      %vm348 = vcmask 1042432
      %v349 = vsel %vm347, 4294967295, 65535
      %v350 = vsel %vm348, %v349, 0
      %v352 = vand.u32 %v308, %v350
      %354 = vmatpush.bf16.msra.mxu0 0
      %355 = vmatpush.bf16.msra.mxu0 0
      %356 = vmatpush.bf16.msra.mxu0 0
      %357 = vmatpush.bf16.msra.mxu0 0
      %358 = vmatpush.bf16.msra.mxu0 0
      %359 = vmatpush.bf16.msra.mxu0 0
      %360 = vmatpush.bf16.msra.mxu0 0
      %361 = vmatpush.bf16.msra.mxu0 %v352
      %362 = vmatmul.bf16.gmra.mxu0 %v345
      %v363 = vpop.f32.mrf.mxu0
      %v364 = vadd.f32 0.0, %v363
      %v365 = vpop.f32.mrf.mxu0
      %366 = vdwg.mxu0
      %v368 = vunpack.c.l.b16 %v306
      %v369 = vpack.c.b16 %v368, %v368
      %370 = vrot.lane.b32.xlu0 %v369, 64
      %v371 = vpop.permute.xlu0 %370
      %v373 = vunpack.c.l.b16 %v307
      %v374 = vpack.c.b16 %v373, %v373
      %375 = vrot.lane.b32.xlu0 %v374, 64
      %v376 = vpop.permute.xlu0 %375
      %v378 = vsel %vm309, %v371, 0
      %v381 = vsel %vm309, %v376, 0
      %383 = vmatpush.bf16.xpose.msra.mxu0 0
      %384 = vmatpush.bf16.xpose.msra.mxu0 0
      %385 = vmatpush.bf16.xpose.msra.mxu0 0
      %386 = vmatpush.bf16.xpose.msra.mxu0 0
      %387 = vmatpush.bf16.xpose.msra.mxu0 0
      %388 = vmatpush.bf16.xpose.msra.mxu0 0
      %389 = vmatpush.bf16.xpose.msra.mxu0 0
      %390 = vmatpush.bf16.xpose.msra.mxu0 %v381
      %391 = vmatmul.bf16.gmra.mxu0 %v378
      %v392 = vpop.f32.mrf.mxu0
      %v393 = vadd.f32 0.0, %v392
      %v394 = vpop.f32.mrf.mxu0
      %395 = vdwg.mxu0
      %v396 = vmul.f32 %v393, 0.125
      %v397 = vsel %vm330, %v396, -inf
      %398 = vmax.xlane.f32.xlu0 %v397
      %v399 = vpop.xlane.xlu0 %398
      %v400 = vsub.f32 %v396, %v399
      %v401 = vmul.f32 %v400, 1.442695
      %v402 = vpow.pop %v401
      %v403 = vsel %vm330, %v402, 0.0
      %404 = vadd.xlane.f32.xlu0 %v403
      %v405 = vpop.xlane.xlu0 %404
      %v406 = vrcp.pop %v405
      %v407 = vmul.f32 %v402, %v406
      %v408 = vpack.c.bf16 %v407, %v407
      %v410 = vunpack.c.l.b16 %v308
      %v411 = vpack.c.b16 %v410, %v410
      %412 = vrot.lane.b32.xlu0 %v411, 64
      %v413 = vpop.permute.xlu0 %412
      %v415 = vsel %vm343, %v408, 0
      %v418 = vand.u32 %v413, %v350
      %420 = vmatpush.bf16.msra.mxu0 0
      %421 = vmatpush.bf16.msra.mxu0 0
      %422 = vmatpush.bf16.msra.mxu0 0
      %423 = vmatpush.bf16.msra.mxu0 0
      %424 = vmatpush.bf16.msra.mxu0 0
      %425 = vmatpush.bf16.msra.mxu0 0
      %426 = vmatpush.bf16.msra.mxu0 0
      %427 = vmatpush.bf16.msra.mxu0 %v418
      %428 = vmatmul.bf16.gmra.mxu0 %v415
      %v429 = vpop.f32.mrf.mxu0
      %v430 = vadd.f32 0.0, %v429
      %v431 = vpop.f32.mrf.mxu0
      %432 = vdwg.mxu0
      %434 = vrot.lane.b32.xlu0 %v430, 64
      %v435 = vpop.permute.xlu0 %434
      %v437 = vsel %vm309, %v364, %v435
      %v438 = vpack.c.bf16 %v437, %v437
      %vm439 = vcmask 1042432
      %vm440 = vsmask.f32 2304
      %vm441 = vmand %vm439, %vm440
      %v442 = vld [vmem:[%s304] sm:$0x7]
      %v443 = vsel %vm441, %v438, %v442
      %444 = vst [vmem:[%s304] sm:$0x7] %v443
      %p445 = scmp.lt.s32.totalorder %s19, 1
      %s446 = scalar_select %p445, %s19, 1
      %p447 = scmp.lt.s32.totalorder %s21, 0
      %s448 = scalar_select %p447, %s21, 0
      %p449 = scmp.lt.s32.totalorder %s20, 0
      %s450 = scalar_select %p449, %s20, 0
      %s451 = sadd.s32 %s450, %s448
      %s452 = sadd.s32 %s451, %s446
      %s453 = smul.addr %s452, 4
      %s454 = scalar_lea.vmem %s3, %s453
      // Predicated region
      $region33: #{dinov2_forward.12} parent=31 // pred_check
        %p455 = pneg %p145
      $region34: #{dinov2_forward.12} parent=31 // pred_check_branch
        %457 = sbr.rel (%p455) target = $region36
      $region35: #{dinov2_forward.12} parent=31 // pred_region
        _
      $region36: #{dinov2_forward.12} parent=31 // pred_fallthru
        _
    $region32: #{dinov2_forward.12} parent=5 // pred_fallthru
      _
    %p458 = scmp.le.s32.totalorder 2, %s9
    // Predicated region
    $region37: #{dinov2_forward.12} parent=5 // pred_check
      %p459 = pneg %p458
    $region38: #{dinov2_forward.12} parent=5 // pred_check_branch
      %461 = sbr.rel (%p459) target = $region40
    $region39: #{dinov2_forward.12} parent=5 // pred_region
      %s462 = ssub.s32 %s9, 2
      // Predicated region
      $region41: #{dinov2_forward.12} parent=39 // pred_check
        %p463 = pneg %p151
      $region42: #{dinov2_forward.12} parent=39 // pred_check_branch
        %465 = sbr.rel (%p463) target = $region44
      $region43: #{dinov2_forward.12} parent=39 // pred_region
        %p466 = scmp.lt.s32.totalorder %s22, 1
        %s467 = scalar_select %p466, %s22, 1
        %p468 = scmp.lt.s32.totalorder %s24, 0
        %s469 = scalar_select %p468, %s24, 0
        %p470 = scmp.lt.s32.totalorder %s23, 0
        %s471 = scalar_select %p470, %s23, 0
        %s472 = sadd.s32 %s471, %s469
        %s473 = sadd.s32 %s472, %s467
        %s474 = smul.addr %s473, 4
        %s475 = scalar_lea.vmem %s3, %s474
      $region44: #{dinov2_forward.12} parent=39 // pred_fallthru
        _
    $region40: #{dinov2_forward.12} parent=5 // pred_fallthru
      _
  $region6: #{dinov2_forward.12} parent=0 // loop_footer
    %s13 = sadd.s32 1, %s9
  $region7: #{dinov2_forward.12} parent=0 // loop_footer_branch
    %8 = sbr.rel target = $region3
  $region8: #{dinov2_forward.12} parent=0 // loop_exit
    _

// kernel: dinov2_forward.11
$region0: #{dinov2_forward.11}
  #allocation0 [shape = 'u32[]', space=smem, size = 0x4, offset = 0x4, fixed_abs, tag = 'smem constant byte address 0x4 - core index']
  #allocation1 [shape = 'u32[72,128]{1,0:T(1,128)}', space=vmem, size = 0x9000, scoped, tag = 'internal scratch']
  #allocation2 [shape = 'bf16[10,128]{1,0:T(8,128)(2,1)}', space=vmem, size = 0x1000, scoped, tag = 'scratch operand']
  %s0 = inlined_call_operand.vmem [shape: f32[10,128], index: 0, kind: input, shape index: {}]
  %s1 = inlined_call_operand.vmem [shape: f32[1,128], index: 1, kind: input, shape index: {}]
  %s2 = inlined_call_operand.vmem [shape: f32[1,128], index: 2, kind: input, shape index: {}]
  %s3 = inlined_call_operand.vmem [shape: bf16[128,384], index: 3, kind: input, shape index: {}]
  %s4 = inlined_call_operand.vmem [shape: f32[1,384], index: 4, kind: input, shape index: {}]
  %s5 = inlined_call_operand.vmem [shape: bf16[10,384], index: 5, kind: output, shape index: {}]
  %s6 = sld [smem:[#allocation0]]
  $region34: #{dinov2_forward.11} parent=0
    _
  %s8 = ssub.s32 1, %s6
  %s9 = scalar_select 0, %s8, %s6
  // Predicated region
  $region2: #{dinov2_forward.11} parent=0 // pred_check
    _
  $region3: #{dinov2_forward.11} parent=0 // pred_check_branch
    %11 = sbr.rel (0) target = $region5
  $region4: #{dinov2_forward.11} parent=0 // pred_region
    _
  $region5: #{dinov2_forward.11} parent=0 // pred_fallthru
    _
  // Predicated region
  $region6: #{dinov2_forward.11} parent=0 // pred_check
    _
  $region7: #{dinov2_forward.11} parent=0 // pred_check_branch
    %13 = sbr.rel (0) target = $region9
  $region8: #{dinov2_forward.11} parent=0 // pred_region
    _
  $region9: #{dinov2_forward.11} parent=0 // pred_fallthru
    _
  // Predicated region
  $region10: #{dinov2_forward.11} parent=0 // pred_check
    _
  $region11: #{dinov2_forward.11} parent=0 // pred_check_branch
    %15 = sbr.rel (0) target = $region13
  $region12: #{dinov2_forward.11} parent=0 // pred_region
    _
  $region13: #{dinov2_forward.11} parent=0 // pred_fallthru
    _
  // Predicated region
  $region14: #{dinov2_forward.11} parent=0 // pred_check
    _
  $region15: #{dinov2_forward.11} parent=0 // pred_check_branch
    %17 = sbr.rel (0) target = $region17
  $region16: #{dinov2_forward.11} parent=0 // pred_region
    _
  $region17: #{dinov2_forward.11} parent=0 // pred_fallthru
    _
  // Predicated region
  $region18: #{dinov2_forward.11} parent=0 // pred_check
    _
  $region19: #{dinov2_forward.11} parent=0 // pred_check_branch
    %19 = sbr.rel (0) target = $region21
  $region20: #{dinov2_forward.11} parent=0 // pred_region
    _
  $region21: #{dinov2_forward.11} parent=0 // pred_fallthru
    _
  %p20 = scmp.eq.s32.totalorder 0, 0
  // Predicated region
  $region22: #{dinov2_forward.11} parent=0 // pred_check
    %p21 = pneg %p20
  $region23: #{dinov2_forward.11} parent=0 // pred_check_branch
    %23 = sbr.rel (%p21) target = $region25
  $region24: #{dinov2_forward.11} parent=0 // pred_region
    %v24 = vld [vmem:[%s0] sm:$0xff]
    %v25 = vld [vmem:[%s0 + $0x8] sm:$0x3]
    %26 = vadd.xlane.f32.xlu0 %v24
    %v27 = vpop.xlane.xlu0 %26
    %vm28 = vcmask 1041408
    %v29 = vsel %vm28, %v25, 0.0
    %30 = vadd.xlane.f32.xlu0 %v29
    %v31 = vpop.xlane.xlu0 %30
    %v32 = vrcp.pop 128.0
    %v33 = vmul.f32 128.0, %v32
    %v34 = vsub.f32 1.0, %v33
    %v35 = vmul.f32 %v32, %v34
    %v36 = vadd.f32 %v32, %v35
    %vm37 = vweird.f32 %v32
    %v38 = vsel %vm37, %v32, %v36
    %v39 = vmul.f32 %v27, %v38
    %v40 = vmul.f32 %v31, %v38
    %v41 = vsub.f32 %v24, %v39
    %v42 = vsub.f32 %v25, %v40
    %v43 = vmul.f32 %v41, %v41
    %v44 = vmul.f32 %v42, %v42
    %45 = vadd.xlane.f32.xlu0 %v43
    %v46 = vpop.xlane.xlu0 %45
    %v47 = vsel %vm28, %v44, 0.0
    %48 = vadd.xlane.f32.xlu0 %v47
    %v49 = vpop.xlane.xlu0 %48
    %v50 = vmul.f32 %v46, %v38
    %v51 = vmul.f32 %v49, %v38
    %v52 = vadd.f32 %v50, 1e-06
    %v53 = vadd.f32 %v51, 1e-06
    %v54 = vrsqrt.pop %v52
    %v55 = vmul.f32 %v54, %v52
    %v56 = vmul.f32 %v55, %v54
    %v57 = vmul.f32 0.5, %v56
    %v58 = vsub.f32 1.5, %v57
    %v59 = vmul.f32 %v54, %v58
    %vm60 = vweird.f32 %v52
    %vm61 = vweird.f32 %v54
    %vm62 = vmor %vm60, %vm61
    %v63 = vsel %vm62, %v54, %v59
    %v64 = vrsqrt.pop %v53
    %v65 = vmul.f32 %v64, %v53
    %v66 = vmul.f32 %v65, %v64
    %v67 = vmul.f32 0.5, %v66
    %v68 = vsub.f32 1.5, %v67
    %v69 = vmul.f32 %v64, %v68
    %vm70 = vweird.f32 %v53
    %vm71 = vweird.f32 %v64
    %vm72 = vmor %vm70, %vm71
    %v73 = vsel %vm72, %v64, %v69
    %v74 = vmul.f32 %v41, %v63
    %v75 = vmul.f32 %v42, %v73
    %v76 = vld [vmem:[%s1] sm:$0x1]
    %v78 = vperm.slane %v76, 0
    %v80 = vmul.f32 %v74, %v78
    %v81 = vmul.f32 %v75, %v78
    %v82 = vld [vmem:[%s2] sm:$0x1]
    %v84 = vperm.slane %v82, 0
    %v86 = vadd.f32 %v80, %v84
    %v87 = vadd.f32 %v81, %v84
    %v88 = vpack.c.bf16 %v86, %v86
    %v89 = vpack.c.bf16 %v87, %v87
    %90 = vst [vmem:[#allocation2] sm:$0xf] %v88
    %91 = vst [vmem:[#allocation2 + $0x4] sm:$0x1] %v89
  $region25: #{dinov2_forward.11} parent=0 // pred_fallthru
    _
  %v92 = vld [vmem:[#allocation2] sm:$0xf]
  %v93 = vld [vmem:[#allocation2 + $0x4] sm:$0x1]
  %v94 = vld [vmem:[%s3] sm:$0xff]
  %v95 = vld [vmem:[%s3 + $0x8] sm:$0xf]
  %v96 = vld [vmem:[%s3 + $0xc] sm:$0xff]
  %v97 = vld [vmem:[%s3 + $0x14] sm:$0xf]
  %v98 = vld [vmem:[%s3 + $0x18] sm:$0xff]
  %v99 = vld [vmem:[%s3 + $0x20] sm:$0xf]
  %v100 = vld [vmem:[%s3 + $0x24] sm:$0xff]
  %v101 = vld [vmem:[%s3 + $0x2c] sm:$0xf]
  %v102 = vld [vmem:[%s3 + $0x30] sm:$0xff]
  %v103 = vld [vmem:[%s3 + $0x38] sm:$0xf]
  %v104 = vld [vmem:[%s3 + $0x3c] sm:$0xff]
  %v105 = vld [vmem:[%s3 + $0x44] sm:$0xf]
  %v106 = vld [vmem:[%s3 + $0x48] sm:$0xff]
  %v107 = vld [vmem:[%s3 + $0x50] sm:$0xf]
  %v108 = vld [vmem:[%s3 + $0x54] sm:$0xff]
  %v109 = vld [vmem:[%s3 + $0x5c] sm:$0xf]
  %v110 = vld [vmem:[%s3 + $0x60] sm:$0xff]
  %v111 = vld [vmem:[%s3 + $0x68] sm:$0xf]
  %v112 = vld [vmem:[%s3 + $0x6c] sm:$0xff]
  %v113 = vld [vmem:[%s3 + $0x74] sm:$0xf]
  %v114 = vld [vmem:[%s3 + $0x78] sm:$0xff]
  %v115 = vld [vmem:[%s3 + $0x80] sm:$0xf]
  %v116 = vld [vmem:[%s3 + $0x84] sm:$0xff]
  %v117 = vld [vmem:[%s3 + $0x8c] sm:$0xf]
  %v118 = vld [vmem:[%s3 + $0x90] sm:$0xff]
  %v119 = vld [vmem:[%s3 + $0x98] sm:$0xf]
  %v120 = vld [vmem:[%s3 + $0x9c] sm:$0xff]
  %v121 = vld [vmem:[%s3 + $0xa4] sm:$0xf]
  %v122 = vld [vmem:[%s3 + $0xa8] sm:$0xff]
  %v123 = vld [vmem:[%s3 + $0xb0] sm:$0xf]
  %v124 = vld [vmem:[%s3 + $0xb4] sm:$0xff]
  %v125 = vld [vmem:[%s3 + $0xbc] sm:$0xf]
  %v126 = vld [vmem:[%s4] sm:$0x7]
  %v128 = vperm.slane %v126, 0
  %v129 = vperm.slane %v126, 1
  %v130 = vperm.slane %v126, 2
  %v136 = vunpack.c.l.b16 %v92
  %v137 = vunpack.c.l.b16 %v93
  %v138 = vpack.c.b16 %v137, %v136
  %v172 = vunpack.c.l.b16 %v94
  %v173 = vunpack.c.h.b16 %v94
  %v174 = vunpack.c.l.b16 %v95
  %v175 = vunpack.c.l.b16 %v96
  %v176 = vunpack.c.h.b16 %v96
  %v177 = vunpack.c.l.b16 %v97
  %v178 = vunpack.c.l.b16 %v98
  %v179 = vunpack.c.h.b16 %v98
  %v180 = vunpack.c.l.b16 %v99
  %v181 = vunpack.c.l.b16 %v100
  %v182 = vunpack.c.h.b16 %v100
  %v183 = vunpack.c.l.b16 %v101
  %v184 = vunpack.c.l.b16 %v102
  %v185 = vunpack.c.h.b16 %v102
  %v186 = vunpack.c.l.b16 %v103
  %v187 = vunpack.c.l.b16 %v104
  %v188 = vunpack.c.h.b16 %v104
  %v189 = vunpack.c.l.b16 %v105
  %v190 = vunpack.c.l.b16 %v106
  %v191 = vunpack.c.h.b16 %v106
  %v192 = vunpack.c.l.b16 %v107
  %v193 = vunpack.c.l.b16 %v108
  %v194 = vunpack.c.h.b16 %v108
  %v195 = vunpack.c.l.b16 %v109
  %v196 = vunpack.c.l.b16 %v110
  %v197 = vunpack.c.h.b16 %v110
  %v198 = vunpack.c.l.b16 %v111
  %v199 = vunpack.c.l.b16 %v112
  %v200 = vunpack.c.h.b16 %v112
  %v201 = vunpack.c.l.b16 %v113
  %v202 = vunpack.c.l.b16 %v114
  %v203 = vunpack.c.h.b16 %v114
  %v204 = vunpack.c.l.b16 %v115
  %v205 = vunpack.c.l.b16 %v116
  %v206 = vunpack.c.h.b16 %v116
  %v207 = vunpack.c.l.b16 %v117
  %v208 = vunpack.c.l.b16 %v118
  %v209 = vunpack.c.h.b16 %v118
  %v210 = vunpack.c.l.b16 %v119
  %v211 = vunpack.c.l.b16 %v120
  %v212 = vunpack.c.h.b16 %v120
  %v213 = vunpack.c.l.b16 %v121
  %v214 = vunpack.c.l.b16 %v122
  %v215 = vunpack.c.h.b16 %v122
  %v216 = vunpack.c.l.b16 %v123
  %v217 = vunpack.c.l.b16 %v124
  %v218 = vunpack.c.h.b16 %v124
  %v219 = vunpack.c.l.b16 %v125
  %v220 = vpack.c.b16 %v175, %v172
  %v221 = vpack.c.b16 %v176, %v173
  %v222 = vpack.c.b16 %v177, %v174
  %v223 = vpack.c.b16 %v181, %v178
  %v224 = vpack.c.b16 %v182, %v179
  %v225 = vpack.c.b16 %v183, %v180
  %v226 = vpack.c.b16 %v187, %v184
  %v227 = vpack.c.b16 %v188, %v185
  %v228 = vpack.c.b16 %v189, %v186
  %v229 = vpack.c.b16 %v193, %v190
  %v230 = vpack.c.b16 %v194, %v191
  %v231 = vpack.c.b16 %v195, %v192
  %v232 = vpack.c.b16 %v199, %v196
  %v233 = vpack.c.b16 %v200, %v197
  %v234 = vpack.c.b16 %v201, %v198
  %v235 = vpack.c.b16 %v205, %v202
  %v236 = vpack.c.b16 %v206, %v203
  %v237 = vpack.c.b16 %v207, %v204
  %v238 = vpack.c.b16 %v211, %v208
  %v239 = vpack.c.b16 %v212, %v209
  %v240 = vpack.c.b16 %v213, %v210
  %v241 = vpack.c.b16 %v217, %v214
  %v242 = vpack.c.b16 %v218, %v215
  %v243 = vpack.c.b16 %v219, %v216
  %268 = vmatpush.bf16.msra.mxu0 %v241
  %269 = vmatpush.bf16.msra.mxu0 %v238
  %270 = vmatpush.bf16.msra.mxu0 %v235
  %271 = vmatpush.bf16.msra.mxu0 %v232
  %272 = vmatpush.bf16.msra.mxu0 %v229
  %273 = vmatpush.bf16.msra.mxu0 %v226
  %274 = vmatpush.bf16.msra.mxu0 %v223
  %275 = vmatpush.bf16.msra.mxu0 %v220
  %276 = vmatmul.bf16.gmra.mxu0 %v138
  %v277 = vpop.f32.mrf.mxu0
  %v278 = vadd.f32 %v128, %v277
  %v279 = vpop.f32.mrf.mxu0
  %v280 = vadd.f32 %v128, %v279
  %281 = vdwg.mxu0
  %282 = vmatpush.bf16.msra.mxu0 %v242
  %283 = vmatpush.bf16.msra.mxu0 %v239
  %284 = vmatpush.bf16.msra.mxu0 %v236
  %285 = vmatpush.bf16.msra.mxu0 %v233
  %286 = vmatpush.bf16.msra.mxu0 %v230
  %287 = vmatpush.bf16.msra.mxu0 %v227
  %288 = vmatpush.bf16.msra.mxu0 %v224
  %289 = vmatpush.bf16.msra.mxu0 %v221
  %290 = vmatmul.bf16.gmra.mxu0 %v138
  %v291 = vpop.f32.mrf.mxu0
  %v292 = vadd.f32 %v129, %v291
  %v293 = vpop.f32.mrf.mxu0
  %v294 = vadd.f32 %v129, %v293
  %295 = vdwg.mxu0
  %296 = vmatpush.bf16.msra.mxu0 %v243
  %297 = vmatpush.bf16.msra.mxu0 %v240
  %298 = vmatpush.bf16.msra.mxu0 %v237
  %299 = vmatpush.bf16.msra.mxu0 %v234
  %300 = vmatpush.bf16.msra.mxu0 %v231
  %301 = vmatpush.bf16.msra.mxu0 %v228
  %302 = vmatpush.bf16.msra.mxu0 %v225
  %303 = vmatpush.bf16.msra.mxu0 %v222
  %304 = vmatmul.bf16.gmra.mxu0 %v138
  %v305 = vpop.f32.mrf.mxu0
  %v306 = vadd.f32 %v130, %v305
  %v307 = vpop.f32.mrf.mxu0
  %v308 = vadd.f32 %v130, %v307
  %309 = vdwg.mxu0
  %v310 = vpack.c.bf16 %v292, %v278
  %v311 = vpack.c.bf16 %v306, %v306
  %v312 = vpack.c.bf16 %v294, %v280
  %v313 = vpack.c.bf16 %v308, %v308
  %314 = vst [vmem:[%s5] sm:$0xff] %v310
  %315 = vst [vmem:[%s5 + $0x8] sm:$0xf] %v311
  %316 = vst [vmem:[%s5 + $0xc] sm:$0x11] %v312
  %317 = vst [vmem:[%s5 + $0x14] sm:$0x1] %v313
  // Predicated region
  $region26: #{dinov2_forward.11} parent=0 // pred_check
    _
  $region27: #{dinov2_forward.11} parent=0 // pred_check_branch
    %319 = sbr.rel (0) target = $region29
  $region28: #{dinov2_forward.11} parent=0 // pred_region
    _
  $region29: #{dinov2_forward.11} parent=0 // pred_fallthru
    _
  // Predicated region
  $region30: #{dinov2_forward.11} parent=0 // pred_check
    _
  $region31: #{dinov2_forward.11} parent=0 // pred_check_branch
    %321 = sbr.rel (0) target = $region33
  $region32: #{dinov2_forward.11} parent=0 // pred_region
    _
  $region33: #{dinov2_forward.11} parent=0 // pred_fallthru
    _

// kernel: dinov2_forward.13
$region0: #{dinov2_forward.13}
  #allocation0 [shape = 'u32[]', space=smem, size = 0x4, offset = 0x4, fixed_abs, tag = 'smem constant byte address 0x4 - core index']
  #allocation1 [shape = 'u32[72,128]{1,0:T(1,128)}', space=vmem, size = 0x9000, scoped, tag = 'internal scratch']
  %s0 = inlined_call_operand.vmem [shape: bf16[10,128], index: 0, kind: input, shape index: {}]
  %s1 = inlined_call_operand.vmem [shape: bf16[128,128], index: 1, kind: input, shape index: {}]
  %s2 = inlined_call_operand.vmem [shape: f32[1,128], index: 2, kind: input, shape index: {}]
  %s3 = inlined_call_operand.vmem [shape: f32[1,128], index: 3, kind: input, shape index: {}]
  %s4 = inlined_call_operand.vmem [shape: f32[10,128], index: 4, kind: input, shape index: {}]
  %s5 = inlined_call_operand.vmem [shape: f32[10,128], index: 5, kind: output, shape index: {}]
  %s6 = sld [smem:[#allocation0]]
  $region30: #{dinov2_forward.13} parent=0
    _
  %s8 = ssub.s32 1, %s6
  %s9 = scalar_select 0, %s8, %s6
  // Predicated region
  $region2: #{dinov2_forward.13} parent=0 // pred_check
    _
  $region3: #{dinov2_forward.13} parent=0 // pred_check_branch
    %11 = sbr.rel (0) target = $region5
  $region4: #{dinov2_forward.13} parent=0 // pred_region
    _
  $region5: #{dinov2_forward.13} parent=0 // pred_fallthru
    _
  // Predicated region
  $region6: #{dinov2_forward.13} parent=0 // pred_check
    _
  $region7: #{dinov2_forward.13} parent=0 // pred_check_branch
    %13 = sbr.rel (0) target = $region9
  $region8: #{dinov2_forward.13} parent=0 // pred_region
    _
  $region9: #{dinov2_forward.13} parent=0 // pred_fallthru
    _
  // Predicated region
  $region10: #{dinov2_forward.13} parent=0 // pred_check
    _
  $region11: #{dinov2_forward.13} parent=0 // pred_check_branch
    %15 = sbr.rel (0) target = $region13
  $region12: #{dinov2_forward.13} parent=0 // pred_region
    _
  $region13: #{dinov2_forward.13} parent=0 // pred_fallthru
    _
  // Predicated region
  $region14: #{dinov2_forward.13} parent=0 // pred_check
    _
  $region15: #{dinov2_forward.13} parent=0 // pred_check_branch
    %17 = sbr.rel (0) target = $region17
  $region16: #{dinov2_forward.13} parent=0 // pred_region
    _
  $region17: #{dinov2_forward.13} parent=0 // pred_fallthru
    _
  // Predicated region
  $region18: #{dinov2_forward.13} parent=0 // pred_check
    _
  $region19: #{dinov2_forward.13} parent=0 // pred_check_branch
    %19 = sbr.rel (0) target = $region21
  $region20: #{dinov2_forward.13} parent=0 // pred_region
    _
  $region21: #{dinov2_forward.13} parent=0 // pred_fallthru
    _
  %v20 = vld [vmem:[%s0] sm:$0xf]
  %v21 = vld [vmem:[%s0 + $0x4] sm:$0x1]
  %v22 = vld [vmem:[%s1] sm:$0xf]
  %v23 = vld [vmem:[%s1 + $0x4] sm:$0xf]
  %v24 = vld [vmem:[%s1 + $0x8] sm:$0xf]
  %v25 = vld [vmem:[%s1 + $0xc] sm:$0xf]
  %v26 = vld [vmem:[%s1 + $0x10] sm:$0xf]
  %v27 = vld [vmem:[%s1 + $0x14] sm:$0xf]
  %v28 = vld [vmem:[%s1 + $0x18] sm:$0xf]
  %v29 = vld [vmem:[%s1 + $0x1c] sm:$0xf]
  %v30 = vld [vmem:[%s1 + $0x20] sm:$0xf]
  %v31 = vld [vmem:[%s1 + $0x24] sm:$0xf]
  %v32 = vld [vmem:[%s1 + $0x28] sm:$0xf]
  %v33 = vld [vmem:[%s1 + $0x2c] sm:$0xf]
  %v34 = vld [vmem:[%s1 + $0x30] sm:$0xf]
  %v35 = vld [vmem:[%s1 + $0x34] sm:$0xf]
  %v36 = vld [vmem:[%s1 + $0x38] sm:$0xf]
  %v37 = vld [vmem:[%s1 + $0x3c] sm:$0xf]
  %v38 = vld [vmem:[%s2] sm:$0x1]
  %v40 = vperm.slane %v38, 0
  %v44 = vunpack.c.l.b16 %v20
  %v45 = vunpack.c.l.b16 %v21
  %v46 = vpack.c.b16 %v45, %v44
  %v64 = vunpack.c.l.b16 %v22
  %v65 = vunpack.c.l.b16 %v23
  %v66 = vunpack.c.l.b16 %v24
  %v67 = vunpack.c.l.b16 %v25
  %v68 = vunpack.c.l.b16 %v26
  %v69 = vunpack.c.l.b16 %v27
  %v70 = vunpack.c.l.b16 %v28
  %v71 = vunpack.c.l.b16 %v29
  %v72 = vunpack.c.l.b16 %v30
  %v73 = vunpack.c.l.b16 %v31
  %v74 = vunpack.c.l.b16 %v32
  %v75 = vunpack.c.l.b16 %v33
  %v76 = vunpack.c.l.b16 %v34
  %v77 = vunpack.c.l.b16 %v35
  %v78 = vunpack.c.l.b16 %v36
  %v79 = vunpack.c.l.b16 %v37
  %v80 = vpack.c.b16 %v65, %v64
  %v81 = vpack.c.b16 %v67, %v66
  %v82 = vpack.c.b16 %v69, %v68
  %v83 = vpack.c.b16 %v71, %v70
  %v84 = vpack.c.b16 %v73, %v72
  %v85 = vpack.c.b16 %v75, %v74
  %v86 = vpack.c.b16 %v77, %v76
  %v87 = vpack.c.b16 %v79, %v78
  %96 = vmatpush.bf16.msra.mxu0 %v87
  %97 = vmatpush.bf16.msra.mxu0 %v86
  %98 = vmatpush.bf16.msra.mxu0 %v85
  %99 = vmatpush.bf16.msra.mxu0 %v84
  %100 = vmatpush.bf16.msra.mxu0 %v83
  %101 = vmatpush.bf16.msra.mxu0 %v82
  %102 = vmatpush.bf16.msra.mxu0 %v81
  %103 = vmatpush.bf16.msra.mxu0 %v80
  %104 = vmatmul.bf16.gmra.mxu0 %v46
  %v105 = vpop.f32.mrf.mxu0
  %v106 = vadd.f32 %v40, %v105
  %v107 = vpop.f32.mrf.mxu0
  %v108 = vadd.f32 %v40, %v107
  %109 = vdwg.mxu0
  %v110 = vld [vmem:[%s4] sm:$0xff]
  %v111 = vld [vmem:[%s4 + $0x8] sm:$0x3]
  %v112 = vld [vmem:[%s3] sm:$0x1]
  %v114 = vperm.slane %v112, 0
  %v116 = vmul.f32 %v106, %v114
  %v117 = vmul.f32 %v108, %v114
  %v118 = vadd.f32 %v110, %v116
  %v119 = vadd.f32 %v111, %v117
  %120 = vst [vmem:[%s5] sm:$0xff] %v118
  %121 = vst [vmem:[%s5 + $0x8] sm:$0x3] %v119
  // Predicated region
  $region22: #{dinov2_forward.13} parent=0 // pred_check
    _
  $region23: #{dinov2_forward.13} parent=0 // pred_check_branch
    %123 = sbr.rel (0) target = $region25
  $region24: #{dinov2_forward.13} parent=0 // pred_region
    _
  $region25: #{dinov2_forward.13} parent=0 // pred_fallthru
    _
  // Predicated region
  $region26: #{dinov2_forward.13} parent=0 // pred_check
    _
  $region27: #{dinov2_forward.13} parent=0 // pred_check_branch
    %125 = sbr.rel (0) target = $region29
  $region28: #{dinov2_forward.13} parent=0 // pred_region
    _
  $region29: #{dinov2_forward.13} parent=0 // pred_fallthru
    _

// kernel: dinov2_forward.19
$region0: #{dinov2_forward.19}
  #allocation0 [shape = 'u32[]', space=smem, size = 0x4, offset = 0x4, fixed_abs, tag = 'smem constant byte address 0x4 - core index']
  #allocation1 [shape = 'u32[72,128]{1,0:T(1,128)}', space=vmem, size = 0x9000, scoped, tag = 'internal scratch']
  %s0 = inlined_call_operand.vmem [shape: f32[10,128], index: 0, kind: input, shape index: {}]
  %s1 = inlined_call_operand.vmem [shape: f32[1,128], index: 1, kind: input, shape index: {}]
  %s2 = inlined_call_operand.vmem [shape: f32[1,128], index: 2, kind: input, shape index: {}]
  %s3 = inlined_call_operand.vmem [shape: f32[10,128], index: 3, kind: output, shape index: {}]
  %s4 = sld [smem:[#allocation0]]
  $region22: #{dinov2_forward.19} parent=0
    _
  %s6 = ssub.s32 1, %s4
  %s7 = scalar_select 0, %s6, %s4
  // Predicated region
  $region2: #{dinov2_forward.19} parent=0 // pred_check
    _
  $region3: #{dinov2_forward.19} parent=0 // pred_check_branch
    %9 = sbr.rel (0) target = $region5
  $region4: #{dinov2_forward.19} parent=0 // pred_region
    _
  $region5: #{dinov2_forward.19} parent=0 // pred_fallthru
    _
  // Predicated region
  $region6: #{dinov2_forward.19} parent=0 // pred_check
    _
  $region7: #{dinov2_forward.19} parent=0 // pred_check_branch
    %11 = sbr.rel (0) target = $region9
  $region8: #{dinov2_forward.19} parent=0 // pred_region
    _
  $region9: #{dinov2_forward.19} parent=0 // pred_fallthru
    _
  // Predicated region
  $region10: #{dinov2_forward.19} parent=0 // pred_check
    _
  $region11: #{dinov2_forward.19} parent=0 // pred_check_branch
    %13 = sbr.rel (0) target = $region13
  $region12: #{dinov2_forward.19} parent=0 // pred_region
    _
  $region13: #{dinov2_forward.19} parent=0 // pred_fallthru
    _
  %v14 = vld [vmem:[%s0] sm:$0xff]
  %v15 = vld [vmem:[%s0 + $0x8] sm:$0x3]
  %16 = vadd.xlane.f32.xlu0 %v14
  %v17 = vpop.xlane.xlu0 %16
  %vm18 = vcmask 1041408
  %v19 = vsel %vm18, %v15, 0.0
  %20 = vadd.xlane.f32.xlu0 %v19
  %v21 = vpop.xlane.xlu0 %20
  %v22 = vrcp.pop 128.0
  %v23 = vmul.f32 128.0, %v22
  %v24 = vsub.f32 1.0, %v23
  %v25 = vmul.f32 %v22, %v24
  %v26 = vadd.f32 %v22, %v25
  %vm27 = vweird.f32 %v22
  %v28 = vsel %vm27, %v22, %v26
  %v29 = vmul.f32 %v17, %v28
  %v30 = vmul.f32 %v21, %v28
  %v31 = vsub.f32 %v14, %v29
  %v32 = vsub.f32 %v15, %v30
  %v33 = vmul.f32 %v31, %v31
  %v34 = vmul.f32 %v32, %v32
  %35 = vadd.xlane.f32.xlu0 %v33
  %v36 = vpop.xlane.xlu0 %35
  %v37 = vsel %vm18, %v34, 0.0
  %38 = vadd.xlane.f32.xlu0 %v37
  %v39 = vpop.xlane.xlu0 %38
  %v40 = vmul.f32 %v36, %v28
  %v41 = vmul.f32 %v39, %v28
  %v42 = vadd.f32 %v40, 1e-06
  %v43 = vadd.f32 %v41, 1e-06
  %v44 = vrsqrt.pop %v42
  %v45 = vmul.f32 %v44, %v42
  %v46 = vmul.f32 %v45, %v44
  %v47 = vmul.f32 0.5, %v46
  %v48 = vsub.f32 1.5, %v47
  %v49 = vmul.f32 %v44, %v48
  %vm50 = vweird.f32 %v42
  %vm51 = vweird.f32 %v44
  %vm52 = vmor %vm50, %vm51
  %v53 = vsel %vm52, %v44, %v49
  %v54 = vrsqrt.pop %v43
  %v55 = vmul.f32 %v54, %v43
  %v56 = vmul.f32 %v55, %v54
  %v57 = vmul.f32 0.5, %v56
  %v58 = vsub.f32 1.5, %v57
  %v59 = vmul.f32 %v54, %v58
  %vm60 = vweird.f32 %v43
  %vm61 = vweird.f32 %v54
  %vm62 = vmor %vm60, %vm61
  %v63 = vsel %vm62, %v54, %v59
  %v64 = vmul.f32 %v31, %v53
  %v65 = vmul.f32 %v32, %v63
  %v66 = vld [vmem:[%s1] sm:$0x1]
  %v68 = vperm.slane %v66, 0
  %v70 = vmul.f32 %v64, %v68
  %v71 = vmul.f32 %v65, %v68
  %v72 = vld [vmem:[%s2] sm:$0x1]
  %v74 = vperm.slane %v72, 0
  %v76 = vadd.f32 %v70, %v74
  %v77 = vadd.f32 %v71, %v74
  %78 = vst [vmem:[%s3] sm:$0xff] %v76
  %79 = vst [vmem:[%s3 + $0x8] sm:$0x3] %v77
  // Predicated region
  $region14: #{dinov2_forward.19} parent=0 // pred_check
    _
  $region15: #{dinov2_forward.19} parent=0 // pred_check_branch
    %81 = sbr.rel (0) target = $region17
  $region16: #{dinov2_forward.19} parent=0 // pred_region
    _
  $region17: #{dinov2_forward.19} parent=0 // pred_fallthru
    _
  // Predicated region
  $region18: #{dinov2_forward.19} parent=0 // pred_check
    _
  $region19: #{dinov2_forward.19} parent=0 // pred_check_branch
    %83 = sbr.rel (0) target = $region21
  $region20: #{dinov2_forward.19} parent=0 // pred_region
    _
  $region21: #{dinov2_forward.19} parent=0 // pred_fallthru
    _

// kernel: dinov2_forward.14
$region0: #{dinov2_forward.14}
  #allocation0 [shape = 'u32[]', space=smem, size = 0x4, offset = 0x4, fixed_abs, tag = 'smem constant byte address 0x4 - core index']
  #allocation1 [shape = 'u32[72,128]{1,0:T(1,128)}', space=vmem, size = 0x9000, scoped, tag = 'internal scratch']
  #allocation2 [shape = 'f32[10,128]{1,0:T(8,128)}', space=vmem, size = 0x2000, scoped, tag = 'scratch operand']
  #allocation3 [shape = 'bf16[10,128]{1,0:T(8,128)(2,1)}', space=vmem, size = 0x1000, scoped, tag = 'scratch operand']
  %s0 = inlined_call_operand.vmem [shape: f32[10,128], index: 0, kind: input, shape index: {}]
  %s1 = inlined_call_operand.vmem [shape: f32[1,128], index: 1, kind: input, shape index: {}]
  %s2 = inlined_call_operand.vmem [shape: f32[1,128], index: 2, kind: input, shape index: {}]
  %s3 = inlined_call_operand.vmem [shape: bf16[128,344], index: 3, kind: input, shape index: {}]
  %s4 = inlined_call_operand.vmem [shape: f32[1,344], index: 4, kind: input, shape index: {}]
  %s5 = inlined_call_operand.vmem [shape: bf16[128,344], index: 5, kind: input, shape index: {}]
  %s6 = inlined_call_operand.vmem [shape: f32[1,344], index: 6, kind: input, shape index: {}]
  %s7 = inlined_call_operand.vmem [shape: bf16[344,128], index: 7, kind: input, shape index: {}]
  %s8 = inlined_call_operand.vmem [shape: f32[1,128], index: 8, kind: input, shape index: {}]
  %s9 = inlined_call_operand.vmem [shape: f32[1,128], index: 9, kind: input, shape index: {}]
  %s10 = inlined_call_operand.vmem [shape: f32[10,128], index: 10, kind: output, shape index: {}]
  %s11 = sld [smem:[#allocation0]]
  $region58: #{dinov2_forward.14} parent=0
    _
  %s13 = ssub.s32 1, %s11
  %s14 = scalar_select 0, %s13, %s11
  // Predicated region
  $region2: #{dinov2_forward.14} parent=0 // pred_check
    _
  $region3: #{dinov2_forward.14} parent=0 // pred_check_branch
    %16 = sbr.rel (0) target = $region5
  $region4: #{dinov2_forward.14} parent=0 // pred_region
    _
  $region5: #{dinov2_forward.14} parent=0 // pred_fallthru
    _
  // Predicated region
  $region6: #{dinov2_forward.14} parent=0 // pred_check
    _
  $region7: #{dinov2_forward.14} parent=0 // pred_check_branch
    %18 = sbr.rel (0) target = $region9
  $region8: #{dinov2_forward.14} parent=0 // pred_region
    _
  $region9: #{dinov2_forward.14} parent=0 // pred_fallthru
    _
  // Predicated region
  $region10: #{dinov2_forward.14} parent=0 // pred_check
    _
  $region11: #{dinov2_forward.14} parent=0 // pred_check_branch
    %20 = sbr.rel (0) target = $region13
  $region12: #{dinov2_forward.14} parent=0 // pred_region
    _
  $region13: #{dinov2_forward.14} parent=0 // pred_fallthru
    _
  // Predicated region
  $region14: #{dinov2_forward.14} parent=0 // pred_check
    _
  $region15: #{dinov2_forward.14} parent=0 // pred_check_branch
    %22 = sbr.rel (0) target = $region17
  $region16: #{dinov2_forward.14} parent=0 // pred_region
    _
  $region17: #{dinov2_forward.14} parent=0 // pred_fallthru
    _
  // Predicated region
  $region18: #{dinov2_forward.14} parent=0 // pred_check
    _
  $region19: #{dinov2_forward.14} parent=0 // pred_check_branch
    %24 = sbr.rel (0) target = $region21
  $region20: #{dinov2_forward.14} parent=0 // pred_region
    _
  $region21: #{dinov2_forward.14} parent=0 // pred_fallthru
    _
  // Predicated region
  $region22: #{dinov2_forward.14} parent=0 // pred_check
    _
  $region23: #{dinov2_forward.14} parent=0 // pred_check_branch
    %26 = sbr.rel (0) target = $region25
  $region24: #{dinov2_forward.14} parent=0 // pred_region
    _
  $region25: #{dinov2_forward.14} parent=0 // pred_fallthru
    _
  // Predicated region
  $region26: #{dinov2_forward.14} parent=0 // pred_check
    _
  $region27: #{dinov2_forward.14} parent=0 // pred_check_branch
    %28 = sbr.rel (0) target = $region29
  $region28: #{dinov2_forward.14} parent=0 // pred_region
    _
  $region29: #{dinov2_forward.14} parent=0 // pred_fallthru
    _
  // Predicated region
  $region30: #{dinov2_forward.14} parent=0 // pred_check
    _
  $region31: #{dinov2_forward.14} parent=0 // pred_check_branch
    %30 = sbr.rel (0) target = $region33
  $region32: #{dinov2_forward.14} parent=0 // pred_region
    _
  $region33: #{dinov2_forward.14} parent=0 // pred_fallthru
    _
  // Predicated region
  $region34: #{dinov2_forward.14} parent=0 // pred_check
    _
  $region35: #{dinov2_forward.14} parent=0 // pred_check_branch
    %32 = sbr.rel (0) target = $region37
  $region36: #{dinov2_forward.14} parent=0 // pred_region
    _
  $region37: #{dinov2_forward.14} parent=0 // pred_fallthru
    _
  // Predicated region
  $region38: #{dinov2_forward.14} parent=0 // pred_check
    _
  $region39: #{dinov2_forward.14} parent=0 // pred_check_branch
    %34 = sbr.rel (0) target = $region41
  $region40: #{dinov2_forward.14} parent=0 // pred_region
    _
  $region41: #{dinov2_forward.14} parent=0 // pred_fallthru
    _
  %p36 = scmp.eq.s32.totalorder 0, 0
  // Predicated region
  $region42: #{dinov2_forward.14} parent=0 // pred_check
    %p37 = pneg %p36
  $region43: #{dinov2_forward.14} parent=0 // pred_check_branch
    %39 = sbr.rel (%p37) target = $region45
  $region44: #{dinov2_forward.14} parent=0 // pred_region
    %v40 = vld [vmem:[%s0] sm:$0xff]
    %v41 = vld [vmem:[%s0 + $0x8] sm:$0x3]
    %42 = vadd.xlane.f32.xlu0 %v40
    %v43 = vpop.xlane.xlu0 %42
    %vm44 = vcmask 1041408
    %v45 = vsel %vm44, %v41, 0.0
    %46 = vadd.xlane.f32.xlu0 %v45
    %v47 = vpop.xlane.xlu0 %46
    %v48 = vrcp.pop 128.0
    %v49 = vmul.f32 128.0, %v48
    %v50 = vsub.f32 1.0, %v49
    %v51 = vmul.f32 %v48, %v50
    %v52 = vadd.f32 %v48, %v51
    %vm53 = vweird.f32 %v48
    %v54 = vsel %vm53, %v48, %v52
    %v55 = vmul.f32 %v43, %v54
    %v56 = vmul.f32 %v47, %v54
    %v57 = vsub.f32 %v40, %v55
    %v58 = vsub.f32 %v41, %v56
    %v59 = vmul.f32 %v57, %v57
    %v60 = vmul.f32 %v58, %v58
    %61 = vadd.xlane.f32.xlu0 %v59
    %v62 = vpop.xlane.xlu0 %61
    %v63 = vsel %vm44, %v60, 0.0
    %64 = vadd.xlane.f32.xlu0 %v63
    %v65 = vpop.xlane.xlu0 %64
    %v66 = vmul.f32 %v62, %v54
    %v67 = vmul.f32 %v65, %v54
    %v68 = vadd.f32 %v66, 1e-06
    %v69 = vadd.f32 %v67, 1e-06
    %v70 = vrsqrt.pop %v68
    %v71 = vmul.f32 %v70, %v68
    %v72 = vmul.f32 %v71, %v70
    %v73 = vmul.f32 0.5, %v72
    %v74 = vsub.f32 1.5, %v73
    %v75 = vmul.f32 %v70, %v74
    %vm76 = vweird.f32 %v68
    %vm77 = vweird.f32 %v70
    %vm78 = vmor %vm76, %vm77
    %v79 = vsel %vm78, %v70, %v75
    %v80 = vrsqrt.pop %v69
    %v81 = vmul.f32 %v80, %v69
    %v82 = vmul.f32 %v81, %v80
    %v83 = vmul.f32 0.5, %v82
    %v84 = vsub.f32 1.5, %v83
    %v85 = vmul.f32 %v80, %v84
    %vm86 = vweird.f32 %v69
    %vm87 = vweird.f32 %v80
    %vm88 = vmor %vm86, %vm87
    %v89 = vsel %vm88, %v80, %v85
    %v90 = vmul.f32 %v57, %v79
    %v91 = vmul.f32 %v58, %v89
    %v92 = vld [vmem:[%s1] sm:$0x1]
    %v94 = vperm.slane %v92, 0
    %v96 = vmul.f32 %v90, %v94
    %v97 = vmul.f32 %v91, %v94
    %v98 = vld [vmem:[%s2] sm:$0x1]
    %v100 = vperm.slane %v98, 0
    %v102 = vadd.f32 %v96, %v100
    %v103 = vadd.f32 %v97, %v100
    %v104 = vpack.c.bf16 %v102, %v102
    %v105 = vpack.c.bf16 %v103, %v103
    %106 = vst [vmem:[#allocation3] sm:$0xf] %v104
    %107 = vst [vmem:[#allocation3 + $0x4] sm:$0x1] %v105
    %108 = vst [vmem:[#allocation2] sm:$0xff] 0.0
    %109 = vst [vmem:[#allocation2 + $0x8] sm:$0x3] 0.0
  $region45: #{dinov2_forward.14} parent=0 // pred_fallthru
    _
  %v110 = vld [vmem:[#allocation3] sm:$0xf]
  %v111 = vld [vmem:[#allocation3 + $0x4] sm:$0x1]
  %v112 = vld [vmem:[%s3] sm:$0xff]
  %v113 = vld [vmem:[%s3 + $0x8] sm:$0xf]
  %v114 = vld [vmem:[%s3 + $0xc] sm:$0xff]
  %v115 = vld [vmem:[%s3 + $0x14] sm:$0xf]
  %v116 = vld [vmem:[%s3 + $0x18] sm:$0xff]
  %v117 = vld [vmem:[%s3 + $0x20] sm:$0xf]
  %v118 = vld [vmem:[%s3 + $0x24] sm:$0xff]
  %v119 = vld [vmem:[%s3 + $0x2c] sm:$0xf]
  %v120 = vld [vmem:[%s3 + $0x30] sm:$0xff]
  %v121 = vld [vmem:[%s3 + $0x38] sm:$0xf]
  %v122 = vld [vmem:[%s3 + $0x3c] sm:$0xff]
  %v123 = vld [vmem:[%s3 + $0x44] sm:$0xf]
  %v124 = vld [vmem:[%s3 + $0x48] sm:$0xff]
  %v125 = vld [vmem:[%s3 + $0x50] sm:$0xf]
  %v126 = vld [vmem:[%s3 + $0x54] sm:$0xff]
  %v127 = vld [vmem:[%s3 + $0x5c] sm:$0xf]
  %v128 = vld [vmem:[%s3 + $0x60] sm:$0xff]
  %v129 = vld [vmem:[%s3 + $0x68] sm:$0xf]
  %v130 = vld [vmem:[%s3 + $0x6c] sm:$0xff]
  %v131 = vld [vmem:[%s3 + $0x74] sm:$0xf]
  %v132 = vld [vmem:[%s3 + $0x78] sm:$0xff]
  %v133 = vld [vmem:[%s3 + $0x80] sm:$0xf]
  %v134 = vld [vmem:[%s3 + $0x84] sm:$0xff]
  %v135 = vld [vmem:[%s3 + $0x8c] sm:$0xf]
  %v136 = vld [vmem:[%s3 + $0x90] sm:$0xff]
  %v137 = vld [vmem:[%s3 + $0x98] sm:$0xf]
  %v138 = vld [vmem:[%s3 + $0x9c] sm:$0xff]
  %v139 = vld [vmem:[%s3 + $0xa4] sm:$0xf]
  %v140 = vld [vmem:[%s3 + $0xa8] sm:$0xff]
  %v141 = vld [vmem:[%s3 + $0xb0] sm:$0xf]
  %v142 = vld [vmem:[%s3 + $0xb4] sm:$0xff]
  %v143 = vld [vmem:[%s3 + $0xbc] sm:$0xf]
  %v144 = vld [vmem:[%s4] sm:$0x7]
  %v146 = vperm.slane %v144, 0
  %v147 = vperm.slane %v144, 1
  %v148 = vperm.slane %v144, 2
  %v154 = vunpack.c.l.b16 %v110
  %v155 = vunpack.c.l.b16 %v111
  %v156 = vpack.c.b16 %v155, %v154
  %v190 = vunpack.c.l.b16 %v112
  %v191 = vunpack.c.h.b16 %v112
  %v192 = vunpack.c.l.b16 %v113
  %v193 = vunpack.c.l.b16 %v114
  %v194 = vunpack.c.h.b16 %v114
  %v195 = vunpack.c.l.b16 %v115
  %v196 = vunpack.c.l.b16 %v116
  %v197 = vunpack.c.h.b16 %v116
  %v198 = vunpack.c.l.b16 %v117
  %v199 = vunpack.c.l.b16 %v118
  %v200 = vunpack.c.h.b16 %v118
  %v201 = vunpack.c.l.b16 %v119
  %v202 = vunpack.c.l.b16 %v120
  %v203 = vunpack.c.h.b16 %v120
  %v204 = vunpack.c.l.b16 %v121
  %v205 = vunpack.c.l.b16 %v122
  %v206 = vunpack.c.h.b16 %v122
  %v207 = vunpack.c.l.b16 %v123
  %v208 = vunpack.c.l.b16 %v124
  %v209 = vunpack.c.h.b16 %v124
  %v210 = vunpack.c.l.b16 %v125
  %v211 = vunpack.c.l.b16 %v126
  %v212 = vunpack.c.h.b16 %v126
  %v213 = vunpack.c.l.b16 %v127
  %v214 = vunpack.c.l.b16 %v128
  %v215 = vunpack.c.h.b16 %v128
  %v216 = vunpack.c.l.b16 %v129
  %v217 = vunpack.c.l.b16 %v130
  %v218 = vunpack.c.h.b16 %v130
  %v219 = vunpack.c.l.b16 %v131
  %v220 = vunpack.c.l.b16 %v132
  %v221 = vunpack.c.h.b16 %v132
  %v222 = vunpack.c.l.b16 %v133
  %v223 = vunpack.c.l.b16 %v134
  %v224 = vunpack.c.h.b16 %v134
  %v225 = vunpack.c.l.b16 %v135
  %v226 = vunpack.c.l.b16 %v136
  %v227 = vunpack.c.h.b16 %v136
  %v228 = vunpack.c.l.b16 %v137
  %v229 = vunpack.c.l.b16 %v138
  %v230 = vunpack.c.h.b16 %v138
  %v231 = vunpack.c.l.b16 %v139
  %v232 = vunpack.c.l.b16 %v140
  %v233 = vunpack.c.h.b16 %v140
  %v234 = vunpack.c.l.b16 %v141
  %v235 = vunpack.c.l.b16 %v142
  %v236 = vunpack.c.h.b16 %v142
  %v237 = vunpack.c.l.b16 %v143
  %v238 = vpack.c.b16 %v193, %v190
  %v239 = vpack.c.b16 %v194, %v191
  %v240 = vpack.c.b16 %v195, %v192
  %v241 = vpack.c.b16 %v199, %v196
  %v242 = vpack.c.b16 %v200, %v197
  %v243 = vpack.c.b16 %v201, %v198
  %v244 = vpack.c.b16 %v205, %v202
  %v245 = vpack.c.b16 %v206, %v203
  %v246 = vpack.c.b16 %v207, %v204
  %v247 = vpack.c.b16 %v211, %v208
  %v248 = vpack.c.b16 %v212, %v209
  %v249 = vpack.c.b16 %v213, %v210
  %v250 = vpack.c.b16 %v217, %v214
  %v251 = vpack.c.b16 %v218, %v215
  %v252 = vpack.c.b16 %v219, %v216
  %v253 = vpack.c.b16 %v223, %v220
  %v254 = vpack.c.b16 %v224, %v221
  %v255 = vpack.c.b16 %v225, %v222
  %v256 = vpack.c.b16 %v229, %v226
  %v257 = vpack.c.b16 %v230, %v227
  %v258 = vpack.c.b16 %v231, %v228
  %v259 = vpack.c.b16 %v235, %v232
  %v260 = vpack.c.b16 %v236, %v233
  %v261 = vpack.c.b16 %v237, %v234
  %286 = vmatpush.bf16.msra.mxu0 %v259
  %287 = vmatpush.bf16.msra.mxu0 %v256
  %288 = vmatpush.bf16.msra.mxu0 %v253
  %289 = vmatpush.bf16.msra.mxu0 %v250
  %290 = vmatpush.bf16.msra.mxu0 %v247
  %291 = vmatpush.bf16.msra.mxu0 %v244
  %292 = vmatpush.bf16.msra.mxu0 %v241
  %293 = vmatpush.bf16.msra.mxu0 %v238
  %294 = vmatmul.bf16.gmra.mxu0 %v156
  %v295 = vpop.f32.mrf.mxu0
  %v296 = vadd.f32 %v146, %v295
  %v297 = vpop.f32.mrf.mxu0
  %v298 = vadd.f32 %v146, %v297
  %299 = vdwg.mxu0
  %300 = vmatpush.bf16.msra.mxu0 %v260
  %301 = vmatpush.bf16.msra.mxu0 %v257
  %302 = vmatpush.bf16.msra.mxu0 %v254
  %303 = vmatpush.bf16.msra.mxu0 %v251
  %304 = vmatpush.bf16.msra.mxu0 %v248
  %305 = vmatpush.bf16.msra.mxu0 %v245
  %306 = vmatpush.bf16.msra.mxu0 %v242
  %307 = vmatpush.bf16.msra.mxu0 %v239
  %308 = vmatmul.bf16.gmra.mxu0 %v156
  %v309 = vpop.f32.mrf.mxu0
  %v310 = vadd.f32 %v147, %v309
  %v311 = vpop.f32.mrf.mxu0
  %v312 = vadd.f32 %v147, %v311
  %313 = vdwg.mxu0
  %314 = vmatpush.bf16.msra.mxu0 %v261
  %315 = vmatpush.bf16.msra.mxu0 %v258
  %316 = vmatpush.bf16.msra.mxu0 %v255
  %317 = vmatpush.bf16.msra.mxu0 %v252
  %318 = vmatpush.bf16.msra.mxu0 %v249
  %319 = vmatpush.bf16.msra.mxu0 %v246
  %320 = vmatpush.bf16.msra.mxu0 %v243
  %321 = vmatpush.bf16.msra.mxu0 %v240
  %322 = vmatmul.bf16.gmra.mxu0 %v156
  %v323 = vpop.f32.mrf.mxu0
  %v324 = vadd.f32 %v148, %v323
  %v325 = vpop.f32.mrf.mxu0
  %v326 = vadd.f32 %v148, %v325
  %327 = vdwg.mxu0
  %v328 = vld [vmem:[%s5] sm:$0xff]
  %v329 = vld [vmem:[%s5 + $0x8] sm:$0xf]
  %v330 = vld [vmem:[%s5 + $0xc] sm:$0xff]
  %v331 = vld [vmem:[%s5 + $0x14] sm:$0xf]
  %v332 = vld [vmem:[%s5 + $0x18] sm:$0xff]
  %v333 = vld [vmem:[%s5 + $0x20] sm:$0xf]
  %v334 = vld [vmem:[%s5 + $0x24] sm:$0xff]
  %v335 = vld [vmem:[%s5 + $0x2c] sm:$0xf]
  %v336 = vld [vmem:[%s5 + $0x30] sm:$0xff]
  %v337 = vld [vmem:[%s5 + $0x38] sm:$0xf]
  %v338 = vld [vmem:[%s5 + $0x3c] sm:$0xff]
  %v339 = vld [vmem:[%s5 + $0x44] sm:$0xf]
  %v340 = vld [vmem:[%s5 + $0x48] sm:$0xff]
  %v341 = vld [vmem:[%s5 + $0x50] sm:$0xf]
  %v342 = vld [vmem:[%s5 + $0x54] sm:$0xff]
  %v343 = vld [vmem:[%s5 + $0x5c] sm:$0xf]
  %v344 = vld [vmem:[%s5 + $0x60] sm:$0xff]
  %v345 = vld [vmem:[%s5 + $0x68] sm:$0xf]
  %v346 = vld [vmem:[%s5 + $0x6c] sm:$0xff]
  %v347 = vld [vmem:[%s5 + $0x74] sm:$0xf]
  %v348 = vld [vmem:[%s5 + $0x78] sm:$0xff]
  %v349 = vld [vmem:[%s5 + $0x80] sm:$0xf]
  %v350 = vld [vmem:[%s5 + $0x84] sm:$0xff]
  %v351 = vld [vmem:[%s5 + $0x8c] sm:$0xf]
  %v352 = vld [vmem:[%s5 + $0x90] sm:$0xff]
  %v353 = vld [vmem:[%s5 + $0x98] sm:$0xf]
  %v354 = vld [vmem:[%s5 + $0x9c] sm:$0xff]
  %v355 = vld [vmem:[%s5 + $0xa4] sm:$0xf]
  %v356 = vld [vmem:[%s5 + $0xa8] sm:$0xff]
  %v357 = vld [vmem:[%s5 + $0xb0] sm:$0xf]
  %v358 = vld [vmem:[%s5 + $0xb4] sm:$0xff]
  %v359 = vld [vmem:[%s5 + $0xbc] sm:$0xf]
  %v360 = vld [vmem:[%s6] sm:$0x7]
  %v362 = vperm.slane %v360, 0
  %v363 = vperm.slane %v360, 1
  %v364 = vperm.slane %v360, 2
  %v400 = vunpack.c.l.b16 %v328
  %v401 = vunpack.c.h.b16 %v328
  %v402 = vunpack.c.l.b16 %v329
  %v403 = vunpack.c.l.b16 %v330
  %v404 = vunpack.c.h.b16 %v330
  %v405 = vunpack.c.l.b16 %v331
  %v406 = vunpack.c.l.b16 %v332
  %v407 = vunpack.c.h.b16 %v332
  %v408 = vunpack.c.l.b16 %v333
  %v409 = vunpack.c.l.b16 %v334
  %v410 = vunpack.c.h.b16 %v334
  %v411 = vunpack.c.l.b16 %v335
  %v412 = vunpack.c.l.b16 %v336
  %v413 = vunpack.c.h.b16 %v336
  %v414 = vunpack.c.l.b16 %v337
  %v415 = vunpack.c.l.b16 %v338
  %v416 = vunpack.c.h.b16 %v338
  %v417 = vunpack.c.l.b16 %v339
  %v418 = vunpack.c.l.b16 %v340
  %v419 = vunpack.c.h.b16 %v340
  %v420 = vunpack.c.l.b16 %v341
  %v421 = vunpack.c.l.b16 %v342
  %v422 = vunpack.c.h.b16 %v342
  %v423 = vunpack.c.l.b16 %v343
  %v424 = vunpack.c.l.b16 %v344
  %v425 = vunpack.c.h.b16 %v344
  %v426 = vunpack.c.l.b16 %v345
  %v427 = vunpack.c.l.b16 %v346
  %v428 = vunpack.c.h.b16 %v346
  %v429 = vunpack.c.l.b16 %v347
  %v430 = vunpack.c.l.b16 %v348
  %v431 = vunpack.c.h.b16 %v348
  %v432 = vunpack.c.l.b16 %v349
  %v433 = vunpack.c.l.b16 %v350
  %v434 = vunpack.c.h.b16 %v350
  %v435 = vunpack.c.l.b16 %v351
  %v436 = vunpack.c.l.b16 %v352
  %v437 = vunpack.c.h.b16 %v352
  %v438 = vunpack.c.l.b16 %v353
  %v439 = vunpack.c.l.b16 %v354
  %v440 = vunpack.c.h.b16 %v354
  %v441 = vunpack.c.l.b16 %v355
  %v442 = vunpack.c.l.b16 %v356
  %v443 = vunpack.c.h.b16 %v356
  %v444 = vunpack.c.l.b16 %v357
  %v445 = vunpack.c.l.b16 %v358
  %v446 = vunpack.c.h.b16 %v358
  %v447 = vunpack.c.l.b16 %v359
  %v448 = vpack.c.b16 %v403, %v400
  %v449 = vpack.c.b16 %v404, %v401
  %v450 = vpack.c.b16 %v405, %v402
  %v451 = vpack.c.b16 %v409, %v406
  %v452 = vpack.c.b16 %v410, %v407
  %v453 = vpack.c.b16 %v411, %v408
  %v454 = vpack.c.b16 %v415, %v412
  %v455 = vpack.c.b16 %v416, %v413
  %v456 = vpack.c.b16 %v417, %v414
  %v457 = vpack.c.b16 %v421, %v418
  %v458 = vpack.c.b16 %v422, %v419
  %v459 = vpack.c.b16 %v423, %v420
  %v460 = vpack.c.b16 %v427, %v424
  %v461 = vpack.c.b16 %v428, %v425
  %v462 = vpack.c.b16 %v429, %v426
  %v463 = vpack.c.b16 %v433, %v430
  %v464 = vpack.c.b16 %v434, %v431
  %v465 = vpack.c.b16 %v435, %v432
  %v466 = vpack.c.b16 %v439, %v436
  %v467 = vpack.c.b16 %v440, %v437
  %v468 = vpack.c.b16 %v441, %v438
  %v469 = vpack.c.b16 %v445, %v442
  %v470 = vpack.c.b16 %v446, %v443
  %v471 = vpack.c.b16 %v447, %v444
  %496 = vmatpush.bf16.msra.mxu0 %v469
  %497 = vmatpush.bf16.msra.mxu0 %v466
  %498 = vmatpush.bf16.msra.mxu0 %v463
  %499 = vmatpush.bf16.msra.mxu0 %v460
  %500 = vmatpush.bf16.msra.mxu0 %v457
  %501 = vmatpush.bf16.msra.mxu0 %v454
  %502 = vmatpush.bf16.msra.mxu0 %v451
  %503 = vmatpush.bf16.msra.mxu0 %v448
  %504 = vmatmul.bf16.gmra.mxu0 %v156
  %v505 = vpop.f32.mrf.mxu0
  %v506 = vadd.f32 %v362, %v505
  %v507 = vpop.f32.mrf.mxu0
  %v508 = vadd.f32 %v362, %v507
  %509 = vdwg.mxu0
  %510 = vmatpush.bf16.msra.mxu0 %v470
  %511 = vmatpush.bf16.msra.mxu0 %v467
  %512 = vmatpush.bf16.msra.mxu0 %v464
  %513 = vmatpush.bf16.msra.mxu0 %v461
  %514 = vmatpush.bf16.msra.mxu0 %v458
  %515 = vmatpush.bf16.msra.mxu0 %v455
  %516 = vmatpush.bf16.msra.mxu0 %v452
  %517 = vmatpush.bf16.msra.mxu0 %v449
  %518 = vmatmul.bf16.gmra.mxu0 %v156
  %v519 = vpop.f32.mrf.mxu0
  %v520 = vadd.f32 %v363, %v519
  %v521 = vpop.f32.mrf.mxu0
  %v522 = vadd.f32 %v363, %v521
  %523 = vdwg.mxu0
  %524 = vmatpush.bf16.msra.mxu0 %v471
  %525 = vmatpush.bf16.msra.mxu0 %v468
  %526 = vmatpush.bf16.msra.mxu0 %v465
  %527 = vmatpush.bf16.msra.mxu0 %v462
  %528 = vmatpush.bf16.msra.mxu0 %v459
  %529 = vmatpush.bf16.msra.mxu0 %v456
  %530 = vmatpush.bf16.msra.mxu0 %v453
  %531 = vmatpush.bf16.msra.mxu0 %v450
  %532 = vmatmul.bf16.gmra.mxu0 %v156
  %v533 = vpop.f32.mrf.mxu0
  %v534 = vadd.f32 %v364, %v533
  %v535 = vpop.f32.mrf.mxu0
  %v536 = vadd.f32 %v364, %v535
  %537 = vdwg.mxu0
  %v538 = vxor.u32 %v296, 2147483648
  %v539 = vxor.u32 %v310, 2147483648
  %v540 = vxor.u32 %v324, 2147483648
  %v541 = vxor.u32 %v298, 2147483648
  %v542 = vxor.u32 %v312, 2147483648
  %v543 = vxor.u32 %v326, 2147483648
  %v544 = vmul.f32 %v538, 1.442695
  %v545 = vpow.pop %v544
  %v546 = vmul.f32 %v539, 1.442695
  %v547 = vpow.pop %v546
  %v548 = vmul.f32 %v540, 1.442695
  %v549 = vpow.pop %v548
  %v550 = vmul.f32 %v541, 1.442695
  %v551 = vpow.pop %v550
  %v552 = vmul.f32 %v542, 1.442695
  %v553 = vpow.pop %v552
  %v554 = vmul.f32 %v543, 1.442695
  %v555 = vpow.pop %v554
  %v556 = vadd.f32 %v545, 1.0
  %v557 = vadd.f32 %v547, 1.0
  %v558 = vadd.f32 %v549, 1.0
  %v559 = vadd.f32 %v551, 1.0
  %v560 = vadd.f32 %v553, 1.0
  %v561 = vadd.f32 %v555, 1.0
  %v562 = vrcp.pop %v556
  %v563 = vmul.f32 %v556, %v562
  %v564 = vsub.f32 1.0, %v563
  %v565 = vmul.f32 %v562, %v564
  %v566 = vadd.f32 %v562, %v565
  %vm567 = vweird.f32 %v556
  %vm568 = vweird.f32 %v562
  %vm569 = vmor %vm567, %vm568
  %v570 = vsel %vm569, %v562, %v566
  %v571 = vand.u32 2147483647, %v556
  %vm572 = vcmp.eq.f32.partialorder %v571, 8.507059e+37
  %v573 = vand.u32 %v556, 2147483648
  %v574 = vor.u32 1.1754944e-38, %v573
  %v575 = vsel %vm572, %v574, %v570
  %v576 = vmul.f32 1.0, %v575
  %v577 = vrcp.pop %v557
  %v578 = vmul.f32 %v557, %v577
  %v579 = vsub.f32 1.0, %v578
  %v580 = vmul.f32 %v577, %v579
  %v581 = vadd.f32 %v577, %v580
  %vm582 = vweird.f32 %v557
  %vm583 = vweird.f32 %v577
  %vm584 = vmor %vm582, %vm583
  %v585 = vsel %vm584, %v577, %v581
  %v586 = vand.u32 2147483647, %v557
  %vm587 = vcmp.eq.f32.partialorder %v586, 8.507059e+37
  %v588 = vand.u32 %v557, 2147483648
  %v589 = vor.u32 1.1754944e-38, %v588
  %v590 = vsel %vm587, %v589, %v585
  %v591 = vmul.f32 1.0, %v590
  %v592 = vrcp.pop %v558
  %v593 = vmul.f32 %v558, %v592
  %v594 = vsub.f32 1.0, %v593
  %v595 = vmul.f32 %v592, %v594
  %v596 = vadd.f32 %v592, %v595
  %vm597 = vweird.f32 %v558
  %vm598 = vweird.f32 %v592
  %vm599 = vmor %vm597, %vm598
  %v600 = vsel %vm599, %v592, %v596
  %v601 = vand.u32 2147483647, %v558
  %vm602 = vcmp.eq.f32.partialorder %v601, 8.507059e+37
  %v603 = vand.u32 %v558, 2147483648
  %v604 = vor.u32 1.1754944e-38, %v603
  %v605 = vsel %vm602, %v604, %v600
  %v606 = vmul.f32 1.0, %v605
  %v607 = vrcp.pop %v559
  %v608 = vmul.f32 %v559, %v607
  %v609 = vsub.f32 1.0, %v608
  %v610 = vmul.f32 %v607, %v609
  %v611 = vadd.f32 %v607, %v610
  %vm612 = vweird.f32 %v559
  %vm613 = vweird.f32 %v607
  %vm614 = vmor %vm612, %vm613
  %v615 = vsel %vm614, %v607, %v611
  %v616 = vand.u32 2147483647, %v559
  %vm617 = vcmp.eq.f32.partialorder %v616, 8.507059e+37
  %v618 = vand.u32 %v559, 2147483648
  %v619 = vor.u32 1.1754944e-38, %v618
  %v620 = vsel %vm617, %v619, %v615
  %v621 = vmul.f32 1.0, %v620
  %v622 = vrcp.pop %v560
  %v623 = vmul.f32 %v560, %v622
  %v624 = vsub.f32 1.0, %v623
  %v625 = vmul.f32 %v622, %v624
  %v626 = vadd.f32 %v622, %v625
  %vm627 = vweird.f32 %v560
  %vm628 = vweird.f32 %v622
  %vm629 = vmor %vm627, %vm628
  %v630 = vsel %vm629, %v622, %v626
  %v631 = vand.u32 2147483647, %v560
  %vm632 = vcmp.eq.f32.partialorder %v631, 8.507059e+37
  %v633 = vand.u32 %v560, 2147483648
  %v634 = vor.u32 1.1754944e-38, %v633
  %v635 = vsel %vm632, %v634, %v630
  %v636 = vmul.f32 1.0, %v635
  %v637 = vrcp.pop %v561
  %v638 = vmul.f32 %v561, %v637
  %v639 = vsub.f32 1.0, %v638
  %v640 = vmul.f32 %v637, %v639
  %v641 = vadd.f32 %v637, %v640
  %vm642 = vweird.f32 %v561
  %vm643 = vweird.f32 %v637
  %vm644 = vmor %vm642, %vm643
  %v645 = vsel %vm644, %v637, %v641
  %v646 = vand.u32 2147483647, %v561
  %vm647 = vcmp.eq.f32.partialorder %v646, 8.507059e+37
  %v648 = vand.u32 %v561, 2147483648
  %v649 = vor.u32 1.1754944e-38, %v648
  %v650 = vsel %vm647, %v649, %v645
  %v651 = vmul.f32 1.0, %v650
  %v652 = vmul.f32 %v296, %v576
  %v653 = vmul.f32 %v310, %v591
  %v654 = vmul.f32 %v324, %v606
  %v655 = vmul.f32 %v298, %v621
  %v656 = vmul.f32 %v312, %v636
  %v657 = vmul.f32 %v326, %v651
  %v658 = vmul.f32 %v652, %v506
  %v659 = vmul.f32 %v653, %v520
  %v660 = vmul.f32 %v654, %v534
  %v661 = vmul.f32 %v655, %v508
  %v662 = vmul.f32 %v656, %v522
  %v663 = vmul.f32 %v657, %v536
  %v664 = vld [vmem:[#allocation2] sm:$0xff]
  %v665 = vld [vmem:[#allocation2 + $0x8] sm:$0x3]
  %v666 = vpack.c.bf16 %v661, %v658
  %v667 = vpack.c.bf16 %v662, %v659
  %v668 = vpack.c.bf16 %v663, %v660
  %v669 = vld [vmem:[%s7] sm:$0xf]
  %v670 = vld [vmem:[%s7 + $0x4] sm:$0xf]
  %v671 = vld [vmem:[%s7 + $0x8] sm:$0xf]
  %v672 = vld [vmem:[%s7 + $0xc] sm:$0xf]
  %v673 = vld [vmem:[%s7 + $0x10] sm:$0xf]
  %v674 = vld [vmem:[%s7 + $0x14] sm:$0xf]
  %v675 = vld [vmem:[%s7 + $0x18] sm:$0xf]
  %v676 = vld [vmem:[%s7 + $0x1c] sm:$0xf]
  %v677 = vld [vmem:[%s7 + $0x20] sm:$0xf]
  %v678 = vld [vmem:[%s7 + $0x24] sm:$0xf]
  %v679 = vld [vmem:[%s7 + $0x28] sm:$0xf]
  %v680 = vld [vmem:[%s7 + $0x2c] sm:$0xf]
  %v681 = vld [vmem:[%s7 + $0x30] sm:$0xf]
  %v682 = vld [vmem:[%s7 + $0x34] sm:$0xf]
  %v683 = vld [vmem:[%s7 + $0x38] sm:$0xf]
  %v684 = vld [vmem:[%s7 + $0x3c] sm:$0xf]
  %v685 = vld [vmem:[%s7 + $0x40] sm:$0xf]
  %v686 = vld [vmem:[%s7 + $0x44] sm:$0xf]
  %v687 = vld [vmem:[%s7 + $0x48] sm:$0xf]
  %v688 = vld [vmem:[%s7 + $0x4c] sm:$0xf]
  %v689 = vld [vmem:[%s7 + $0x50] sm:$0xf]
  %v690 = vld [vmem:[%s7 + $0x54] sm:$0xf]
  %v691 = vld [vmem:[%s7 + $0x58] sm:$0xf]
  %v692 = vld [vmem:[%s7 + $0x5c] sm:$0xf]
  %v693 = vld [vmem:[%s7 + $0x60] sm:$0xf]
  %v694 = vld [vmem:[%s7 + $0x64] sm:$0xf]
  %v695 = vld [vmem:[%s7 + $0x68] sm:$0xf]
  %v696 = vld [vmem:[%s7 + $0x6c] sm:$0xf]
  %v697 = vld [vmem:[%s7 + $0x70] sm:$0xf]
  %v698 = vld [vmem:[%s7 + $0x74] sm:$0xf]
  %v699 = vld [vmem:[%s7 + $0x78] sm:$0xf]
  %v700 = vld [vmem:[%s7 + $0x7c] sm:$0xf]
  %v701 = vld [vmem:[%s7 + $0x80] sm:$0xf]
  %v702 = vld [vmem:[%s7 + $0x84] sm:$0xf]
  %v703 = vld [vmem:[%s7 + $0x88] sm:$0xf]
  %v704 = vld [vmem:[%s7 + $0x8c] sm:$0xf]
  %v705 = vld [vmem:[%s7 + $0x90] sm:$0xf]
  %v706 = vld [vmem:[%s7 + $0x94] sm:$0xf]
  %v707 = vld [vmem:[%s7 + $0x98] sm:$0xf]
  %v708 = vld [vmem:[%s7 + $0x9c] sm:$0xf]
  %v709 = vld [vmem:[%s7 + $0xa0] sm:$0xf]
  %v710 = vld [vmem:[%s7 + $0xa4] sm:$0xf]
  %v711 = vld [vmem:[%s7 + $0xa8] sm:$0xf]
  %v755 = vunpack.c.l.b16 %v669
  %v756 = vunpack.c.l.b16 %v670
  %v757 = vunpack.c.l.b16 %v671
  %v758 = vunpack.c.l.b16 %v672
  %v759 = vunpack.c.l.b16 %v673
  %v760 = vunpack.c.l.b16 %v674
  %v761 = vunpack.c.l.b16 %v675
  %v762 = vunpack.c.l.b16 %v676
  %v763 = vunpack.c.l.b16 %v677
  %v764 = vunpack.c.l.b16 %v678
  %v765 = vunpack.c.l.b16 %v679
  %v766 = vunpack.c.l.b16 %v680
  %v767 = vunpack.c.l.b16 %v681
  %v768 = vunpack.c.l.b16 %v682
  %v769 = vunpack.c.l.b16 %v683
  %v770 = vunpack.c.l.b16 %v684
  %v771 = vunpack.c.l.b16 %v685
  %v772 = vunpack.c.l.b16 %v686
  %v773 = vunpack.c.l.b16 %v687
  %v774 = vunpack.c.l.b16 %v688
  %v775 = vunpack.c.l.b16 %v689
  %v776 = vunpack.c.l.b16 %v690
  %v777 = vunpack.c.l.b16 %v691
  %v778 = vunpack.c.l.b16 %v692
  %v779 = vunpack.c.l.b16 %v693
  %v780 = vunpack.c.l.b16 %v694
  %v781 = vunpack.c.l.b16 %v695
  %v782 = vunpack.c.l.b16 %v696
  %v783 = vunpack.c.l.b16 %v697
  %v784 = vunpack.c.l.b16 %v698
  %v785 = vunpack.c.l.b16 %v699
  %v786 = vunpack.c.l.b16 %v700
  %v787 = vunpack.c.l.b16 %v701
  %v788 = vunpack.c.l.b16 %v702
  %v789 = vunpack.c.l.b16 %v703
  %v790 = vunpack.c.l.b16 %v704
  %v791 = vunpack.c.l.b16 %v705
  %v792 = vunpack.c.l.b16 %v706
  %v793 = vunpack.c.l.b16 %v707
  %v794 = vunpack.c.l.b16 %v708
  %v795 = vunpack.c.l.b16 %v709
  %v796 = vunpack.c.l.b16 %v710
  %v797 = vunpack.c.l.b16 %v711
  %v798 = vpack.c.b16 %v756, %v755
  %v799 = vpack.c.b16 %v758, %v757
  %v800 = vpack.c.b16 %v760, %v759
  %v801 = vpack.c.b16 %v762, %v761
  %v802 = vpack.c.b16 %v764, %v763
  %v803 = vpack.c.b16 %v766, %v765
  %v804 = vpack.c.b16 %v768, %v767
  %v805 = vpack.c.b16 %v770, %v769
  %v806 = vpack.c.b16 %v772, %v771
  %v807 = vpack.c.b16 %v774, %v773
  %v808 = vpack.c.b16 %v776, %v775
  %v809 = vpack.c.b16 %v778, %v777
  %v810 = vpack.c.b16 %v780, %v779
  %v811 = vpack.c.b16 %v782, %v781
  %v812 = vpack.c.b16 %v784, %v783
  %v813 = vpack.c.b16 %v786, %v785
  %v814 = vpack.c.b16 %v788, %v787
  %v815 = vpack.c.b16 %v790, %v789
  %v816 = vpack.c.b16 %v792, %v791
  %v817 = vpack.c.b16 %v794, %v793
  %v818 = vpack.c.b16 %v796, %v795
  %v819 = vpack.c.b16 %v797, %v797
  %vm841 = vcmask 719872
  %v843 = vsel %vm841, %v668, 0
  %vm845 = vcmask 1043456
  %v847 = vsel %vm845, %v819, 0
  %849 = vmatpush.bf16.msra.mxu0 %v805
  %850 = vmatpush.bf16.msra.mxu0 %v804
  %851 = vmatpush.bf16.msra.mxu0 %v803
  %852 = vmatpush.bf16.msra.mxu0 %v802
  %853 = vmatpush.bf16.msra.mxu0 %v801
  %854 = vmatpush.bf16.msra.mxu0 %v800
  %855 = vmatpush.bf16.msra.mxu0 %v799
  %856 = vmatpush.bf16.msra.mxu0 %v798
  %857 = vmatmul.bf16.gmra.mxu0 %v666
  %v858 = vpop.f32.mrf.mxu0
  %v859 = vadd.f32 0.0, %v858
  %v860 = vpop.f32.mrf.mxu0
  %v861 = vadd.f32 0.0, %v860
  %862 = vdwg.mxu0
  %863 = vmatpush.bf16.msra.mxu0 %v813
  %864 = vmatpush.bf16.msra.mxu0 %v812
  %865 = vmatpush.bf16.msra.mxu0 %v811
  %866 = vmatpush.bf16.msra.mxu0 %v810
  %867 = vmatpush.bf16.msra.mxu0 %v809
  %868 = vmatpush.bf16.msra.mxu0 %v808
  %869 = vmatpush.bf16.msra.mxu0 %v807
  %870 = vmatpush.bf16.msra.mxu0 %v806
  %871 = vmatmul.bf16.gmra.mxu0 %v667
  %v872 = vpop.f32.mrf.mxu0
  %v873 = vadd.f32 %v859, %v872
  %v874 = vpop.f32.mrf.mxu0
  %v875 = vadd.f32 %v861, %v874
  %876 = vdwg.mxu0
  %877 = vmatpush.bf16.msra.mxu0 0
  %878 = vmatpush.bf16.msra.mxu0 0
  %879 = vmatpush.bf16.msra.mxu0 %v847
  %880 = vmatpush.bf16.msra.mxu0 %v818
  %881 = vmatpush.bf16.msra.mxu0 %v817
  %882 = vmatpush.bf16.msra.mxu0 %v816
  %883 = vmatpush.bf16.msra.mxu0 %v815
  %884 = vmatpush.bf16.msra.mxu0 %v814
  %885 = vmatmul.bf16.gmra.mxu0 %v843
  %v886 = vpop.f32.mrf.mxu0
  %v887 = vadd.f32 %v873, %v886
  %v888 = vpop.f32.mrf.mxu0
  %v889 = vadd.f32 %v875, %v888
  %890 = vdwg.mxu0
  %v891 = vadd.f32 %v664, %v887
  %v892 = vadd.f32 %v665, %v889
  %893 = vst [vmem:[#allocation2] sm:$0xff] %v891
  %894 = vst [vmem:[#allocation2 + $0x8] sm:$0x3] %v892
  // Predicated region
  $region46: #{dinov2_forward.14} parent=0 // pred_check
    %p895 = pneg %p36
  $region47: #{dinov2_forward.14} parent=0 // pred_check_branch
    %897 = sbr.rel (%p895) target = $region49
  $region48: #{dinov2_forward.14} parent=0 // pred_region
    %v898 = vld [vmem:[#allocation2] sm:$0xff]
    %v899 = vld [vmem:[#allocation2 + $0x8] sm:$0x3]
    %v900 = vld [vmem:[%s8] sm:$0x1]
    %v902 = vperm.slane %v900, 0
    %v904 = vadd.f32 %v898, %v902
    %v905 = vadd.f32 %v899, %v902
    %v906 = vld [vmem:[%s0] sm:$0xff]
    %v907 = vld [vmem:[%s0 + $0x8] sm:$0x3]
    %v908 = vld [vmem:[%s9] sm:$0x1]
    %v910 = vperm.slane %v908, 0
    %v912 = vmul.f32 %v904, %v910
    %v913 = vmul.f32 %v905, %v910
    %v914 = vadd.f32 %v906, %v912
    %v915 = vadd.f32 %v907, %v913
    %916 = vst [vmem:[%s10] sm:$0xff] %v914
    %917 = vst [vmem:[%s10 + $0x8] sm:$0x3] %v915
  $region49: #{dinov2_forward.14} parent=0 // pred_fallthru
    _
  // Predicated region
  $region50: #{dinov2_forward.14} parent=0 // pred_check
    _
  $region51: #{dinov2_forward.14} parent=0 // pred_check_branch
    %919 = sbr.rel (0) target = $region53
  $region52: #{dinov2_forward.14} parent=0 // pred_region
    _
  $region53: #{dinov2_forward.14} parent=0 // pred_fallthru
    _
  // Predicated region
  $region54: #{dinov2_forward.14} parent=0 // pred_check
    _
  $region55: #{dinov2_forward.14} parent=0 // pred_check_branch
    %921 = sbr.rel (0) target = $region57
  $region56: #{dinov2_forward.14} parent=0 // pred_region
    _
  $region57: #{dinov2_forward.14} parent=0 // pred_fallthru
    _

</llo_original>
